<compile_context>
chip_gen: v6e
topology: v6e:2x2x1
jax: 0.10.0
libtpu: 0.0.40
codegen_flags: <defaults>
</compile_context>

<pallas_src>
import jax
import jax.numpy as jnp
from jax.experimental import pallas as pl

# ----------------------------- static "cfg" ---------------------------------
USE_EXP = False
NUM_JOINTS = 4 if USE_EXP else 3
LATENT_C = 128 * NUM_JOINTS          # 384
LATENT_L = 32                        # latent "width" (NCHW W axis) -> token axis
BATCH = 2
BL = BATCH * LATENT_L                # 64 flattened token rows
AUDIO_DIM = 16                       # raw audio feature dim
AUDIO_PAD = 128                      # lane-padded audio dim
WORD_VOCAB = 100
AT_DIM = 64                          # modality-encoder output dim
AT_PAD = 128                         # lane-padded encoder dim
HIDDEN = 256                         # denoiser hidden dim
SEED_DIM = LATENT_C                  # seed pose vector dim
NUM_STEPS = 4                        # cfg.model.n_steps
GUIDANCE_SCALE = 2.0                 # cfg.model.guidance_scale
DO_CFG = True                        # cfg.model.do_classifier_free_guidance
EPSILON = 1e-8

# timesteps = linspace(eps, 1-eps, NUM_STEPS+1): compile-time constants baked
# into the unrolled Euler loop (identical to torch.linspace in the original).
TIMESTEPS = [EPSILON + k * (1.0 - 2.0 * EPSILON) / NUM_STEPS
             for k in range(NUM_STEPS + 1)]
DT_STEP = (1.0 - 2.0 * EPSILON) / NUM_STEPS


# ------------------------ fused encoder + sampler kernel ---------------------
def gesture_lsm_kernel(x_ref, audio_ref, wemb_ref, seed_ref,
                       w_ae_ref, w_in_ref, w_a_ref, w_s_ref, w_out_ref,
                       vec_ref, out_ref):
    f32 = jnp.float32
    bf16 = jnp.bfloat16

    # ---------------- prologue: step-invariant work (runs once) -------------
    # modality encoder: at_feat = tanh(audio @ w_ae + word_emb + b_ae)
    # (b_ae already folded into wemb; audio/w_ae/wemb lane-padded to 128 with
    #  zero pads, so the padded columns of at_feat are exactly tanh(0) = 0.)
    at_feat = jnp.tanh(
        jnp.dot(audio_ref[...], w_ae_ref[...], preferred_element_type=f32)
        + wemb_ref[...])                                      # (BL, AT_PAD) f32

    # hoisted denoiser terms that never change across Euler steps
    audio_term = jnp.dot(at_feat.astype(bf16), w_a_ref[...],
                         preferred_element_type=f32)          # (BL, H) f32
    seed_proj = jnp.dot(seed_ref[...], w_s_ref[...],
                        preferred_element_type=f32)           # (BL, H) f32

    vecs = vec_ref[...]                                       # (3, C) f32 packed slab
    w_t = vecs[0:1, :HIDDEN]                                  # (1, H) timestep row
    h_static = vecs[1:2, :HIDDEN]                             # (1, H) = cond_dt*w_dt + b_h
    b_out_dt = vecs[2:3, :]                                   # (1, C) = dt_step*b_out

    static_bias = seed_proj + h_static                        # (BL, H) f32
    w_in = w_in_ref[...]                                      # bf16 (C, H)
    w_out = w_out_ref[...]                                    # bf16 (H, C)
    g = f32(GUIDANCE_SCALE)

    x = x_ref[...]                                            # (BL, C) f32

    # ---------------- unrolled Euler loop (NUM_STEPS fixed iterations) -------
    for k in range(NUM_STEPS):
        t_cur = f32(TIMESTEPS[k])                             # timesteps[step-1]
        dt_k = f32(TIMESTEPS[k + 1] - TIMESTEPS[k])

        # only two matmuls per step: x @ w_in and h_mix @ w_out (bf16 -> f32 acc)
        h_pre = (jnp.dot(x.astype(bf16), w_in, preferred_element_type=f32)
                 + static_bias + t_cur * w_t)                 # (BL, H) f32

        if DO_CFG:
            # CFG combined in hidden space; exact because the output head is
            # linear and shared between branches.  h_pre dies right after the
            # second tanh to keep vreg live ranges narrow.
            h_uncond = jnp.tanh(h_pre)
            h_mix = h_uncond + g * (jnp.tanh(h_pre + audio_term) - h_uncond)
        else:
            h_mix = jnp.tanh(h_pre + audio_term)

        sp = jnp.dot(h_mix.astype(bf16), w_out,
                     preferred_element_type=f32)              # (BL, C) f32

        # Euler update in f32: x <- x + dt*(W_out h + b_out); dt*b_out was
        # pre-folded into b_out_dt on the host.
        x = x + dt_k * sp + b_out_dt

    out_ref[...] = x


# ----------------------------- parameter packing -----------------------------
def pack_params(params):
    """One-time host-side cast/pad/fold of parameters into kernel-ready form."""
    bf16 = jnp.bfloat16
    f32 = jnp.float32
    cond_dt = 1.0 / NUM_STEPS

    # lane-pad encoder weights to 128 (zero pads keep the math exact)
    w_ae = jnp.zeros((AUDIO_PAD, AT_PAD), f32).at[:AUDIO_DIM, :AT_DIM].set(params["w_ae"])
    w_a = jnp.zeros((AT_PAD, HIDDEN), f32).at[:AT_DIM, :].set(params["w_a"])

    # fold b_ae into the embedding table (gather then already carries the bias)
    word_emb = jnp.zeros((WORD_VOCAB, AT_PAD), f32).at[:, :AT_DIM].set(
        params["word_emb"] + params["b_ae"])

    # pack the tiny (1,N) vectors into one lane-dense (3, C) slab:
    #   row 0: w_t (padded)   row 1: cond_dt*w_dt + b_h (padded)   row 2: dt*b_out
    pad_h = lambda v: jnp.pad(v, ((0, 0), (0, LATENT_C - HIDDEN)))
    vec = jnp.concatenate([
        pad_h(params["w_t"]),
        pad_h(cond_dt * params["w_dt"] + params["b_h"]),
        DT_STEP * params["b_out"],
    ], axis=0).astype(f32)                                    # (3, LATENT_C)

    return {
        "word_emb": word_emb,                 # f32 (VOCAB, AT_PAD), bias folded in
        "w_ae": w_ae.astype(bf16),
        "w_in": params["w_in"].astype(bf16),
        "w_a": w_a.astype(bf16),
        "w_s": params["w_s"].astype(bf16),
        "w_out": params["w_out"].astype(bf16),
        "vec": vec,
    }


# ----------------------------- GestureLSM.forward ----------------------------
def gesture_lsm_forward(condition_dict, kparams, noise_key):
    y = condition_dict["y"]
    audio = y["audio"]                               # (B, L, AUDIO_DIM)
    word_tokens = y["word"]                          # (B, L) int32
    seed_vectors = y["seed"]                         # (B, SEED_DIM)
    # TODO(synk): plug ids/mask/style_feature/wavlm into the denoiser once its
    # real config is known; the reference forward reads them but this synthetic
    # denoiser does not consume them.

    B, L, _ = audio.shape

    # Wrapper: layout plumbing only (gather / pad / flatten / dtype casts).
    wemb = jnp.take(kparams["word_emb"], word_tokens, axis=0).reshape(B * L, AT_PAD)
    audio_flat = jnp.pad(audio.reshape(B * L, AUDIO_DIM),
                         ((0, 0), (0, AUDIO_PAD - AUDIO_DIM))).astype(jnp.bfloat16)
    seed_flat = jnp.broadcast_to(seed_vectors[:, None, :],
                                 (B, L, SEED_DIM)).reshape(B * L, SEED_DIM
                                                           ).astype(jnp.bfloat16)

    # x_t ~ N(0, I).  The reference draws torch.randn over the NCHW latent
    # (B, 128*nj, 1, 32); i.i.d. noise is layout-invariant, so draw it directly
    # in the lane-dense (B*L, C) slab to avoid a transpose round trip.
    x_flat = jax.random.normal(noise_key, (B * L, LATENT_C), dtype=jnp.float32)

    inputs = (x_flat, audio_flat, wemb, seed_flat,
              kparams["w_ae"], kparams["w_in"], kparams["w_a"],
              kparams["w_s"], kparams["w_out"], kparams["vec"])

    x_out = pl.pallas_call(
        gesture_lsm_kernel,
        out_shape=jax.ShapeDtypeStruct((B * L, LATENT_C), jnp.float32),
        # No grid -> whole-array VMEM refs, no unused double-buffering.
        # The noise slab is aliased to the output: no separate HBM out buffer.
        input_output_aliases={0: 0},
    )(*inputs)

    # back to the PyTorch NCHW latent layout (B, 128*num_joints, 1, 32)
    latents = jnp.transpose(x_out.reshape(B, L, LATENT_C),
                            (0, 2, 1)).reshape(B, LATENT_C, 1, LATENT_L)
    return {"latents": latents}


# ----------------------------- parameter init --------------------------------
def init_params(key):
    ks = jax.random.split(key, 10)
    s = 0.05
    return {
        "word_emb": s * jax.random.normal(ks[0], (WORD_VOCAB, AT_DIM), jnp.float32),
        "w_ae":     s * jax.random.normal(ks[1], (AUDIO_DIM, AT_DIM), jnp.float32),
        "b_ae":     jnp.zeros((1, AT_DIM), jnp.float32),
        "w_in":     s * jax.random.normal(ks[2], (LATENT_C, HIDDEN), jnp.float32),
        "w_a":      s * jax.random.normal(ks[3], (AT_DIM, HIDDEN), jnp.float32),
        "w_s":      s * jax.random.normal(ks[4], (SEED_DIM, HIDDEN), jnp.float32),
        "w_t":      s * jax.random.normal(ks[5], (1, HIDDEN), jnp.float32),
        "w_dt":     s * jax.random.normal(ks[6], (1, HIDDEN), jnp.float32),
        "b_h":      jnp.zeros((1, HIDDEN), jnp.float32),
        "w_out":    s * jax.random.normal(ks[7], (HIDDEN, LATENT_C), jnp.float32),
        "b_out":    jnp.zeros((1, LATENT_C), jnp.float32),
    }


if __name__ == "__main__":
    key = jax.random.PRNGKey(0)
    k_audio, k_word, k_seed, k_style, k_params, k_noise = jax.random.split(key, 6)

    condition_dict = {
        "y": {
            "audio": jax.random.normal(k_audio, (BATCH, LATENT_L, AUDIO_DIM),
                                       jnp.float32),
            "word": jax.random.randint(k_word, (BATCH, LATENT_L), 0, WORD_VOCAB,
                                       dtype=jnp.int32),
            "id": jnp.arange(BATCH, dtype=jnp.int32),
            "seed": jax.random.normal(k_seed, (BATCH, SEED_DIM), jnp.float32),
            "mask": jnp.ones((BATCH, LATENT_L), jnp.float32),
            "style_feature": jax.random.normal(k_style, (BATCH, AT_DIM),
                                               jnp.float32),
        }
    }
    params = init_params(k_params)
    kparams = pack_params(params)        # one-time bf16 cast / pad / fold

    forward = jax.jit(gesture_lsm_forward)
    out = forward(condition_dict, kparams, k_noise)
    latents = jax.block_until_ready(out["latents"])
    assert latents.shape == (BATCH, LATENT_C, 1, LATENT_L)
    assert bool(jnp.all(jnp.isfinite(latents)))
    print("KERNEL_OK")
</pallas_src>

<mosaic_0001>
module attributes {stable_mosaic.version = 11 : i64} {
  func.func @gesture_lsm_kernel(%arg0: memref<64x384xf32, #tpu.memory_space<vmem>>, %arg1: memref<64x128xbf16, #tpu.memory_space<vmem>>, %arg2: memref<64x128xf32, #tpu.memory_space<vmem>>, %arg3: memref<64x384xbf16, #tpu.memory_space<vmem>>, %arg4: memref<128x128xbf16, #tpu.memory_space<vmem>>, %arg5: memref<384x256xbf16, #tpu.memory_space<vmem>>, %arg6: memref<128x256xbf16, #tpu.memory_space<vmem>>, %arg7: memref<384x256xbf16, #tpu.memory_space<vmem>>, %arg8: memref<256x384xbf16, #tpu.memory_space<vmem>>, %arg9: memref<3x384xf32, #tpu.memory_space<vmem>>, %arg10: memref<64x384xf32, #tpu.memory_space<vmem>>) attributes {dimension_semantics = [], scalar_prefetch = 0 : i64, scratch_operands = 0 : i64, tpu.core_type = #tpu.core_type<tc>} {
    %c0 = arith.constant 0 : index
    %c0_0 = arith.constant 0 : index
    %0 = vector.load %arg1[%c0, %c0_0] : memref<64x128xbf16, #tpu.memory_space<vmem>>, vector<64x128xbf16>
    %c0_1 = arith.constant 0 : index
    %c0_2 = arith.constant 0 : index
    %1 = vector.load %arg4[%c0_1, %c0_2] : memref<128x128xbf16, #tpu.memory_space<vmem>>, vector<128x128xbf16>
    %cst = arith.constant dense<0.000000e+00> : vector<64x128xf32>
    %2 = tpu.matmul %0, %1, %cst {dimension_numbers = #tpu.dot_dimension_numbers<[1], [0], [0], [1], [0, 0, 1, 1], [], []>} : vector<64x128xbf16>, vector<128x128xbf16>, vector<64x128xf32> -> vector<64x128xf32>
    %c0_3 = arith.constant 0 : index
    %c0_4 = arith.constant 0 : index
    %3 = vector.load %arg2[%c0_3, %c0_4] : memref<64x128xf32, #tpu.memory_space<vmem>>, vector<64x128xf32>
    %4 = arith.addf %2, %3 : vector<64x128xf32>
    %5 = math.tanh %4 : vector<64x128xf32>
    %6 = arith.truncf %5 : vector<64x128xf32> to vector<64x128xbf16>
    %c0_5 = arith.constant 0 : index
    %c0_6 = arith.constant 0 : index
    %7 = vector.load %arg6[%c0_5, %c0_6] : memref<128x256xbf16, #tpu.memory_space<vmem>>, vector<128x256xbf16>
    %cst_7 = arith.constant dense<0.000000e+00> : vector<64x256xf32>
    %8 = tpu.matmul %6, %7, %cst_7 {dimension_numbers = #tpu.dot_dimension_numbers<[1], [0], [0], [1], [0, 0, 1, 1], [], []>} : vector<64x128xbf16>, vector<128x256xbf16>, vector<64x256xf32> -> vector<64x256xf32>
    %c0_8 = arith.constant 0 : index
    %c0_9 = arith.constant 0 : index
    %9 = vector.load %arg3[%c0_8, %c0_9] : memref<64x384xbf16, #tpu.memory_space<vmem>>, vector<64x384xbf16>
    %c0_10 = arith.constant 0 : index
    %c0_11 = arith.constant 0 : index
    %10 = vector.load %arg7[%c0_10, %c0_11] : memref<384x256xbf16, #tpu.memory_space<vmem>>, vector<384x256xbf16>
    %cst_12 = arith.constant dense<0.000000e+00> : vector<64x256xf32>
    %11 = tpu.matmul %9, %10, %cst_12 {dimension_numbers = #tpu.dot_dimension_numbers<[1], [0], [0], [1], [0, 0, 1, 1], [], []>} : vector<64x384xbf16>, vector<384x256xbf16>, vector<64x256xf32> -> vector<64x256xf32>
    %c0_13 = arith.constant 0 : index
    %c0_14 = arith.constant 0 : index
    %12 = vector.load %arg9[%c0_13, %c0_14] : memref<3x384xf32, #tpu.memory_space<vmem>>, vector<3x384xf32>
    %13 = vector.extract_strided_slice %12 {offsets = [0, 0], sizes = [1, 256], strides = [1, 1]} : vector<3x384xf32> to vector<1x256xf32>
    %14 = vector.extract_strided_slice %12 {offsets = [1, 0], sizes = [1, 256], strides = [1, 1]} : vector<3x384xf32> to vector<1x256xf32>
    %15 = vector.extract_strided_slice %12 {offsets = [2, 0], sizes = [1, 384], strides = [1, 1]} : vector<3x384xf32> to vector<1x384xf32>
    %16 = vector.broadcast %14 : vector<1x256xf32> to vector<64x256xf32>
    %17 = arith.addf %11, %16 : vector<64x256xf32>
    %c0_15 = arith.constant 0 : index
    %c0_16 = arith.constant 0 : index
    %18 = vector.load %arg5[%c0_15, %c0_16] : memref<384x256xbf16, #tpu.memory_space<vmem>>, vector<384x256xbf16>
    %c0_17 = arith.constant 0 : index
    %c0_18 = arith.constant 0 : index
    %19 = vector.load %arg8[%c0_17, %c0_18] : memref<256x384xbf16, #tpu.memory_space<vmem>>, vector<256x384xbf16>
    %c0_19 = arith.constant 0 : index
    %c0_20 = arith.constant 0 : index
    %20 = vector.load %arg0[%c0_19, %c0_20] : memref<64x384xf32, #tpu.memory_space<vmem>>, vector<64x384xf32>
    %21 = arith.truncf %20 : vector<64x384xf32> to vector<64x384xbf16>
    %cst_21 = arith.constant dense<0.000000e+00> : vector<64x256xf32>
    %22 = tpu.matmul %21, %18, %cst_21 {dimension_numbers = #tpu.dot_dimension_numbers<[1], [0], [0], [1], [0, 0, 1, 1], [], []>} : vector<64x384xbf16>, vector<384x256xbf16>, vector<64x256xf32> -> vector<64x256xf32>
    %23 = arith.addf %22, %17 : vector<64x256xf32>
    %cst_22 = arith.constant 9.99999993E-9 : f32
    %24 = vector.broadcast %cst_22 : f32 to vector<1x256xf32>
    %25 = arith.mulf %24, %13 : vector<1x256xf32>
    %26 = vector.broadcast %25 : vector<1x256xf32> to vector<64x256xf32>
    %27 = arith.addf %23, %26 : vector<64x256xf32>
    %28 = math.tanh %27 : vector<64x256xf32>
    %29 = arith.addf %27, %8 : vector<64x256xf32>
    %30 = math.tanh %29 : vector<64x256xf32>
    %31 = arith.subf %30, %28 : vector<64x256xf32>
    %cst_23 = arith.constant 2.000000e+00 : f32
    %32 = vector.broadcast %cst_23 : f32 to vector<64x256xf32>
    %33 = arith.mulf %32, %31 : vector<64x256xf32>
    %34 = arith.addf %28, %33 : vector<64x256xf32>
    %35 = arith.truncf %34 : vector<64x256xf32> to vector<64x256xbf16>
    %cst_24 = arith.constant dense<0.000000e+00> : vector<64x384xf32>
    %36 = tpu.matmul %35, %19, %cst_24 {dimension_numbers = #tpu.dot_dimension_numbers<[1], [0], [0], [1], [0, 0, 1, 1], [], []>} : vector<64x256xbf16>, vector<256x384xbf16>, vector<64x384xf32> -> vector<64x384xf32>
    %cst_25 = arith.constant 2.500000e-01 : f32
    %37 = vector.broadcast %cst_25 : f32 to vector<64x384xf32>
    %38 = arith.mulf %37, %36 : vector<64x384xf32>
    %39 = arith.addf %20, %38 : vector<64x384xf32>
    %40 = vector.broadcast %15 : vector<1x384xf32> to vector<64x384xf32>
    %41 = arith.addf %39, %40 : vector<64x384xf32>
    %42 = arith.truncf %41 : vector<64x384xf32> to vector<64x384xbf16>
    %cst_26 = arith.constant dense<0.000000e+00> : vector<64x256xf32>
    %43 = tpu.matmul %42, %18, %cst_26 {dimension_numbers = #tpu.dot_dimension_numbers<[1], [0], [0], [1], [0, 0, 1, 1], [], []>} : vector<64x384xbf16>, vector<384x256xbf16>, vector<64x256xf32> -> vector<64x256xf32>
    %44 = arith.addf %43, %17 : vector<64x256xf32>
    %cst_27 = arith.constant 2.500000e-01 : f32
    %45 = vector.broadcast %cst_27 : f32 to vector<1x256xf32>
    %46 = arith.mulf %45, %13 : vector<1x256xf32>
    %47 = vector.broadcast %46 : vector<1x256xf32> to vector<64x256xf32>
    %48 = arith.addf %44, %47 : vector<64x256xf32>
    %49 = math.tanh %48 : vector<64x256xf32>
    %50 = arith.addf %48, %8 : vector<64x256xf32>
    %51 = math.tanh %50 : vector<64x256xf32>
    %52 = arith.subf %51, %49 : vector<64x256xf32>
    %cst_28 = arith.constant 2.000000e+00 : f32
    %53 = vector.broadcast %cst_28 : f32 to vector<64x256xf32>
    %54 = arith.mulf %53, %52 : vector<64x256xf32>
    %55 = arith.addf %49, %54 : vector<64x256xf32>
    %56 = arith.truncf %55 : vector<64x256xf32> to vector<64x256xbf16>
    %cst_29 = arith.constant dense<0.000000e+00> : vector<64x384xf32>
    %57 = tpu.matmul %56, %19, %cst_29 {dimension_numbers = #tpu.dot_dimension_numbers<[1], [0], [0], [1], [0, 0, 1, 1], [], []>} : vector<64x256xbf16>, vector<256x384xbf16>, vector<64x384xf32> -> vector<64x384xf32>
    %cst_30 = arith.constant 2.500000e-01 : f32
    %58 = vector.broadcast %cst_30 : f32 to vector<64x384xf32>
    %59 = arith.mulf %58, %57 : vector<64x384xf32>
    %60 = arith.addf %41, %59 : vector<64x384xf32>
    %61 = vector.broadcast %15 : vector<1x384xf32> to vector<64x384xf32>
    %62 = arith.addf %60, %61 : vector<64x384xf32>
    %63 = arith.truncf %62 : vector<64x384xf32> to vector<64x384xbf16>
    %cst_31 = arith.constant dense<0.000000e+00> : vector<64x256xf32>
    %64 = tpu.matmul %63, %18, %cst_31 {dimension_numbers = #tpu.dot_dimension_numbers<[1], [0], [0], [1], [0, 0, 1, 1], [], []>} : vector<64x384xbf16>, vector<384x256xbf16>, vector<64x256xf32> -> vector<64x256xf32>
    %65 = arith.addf %64, %17 : vector<64x256xf32>
    %cst_32 = arith.constant 5.000000e-01 : f32
    %66 = vector.broadcast %cst_32 : f32 to vector<1x256xf32>
    %67 = arith.mulf %66, %13 : vector<1x256xf32>
    %68 = vector.broadcast %67 : vector<1x256xf32> to vector<64x256xf32>
    %69 = arith.addf %65, %68 : vector<64x256xf32>
    %70 = math.tanh %69 : vector<64x256xf32>
    %71 = arith.addf %69, %8 : vector<64x256xf32>
    %72 = math.tanh %71 : vector<64x256xf32>
    %73 = arith.subf %72, %70 : vector<64x256xf32>
    %cst_33 = arith.constant 2.000000e+00 : f32
    %74 = vector.broadcast %cst_33 : f32 to vector<64x256xf32>
    %75 = arith.mulf %74, %73 : vector<64x256xf32>
    %76 = arith.addf %70, %75 : vector<64x256xf32>
    %77 = arith.truncf %76 : vector<64x256xf32> to vector<64x256xbf16>
    %cst_34 = arith.constant dense<0.000000e+00> : vector<64x384xf32>
    %78 = tpu.matmul %77, %19, %cst_34 {dimension_numbers = #tpu.dot_dimension_numbers<[1], [0], [0], [1], [0, 0, 1, 1], [], []>} : vector<64x256xbf16>, vector<256x384xbf16>, vector<64x384xf32> -> vector<64x384xf32>
    %cst_35 = arith.constant 2.500000e-01 : f32
    %79 = vector.broadcast %cst_35 : f32 to vector<64x384xf32>
    %80 = arith.mulf %79, %78 : vector<64x384xf32>
    %81 = arith.addf %62, %80 : vector<64x384xf32>
    %82 = vector.broadcast %15 : vector<1x384xf32> to vector<64x384xf32>
    %83 = arith.addf %81, %82 : vector<64x384xf32>
    %84 = arith.truncf %83 : vector<64x384xf32> to vector<64x384xbf16>
    %cst_36 = arith.constant dense<0.000000e+00> : vector<64x256xf32>
    %85 = tpu.matmul %84, %18, %cst_36 {dimension_numbers = #tpu.dot_dimension_numbers<[1], [0], [0], [1], [0, 0, 1, 1], [], []>} : vector<64x384xbf16>, vector<384x256xbf16>, vector<64x256xf32> -> vector<64x256xf32>
    %86 = arith.addf %85, %17 : vector<64x256xf32>
    %cst_37 = arith.constant 7.500000e-01 : f32
    %87 = vector.broadcast %cst_37 : f32 to vector<1x256xf32>
    %88 = arith.mulf %87, %13 : vector<1x256xf32>
    %89 = vector.broadcast %88 : vector<1x256xf32> to vector<64x256xf32>
    %90 = arith.addf %86, %89 : vector<64x256xf32>
    %91 = math.tanh %90 : vector<64x256xf32>
    %92 = arith.addf %90, %8 : vector<64x256xf32>
    %93 = math.tanh %92 : vector<64x256xf32>
    %94 = arith.subf %93, %91 : vector<64x256xf32>
    %cst_38 = arith.constant 2.000000e+00 : f32
    %95 = vector.broadcast %cst_38 : f32 to vector<64x256xf32>
    %96 = arith.mulf %95, %94 : vector<64x256xf32>
    %97 = arith.addf %91, %96 : vector<64x256xf32>
    %98 = arith.truncf %97 : vector<64x256xf32> to vector<64x256xbf16>
    %cst_39 = arith.constant dense<0.000000e+00> : vector<64x384xf32>
    %99 = tpu.matmul %98, %19, %cst_39 {dimension_numbers = #tpu.dot_dimension_numbers<[1], [0], [0], [1], [0, 0, 1, 1], [], []>} : vector<64x256xbf16>, vector<256x384xbf16>, vector<64x384xf32> -> vector<64x384xf32>
    %cst_40 = arith.constant 2.500000e-01 : f32
    %100 = vector.broadcast %cst_40 : f32 to vector<64x384xf32>
    %101 = arith.mulf %100, %99 : vector<64x384xf32>
    %102 = arith.addf %83, %101 : vector<64x384xf32>
    %103 = vector.broadcast %15 : vector<1x384xf32> to vector<64x384xf32>
    %104 = arith.addf %102, %103 : vector<64x384xf32>
    %c0_41 = arith.constant 0 : index
    %c0_42 = arith.constant 0 : index
    %105 = vector.load %arg10[%c0_41, %c0_42] : memref<64x384xf32, #tpu.memory_space<vmem>>, vector<64x384xf32>
    tpu.vector_store %arg10[%c0_41, %c0_42], %104 {strides = array<i32>} : memref<64x384xf32, #tpu.memory_space<vmem>>, vector<64x384xf32>,
    return
  }
}

</mosaic_0001>

<llo_original>
// kernel: gesture_lsm_forward.1
$region0: #{gesture_lsm_forward.1}
  #allocation0 [shape = 'u32[]', space=smem, size = 0x4, offset = 0x4, fixed_abs, tag = 'smem constant byte address 0x4 - core index']
  #allocation1 [shape = 'u32[144,128]{1,0:T(1,128)}', space=vmem, size = 0x12000, scoped, tag = 'internal scratch']
  %s0 = inlined_call_operand.vmem [shape: f32[64,384], index: 0, kind: input, shape index: {}, may-alias: {0,10}]
  %s1 = inlined_call_operand.vmem [shape: bf16[64,128], index: 1, kind: input, shape index: {}]
  %s2 = inlined_call_operand.vmem [shape: f32[64,128], index: 2, kind: input, shape index: {}]
  %s3 = inlined_call_operand.vmem [shape: bf16[64,384], index: 3, kind: input, shape index: {}]
  %s4 = inlined_call_operand.vmem [shape: bf16[128,128], index: 4, kind: input, shape index: {}]
  %s5 = inlined_call_operand.vmem [shape: bf16[384,256], index: 5, kind: input, shape index: {}]
  %s6 = inlined_call_operand.hbm [shape: bf16[128,256], index: 6, kind: input, shape index: {}]
  %s7 = inlined_call_operand.vmem [shape: bf16[384,256], index: 7, kind: input, shape index: {}]
  %s8 = inlined_call_operand.vmem [shape: bf16[256,384], index: 8, kind: input, shape index: {}]
  %s9 = inlined_call_operand.vmem [shape: f32[3,384], index: 9, kind: input, shape index: {}]
  %s10 = inlined_call_operand.vmem [shape: f32[64,384], index: 10, kind: output, shape index: {}, may-alias: {0,10}]
  %s11 = sld [smem:[#allocation0]]
  $region54: #{gesture_lsm_forward.1} parent=0
    _
  %s13 = ssub.s32 1, %s11
  %s14 = scalar_select 0, %s13, %s11
  $region1: #{gesture_lsm_forward.1} parent=0
    #allocation2 [shape = 'u8[65536]{0}', space=vmem, size = 0x10000, scoped, tag = 'input window, operand 6, single buffered']
    #allocation3 [shape = 's32[1]{0}', space=sflag, size = 0x4, scoped, tag = 'scoped memory for gesture_lsm_forward.1']
    %15 = vsyncpa [#allocation3], 0
    // Predicated region
    $region2: #{gesture_lsm_forward.1} parent=1 // pred_check
      _
    $region3: #{gesture_lsm_forward.1} parent=1 // pred_check_branch
      %17 = sbr.rel (0) target = $region5
    $region4: #{gesture_lsm_forward.1} parent=1 // pred_region
      _
    $region5: #{gesture_lsm_forward.1} parent=1 // pred_fallthru
      _
    // Predicated region
    $region6: #{gesture_lsm_forward.1} parent=1 // pred_check
      _
    $region7: #{gesture_lsm_forward.1} parent=1 // pred_check_branch
      %19 = sbr.rel (0) target = $region9
    $region8: #{gesture_lsm_forward.1} parent=1 // pred_region
      _
    $region9: #{gesture_lsm_forward.1} parent=1 // pred_fallthru
      _
    // Predicated region
    $region10: #{gesture_lsm_forward.1} parent=1 // pred_check
      _
    $region11: #{gesture_lsm_forward.1} parent=1 // pred_check_branch
      %21 = sbr.rel (0) target = $region13
    $region12: #{gesture_lsm_forward.1} parent=1 // pred_region
      _
    $region13: #{gesture_lsm_forward.1} parent=1 // pred_fallthru
      _
    // Predicated region
    $region14: #{gesture_lsm_forward.1} parent=1 // pred_check
      _
    $region15: #{gesture_lsm_forward.1} parent=1 // pred_check_branch
      %23 = sbr.rel (0) target = $region17
    $region16: #{gesture_lsm_forward.1} parent=1 // pred_region
      _
    $region17: #{gesture_lsm_forward.1} parent=1 // pred_fallthru
      _
    // Predicated region
    $region18: #{gesture_lsm_forward.1} parent=1 // pred_check
      _
    $region19: #{gesture_lsm_forward.1} parent=1 // pred_check_branch
      %25 = sbr.rel (0) target = $region21
    $region20: #{gesture_lsm_forward.1} parent=1 // pred_region
      _
    $region21: #{gesture_lsm_forward.1} parent=1 // pred_fallthru
      _
    // Predicated region
    $region22: #{gesture_lsm_forward.1} parent=1 // pred_check
      _
    $region23: #{gesture_lsm_forward.1} parent=1 // pred_check_branch
      %27 = sbr.rel (0) target = $region25
    $region24: #{gesture_lsm_forward.1} parent=1 // pred_region
      _
    $region25: #{gesture_lsm_forward.1} parent=1 // pred_fallthru
      _
    // Predicated region
    $region26: #{gesture_lsm_forward.1} parent=1 // pred_check
      _
    $region27: #{gesture_lsm_forward.1} parent=1 // pred_check_branch
      %29 = sbr.rel (0) target = $region29
    $region28: #{gesture_lsm_forward.1} parent=1 // pred_region
      %s31 = ssub.s32 2048, 2048
      %32 = vsyncadd [#allocation3], %s31
      %s33 = sshll.u32 [#allocation2], 4
      %s34 = int_to_ptr.vmem [resolvable:$true] %s33
      %39 = dma.hbm_to_vmem [thread:$0]  %s6, 2048, %s34, [#allocation3], 128, 128, 8
    $region29: #{gesture_lsm_forward.1} parent=1 // pred_fallthru
      _
    // Predicated region
    $region30: #{gesture_lsm_forward.1} parent=1 // pred_check
      _
    $region31: #{gesture_lsm_forward.1} parent=1 // pred_check_branch
      %41 = sbr.rel (0) target = $region33
    $region32: #{gesture_lsm_forward.1} parent=1 // pred_region
      _
    $region33: #{gesture_lsm_forward.1} parent=1 // pred_fallthru
      _
    // Predicated region
    $region34: #{gesture_lsm_forward.1} parent=1 // pred_check
      _
    $region35: #{gesture_lsm_forward.1} parent=1 // pred_check_branch
      %43 = sbr.rel (0) target = $region37
    $region36: #{gesture_lsm_forward.1} parent=1 // pred_region
      _
    $region37: #{gesture_lsm_forward.1} parent=1 // pred_fallthru
      _
    // Predicated region
    $region38: #{gesture_lsm_forward.1} parent=1 // pred_check
      _
    $region39: #{gesture_lsm_forward.1} parent=1 // pred_check_branch
      %45 = sbr.rel (0) target = $region41
    $region40: #{gesture_lsm_forward.1} parent=1 // pred_region
      _
    $region41: #{gesture_lsm_forward.1} parent=1 // pred_fallthru
      _
    // Predicated region
    $region42: #{gesture_lsm_forward.1} parent=1 // pred_check
      _
    $region43: #{gesture_lsm_forward.1} parent=1 // pred_check_branch
      %47 = sbr.rel (0) target = $region45
    $region44: #{gesture_lsm_forward.1} parent=1 // pred_region
      %48 = dma.done [#allocation3], 2048
    $region45: #{gesture_lsm_forward.1} parent=1 // pred_fallthru
      _
    %v50 = vld [vmem:[%s1] sm:$0xf]
    %v51 = vld [vmem:[%s1 + $0x4] sm:$0xf]
    %v52 = vld [vmem:[%s1 + $0x8] sm:$0xf]
    %v53 = vld [vmem:[%s1 + $0xc] sm:$0xf]
    %v54 = vld [vmem:[%s1 + $0x10] sm:$0xf]
    %v55 = vld [vmem:[%s1 + $0x14] sm:$0xf]
    %v56 = vld [vmem:[%s1 + $0x18] sm:$0xf]
    %v57 = vld [vmem:[%s1 + $0x1c] sm:$0xf]
    %v58 = vld [vmem:[%s4] sm:$0xf]
    %v59 = vld [vmem:[%s4 + $0x4] sm:$0xf]
    %v60 = vld [vmem:[%s4 + $0x8] sm:$0xf]
    %v61 = vld [vmem:[%s4 + $0xc] sm:$0xf]
    %v62 = vld [vmem:[%s4 + $0x10] sm:$0xf]
    %v63 = vld [vmem:[%s4 + $0x14] sm:$0xf]
    %v64 = vld [vmem:[%s4 + $0x18] sm:$0xf]
    %v65 = vld [vmem:[%s4 + $0x1c] sm:$0xf]
    %v66 = vld [vmem:[%s4 + $0x20] sm:$0xf]
    %v67 = vld [vmem:[%s4 + $0x24] sm:$0xf]
    %v68 = vld [vmem:[%s4 + $0x28] sm:$0xf]
    %v69 = vld [vmem:[%s4 + $0x2c] sm:$0xf]
    %v70 = vld [vmem:[%s4 + $0x30] sm:$0xf]
    %v71 = vld [vmem:[%s4 + $0x34] sm:$0xf]
    %v72 = vld [vmem:[%s4 + $0x38] sm:$0xf]
    %v73 = vld [vmem:[%s4 + $0x3c] sm:$0xf]
    %v74 = vld [vmem:[%s2] sm:$0xff]
    %v75 = vld [vmem:[%s2 + $0x8] sm:$0xff]
    %v76 = vld [vmem:[%s2 + $0x10] sm:$0xff]
    %v77 = vld [vmem:[%s2 + $0x18] sm:$0xff]
    %v78 = vld [vmem:[%s2 + $0x20] sm:$0xff]
    %v79 = vld [vmem:[%s2 + $0x28] sm:$0xff]
    %v80 = vld [vmem:[%s2 + $0x30] sm:$0xff]
    %v81 = vld [vmem:[%s2 + $0x38] sm:$0xff]
    %v90 = vunpack.c.l.b16 %v50
    %v91 = vunpack.c.l.b16 %v51
    %v92 = vunpack.c.l.b16 %v52
    %v93 = vunpack.c.l.b16 %v53
    %v94 = vunpack.c.l.b16 %v54
    %v95 = vunpack.c.l.b16 %v55
    %v96 = vunpack.c.l.b16 %v56
    %v97 = vunpack.c.l.b16 %v57
    %v98 = vpack.c.b16 %v91, %v90
    %v99 = vpack.c.b16 %v93, %v92
    %v100 = vpack.c.b16 %v95, %v94
    %v101 = vpack.c.b16 %v97, %v96
    %v122 = vunpack.c.l.b16 %v58
    %v123 = vunpack.c.l.b16 %v59
    %v124 = vunpack.c.l.b16 %v60
    %v125 = vunpack.c.l.b16 %v61
    %v126 = vunpack.c.l.b16 %v62
    %v127 = vunpack.c.l.b16 %v63
    %v128 = vunpack.c.l.b16 %v64
    %v129 = vunpack.c.l.b16 %v65
    %v130 = vunpack.c.l.b16 %v66
    %v131 = vunpack.c.l.b16 %v67
    %v132 = vunpack.c.l.b16 %v68
    %v133 = vunpack.c.l.b16 %v69
    %v134 = vunpack.c.l.b16 %v70
    %v135 = vunpack.c.l.b16 %v71
    %v136 = vunpack.c.l.b16 %v72
    %v137 = vunpack.c.l.b16 %v73
    %v138 = vpack.c.b16 %v123, %v122
    %v139 = vpack.c.b16 %v125, %v124
    %v140 = vpack.c.b16 %v127, %v126
    %v141 = vpack.c.b16 %v129, %v128
    %v142 = vpack.c.b16 %v131, %v130
    %v143 = vpack.c.b16 %v133, %v132
    %v144 = vpack.c.b16 %v135, %v134
    %v145 = vpack.c.b16 %v137, %v136
    %154 = vmatprep.subr.bf16.mxu0 0
    %155 = vmatpush1.bf16.msra.mxu0 %v145
    %156 = vmatprep.subr.bf16.mxu0 0
    %157 = vmatpush1.bf16.msra.mxu0 %v144
    %158 = vmatprep.subr.bf16.mxu0 0
    %159 = vmatpush1.bf16.msra.mxu0 %v143
    %160 = vmatprep.subr.bf16.mxu0 0
    %161 = vmatpush1.bf16.msra.mxu0 %v142
    %162 = vmatprep.subr.bf16.mxu0 0
    %163 = vmatpush1.bf16.msra.mxu0 %v141
    %164 = vmatprep.subr.bf16.mxu0 0
    %165 = vmatpush1.bf16.msra.mxu0 %v140
    %166 = vmatprep.subr.bf16.mxu0 0
    %167 = vmatpush1.bf16.msra.mxu0 %v139
    %168 = vmatprep.subr.bf16.mxu0 0
    %169 = vmatpush1.bf16.msra.mxu0 %v138
    %170 = vmatprep.subr.bf16.mxu0 0
    %171 = vmatpush2.bf16.msra.mxu0 0
    %172 = vmatprep.subr.bf16.mxu0 0
    %173 = vmatpush2.bf16.msra.mxu0 0
    %174 = vmatprep.subr.bf16.mxu0 0
    %175 = vmatpush2.bf16.msra.mxu0 0
    %176 = vmatprep.subr.bf16.mxu0 0
    %177 = vmatpush2.bf16.msra.mxu0 0
    %178 = vmatprep.subr.bf16.mxu0 0
    %179 = vmatpush2.bf16.msra.mxu0 0
    %180 = vmatprep.subr.bf16.mxu0 0
    %181 = vmatpush2.bf16.msra.mxu0 0
    %182 = vmatprep.subr.bf16.mxu0 0
    %183 = vmatpush2.bf16.msra.mxu0 0
    %184 = vmatprep.subr.bf16.mxu0 0
    %185 = vmatpush2.bf16.msra.mxu0 0
    %186 = vmatprep.mubr.bf16.mxu0 0
    %187 = vmatmul.mubr.bf16.gmra.mxu0 %v98
    %v188 = vpop.f32.mrf.mxu0
    %v189 = vadd.f32 %v74, %v188
    %v190 = vpop.f32.mrf.mxu0
    %v191 = vpop.f32.mrf.mxu0
    %v192 = vadd.f32 %v75, %v191
    %v193 = vpop.f32.mrf.mxu0
    %194 = vmatprep.mubr.bf16.mxu0 0
    %195 = vmatmul.mubr.bf16.gmra.mxu0 %v99
    %v196 = vpop.f32.mrf.mxu0
    %v197 = vadd.f32 %v76, %v196
    %v198 = vpop.f32.mrf.mxu0
    %v199 = vpop.f32.mrf.mxu0
    %v200 = vadd.f32 %v77, %v199
    %v201 = vpop.f32.mrf.mxu0
    %202 = vmatprep.mubr.bf16.mxu0 0
    %203 = vmatmul.mubr.bf16.gmra.mxu0 %v100
    %v204 = vpop.f32.mrf.mxu0
    %v205 = vadd.f32 %v78, %v204
    %v206 = vpop.f32.mrf.mxu0
    %v207 = vpop.f32.mrf.mxu0
    %v208 = vadd.f32 %v79, %v207
    %v209 = vpop.f32.mrf.mxu0
    %210 = vmatprep.mubr.bf16.mxu0 0
    %211 = vmatmul.mubr.bf16.gmra.mxu0 %v101
    %v212 = vpop.f32.mrf.mxu0
    %v213 = vadd.f32 %v80, %v212
    %v214 = vpop.f32.mrf.mxu0
    %v215 = vpop.f32.mrf.mxu0
    %v216 = vadd.f32 %v81, %v215
    %v217 = vpop.f32.mrf.mxu0
    %218 = vdwg.mxu0
    %v219 = vtanh.pop %v189
    %v220 = vtanh.pop %v192
    %v221 = vtanh.pop %v197
    %v222 = vtanh.pop %v200
    %v223 = vtanh.pop %v205
    %v224 = vtanh.pop %v208
    %v225 = vtanh.pop %v213
    %v226 = vtanh.pop %v216
    %v227 = vpack.c.bf16 %v220, %v219
    %v228 = vpack.c.bf16 %v222, %v221
    %v229 = vpack.c.bf16 %v224, %v223
    %v230 = vpack.c.bf16 %v226, %v225
    %v231 = vld [vmem:[#allocation2] sm:$0xff]
    %v232 = vld [vmem:[#allocation2 + $0x8] sm:$0xff]
    %v233 = vld [vmem:[#allocation2 + $0x10] sm:$0xff]
    %v234 = vld [vmem:[#allocation2 + $0x18] sm:$0xff]
    %v235 = vld [vmem:[#allocation2 + $0x20] sm:$0xff]
    %v236 = vld [vmem:[#allocation2 + $0x28] sm:$0xff]
    %v237 = vld [vmem:[#allocation2 + $0x30] sm:$0xff]
    %v238 = vld [vmem:[#allocation2 + $0x38] sm:$0xff]
    %v239 = vld [vmem:[#allocation2 + $0x40] sm:$0xff]
    %v240 = vld [vmem:[#allocation2 + $0x48] sm:$0xff]
    %v241 = vld [vmem:[#allocation2 + $0x50] sm:$0xff]
    %v242 = vld [vmem:[#allocation2 + $0x58] sm:$0xff]
    %v243 = vld [vmem:[#allocation2 + $0x60] sm:$0xff]
    %v244 = vld [vmem:[#allocation2 + $0x68] sm:$0xff]
    %v245 = vld [vmem:[#allocation2 + $0x70] sm:$0xff]
    %v246 = vld [vmem:[#allocation2 + $0x78] sm:$0xff]
    %v263 = vunpack.c.l.b16 %v231
    %v264 = vunpack.c.h.b16 %v231
    %v265 = vunpack.c.l.b16 %v232
    %v266 = vunpack.c.h.b16 %v232
    %v267 = vunpack.c.l.b16 %v233
    %v268 = vunpack.c.h.b16 %v233
    %v269 = vunpack.c.l.b16 %v234
    %v270 = vunpack.c.h.b16 %v234
    %v271 = vunpack.c.l.b16 %v235
    %v272 = vunpack.c.h.b16 %v235
    %v273 = vunpack.c.l.b16 %v236
    %v274 = vunpack.c.h.b16 %v236
    %v275 = vunpack.c.l.b16 %v237
    %v276 = vunpack.c.h.b16 %v237
    %v277 = vunpack.c.l.b16 %v238
    %v278 = vunpack.c.h.b16 %v238
    %v279 = vunpack.c.l.b16 %v239
    %v280 = vunpack.c.h.b16 %v239
    %v281 = vunpack.c.l.b16 %v240
    %v282 = vunpack.c.h.b16 %v240
    %v283 = vunpack.c.l.b16 %v241
    %v284 = vunpack.c.h.b16 %v241
    %v285 = vunpack.c.l.b16 %v242
    %v286 = vunpack.c.h.b16 %v242
    %v287 = vunpack.c.l.b16 %v243
    %v288 = vunpack.c.h.b16 %v243
    %v289 = vunpack.c.l.b16 %v244
    %v290 = vunpack.c.h.b16 %v244
    %v291 = vunpack.c.l.b16 %v245
    %v292 = vunpack.c.h.b16 %v245
    %v293 = vunpack.c.l.b16 %v246
    %v294 = vunpack.c.h.b16 %v246
    %v295 = vpack.c.b16 %v265, %v263
    %v296 = vpack.c.b16 %v266, %v264
    %v297 = vpack.c.b16 %v269, %v267
    %v298 = vpack.c.b16 %v270, %v268
    %v299 = vpack.c.b16 %v273, %v271
    %v300 = vpack.c.b16 %v274, %v272
    %v301 = vpack.c.b16 %v277, %v275
    %v302 = vpack.c.b16 %v278, %v276
    %v303 = vpack.c.b16 %v281, %v279
    %v304 = vpack.c.b16 %v282, %v280
    %v305 = vpack.c.b16 %v285, %v283
    %v306 = vpack.c.b16 %v286, %v284
    %v307 = vpack.c.b16 %v289, %v287
    %v308 = vpack.c.b16 %v290, %v288
    %v309 = vpack.c.b16 %v293, %v291
    %v310 = vpack.c.b16 %v294, %v292
    %327 = vmatprep.subr.bf16.mxu0 %v310
    %328 = vmatpush1.bf16.msra.mxu0 %v309
    %329 = vmatprep.subr.bf16.mxu0 %v308
    %330 = vmatpush1.bf16.msra.mxu0 %v307
    %331 = vmatprep.subr.bf16.mxu0 %v306
    %332 = vmatpush1.bf16.msra.mxu0 %v305
    %333 = vmatprep.subr.bf16.mxu0 %v304
    %334 = vmatpush1.bf16.msra.mxu0 %v303
    %335 = vmatprep.subr.bf16.mxu0 %v302
    %336 = vmatpush1.bf16.msra.mxu0 %v301
    %337 = vmatprep.subr.bf16.mxu0 %v300
    %338 = vmatpush1.bf16.msra.mxu0 %v299
    %339 = vmatprep.subr.bf16.mxu0 %v298
    %340 = vmatpush1.bf16.msra.mxu0 %v297
    %341 = vmatprep.subr.bf16.mxu0 %v296
    %342 = vmatpush1.bf16.msra.mxu0 %v295
    %343 = vmatprep.subr.bf16.mxu0 0
    %344 = vmatpush2.bf16.msra.mxu0 0
    %345 = vmatprep.subr.bf16.mxu0 0
    %346 = vmatpush2.bf16.msra.mxu0 0
    %347 = vmatprep.subr.bf16.mxu0 0
    %348 = vmatpush2.bf16.msra.mxu0 0
    %349 = vmatprep.subr.bf16.mxu0 0
    %350 = vmatpush2.bf16.msra.mxu0 0
    %351 = vmatprep.subr.bf16.mxu0 0
    %352 = vmatpush2.bf16.msra.mxu0 0
    %353 = vmatprep.subr.bf16.mxu0 0
    %354 = vmatpush2.bf16.msra.mxu0 0
    %355 = vmatprep.subr.bf16.mxu0 0
    %356 = vmatpush2.bf16.msra.mxu0 0
    %357 = vmatprep.subr.bf16.mxu0 0
    %358 = vmatpush2.bf16.msra.mxu0 0
    %359 = vmatprep.mubr.bf16.mxu0 0
    %360 = vmatmul.mubr.bf16.gmra.mxu0 %v227
    %v361 = vpop.f32.mrf.mxu0
    %v362 = vadd.f32 0.0, %v361
    %v363 = vpop.f32.mrf.mxu0
    %v364 = vadd.f32 0.0, %v363
    %v365 = vpop.f32.mrf.mxu0
    %v366 = vadd.f32 0.0, %v365
    %v367 = vpop.f32.mrf.mxu0
    %v368 = vadd.f32 0.0, %v367
    %369 = vmatprep.mubr.bf16.mxu0 0
    %370 = vmatmul.mubr.bf16.gmra.mxu0 %v228
    %v371 = vpop.f32.mrf.mxu0
    %v372 = vadd.f32 0.0, %v371
    %v373 = vpop.f32.mrf.mxu0
    %v374 = vadd.f32 0.0, %v373
    %v375 = vpop.f32.mrf.mxu0
    %v376 = vadd.f32 0.0, %v375
    %v377 = vpop.f32.mrf.mxu0
    %v378 = vadd.f32 0.0, %v377
    %379 = vmatprep.mubr.bf16.mxu0 0
    %380 = vmatmul.mubr.bf16.gmra.mxu0 %v229
    %v381 = vpop.f32.mrf.mxu0
    %v382 = vadd.f32 0.0, %v381
    %v383 = vpop.f32.mrf.mxu0
    %v384 = vadd.f32 0.0, %v383
    %v385 = vpop.f32.mrf.mxu0
    %v386 = vadd.f32 0.0, %v385
    %v387 = vpop.f32.mrf.mxu0
    %v388 = vadd.f32 0.0, %v387
    %389 = vmatprep.mubr.bf16.mxu0 0
    %390 = vmatmul.mubr.bf16.gmra.mxu0 %v230
    %v391 = vpop.f32.mrf.mxu0
    %v392 = vadd.f32 0.0, %v391
    %v393 = vpop.f32.mrf.mxu0
    %v394 = vadd.f32 0.0, %v393
    %v395 = vpop.f32.mrf.mxu0
    %v396 = vadd.f32 0.0, %v395
    %v397 = vpop.f32.mrf.mxu0
    %v398 = vadd.f32 0.0, %v397
    %399 = vdwg.mxu0
    %v400 = vld [vmem:[%s3] sm:$0xff]
    %v401 = vld [vmem:[%s3 + $0x8] sm:$0xf]
    %v402 = vld [vmem:[%s3 + $0xc] sm:$0xff]
    %v403 = vld [vmem:[%s3 + $0x14] sm:$0xf]
    %v404 = vld [vmem:[%s3 + $0x18] sm:$0xff]
    %v405 = vld [vmem:[%s3 + $0x20] sm:$0xf]
    %v406 = vld [vmem:[%s3 + $0x24] sm:$0xff]
    %v407 = vld [vmem:[%s3 + $0x2c] sm:$0xf]
    %v408 = vld [vmem:[%s3 + $0x30] sm:$0xff]
    %v409 = vld [vmem:[%s3 + $0x38] sm:$0xf]
    %v410 = vld [vmem:[%s3 + $0x3c] sm:$0xff]
    %v411 = vld [vmem:[%s3 + $0x44] sm:$0xf]
    %v412 = vld [vmem:[%s3 + $0x48] sm:$0xff]
    %v413 = vld [vmem:[%s3 + $0x50] sm:$0xf]
    %v414 = vld [vmem:[%s3 + $0x54] sm:$0xff]
    %v415 = vld [vmem:[%s3 + $0x5c] sm:$0xf]
    %v416 = vld [vmem:[%s7] sm:$0xff]
    %v417 = vld [vmem:[%s7 + $0x8] sm:$0xff]
    %v418 = vld [vmem:[%s7 + $0x10] sm:$0xff]
    %v419 = vld [vmem:[%s7 + $0x18] sm:$0xff]
    %v420 = vld [vmem:[%s7 + $0x20] sm:$0xff]
    %v421 = vld [vmem:[%s7 + $0x28] sm:$0xff]
    %v422 = vld [vmem:[%s7 + $0x30] sm:$0xff]
    %v423 = vld [vmem:[%s7 + $0x38] sm:$0xff]
    %v424 = vld [vmem:[%s7 + $0x40] sm:$0xff]
    %v425 = vld [vmem:[%s7 + $0x48] sm:$0xff]
    %v426 = vld [vmem:[%s7 + $0x50] sm:$0xff]
    %v427 = vld [vmem:[%s7 + $0x58] sm:$0xff]
    %v428 = vld [vmem:[%s7 + $0x60] sm:$0xff]
    %v429 = vld [vmem:[%s7 + $0x68] sm:$0xff]
    %v430 = vld [vmem:[%s7 + $0x70] sm:$0xff]
    %v431 = vld [vmem:[%s7 + $0x78] sm:$0xff]
    %v432 = vld [vmem:[%s7 + $0x80] sm:$0xff]
    %v433 = vld [vmem:[%s7 + $0x88] sm:$0xff]
    %v434 = vld [vmem:[%s7 + $0x90] sm:$0xff]
    %v435 = vld [vmem:[%s7 + $0x98] sm:$0xff]
    %v436 = vld [vmem:[%s7 + $0xa0] sm:$0xff]
    %v437 = vld [vmem:[%s7 + $0xa8] sm:$0xff]
    %v438 = vld [vmem:[%s7 + $0xb0] sm:$0xff]
    %v439 = vld [vmem:[%s7 + $0xb8] sm:$0xff]
    %v440 = vld [vmem:[%s7 + $0xc0] sm:$0xff]
    %v441 = vld [vmem:[%s7 + $0xc8] sm:$0xff]
    %v442 = vld [vmem:[%s7 + $0xd0] sm:$0xff]
    %v443 = vld [vmem:[%s7 + $0xd8] sm:$0xff]
    %v444 = vld [vmem:[%s7 + $0xe0] sm:$0xff]
    %v445 = vld [vmem:[%s7 + $0xe8] sm:$0xff]
    %v446 = vld [vmem:[%s7 + $0xf0] sm:$0xff]
    %v447 = vld [vmem:[%s7 + $0xf8] sm:$0xff]
    %v448 = vld [vmem:[%s7 + $0x100] sm:$0xff]
    %v449 = vld [vmem:[%s7 + $0x108] sm:$0xff]
    %v450 = vld [vmem:[%s7 + $0x110] sm:$0xff]
    %v451 = vld [vmem:[%s7 + $0x118] sm:$0xff]
    %v452 = vld [vmem:[%s7 + $0x120] sm:$0xff]
    %v453 = vld [vmem:[%s7 + $0x128] sm:$0xff]
    %v454 = vld [vmem:[%s7 + $0x130] sm:$0xff]
    %v455 = vld [vmem:[%s7 + $0x138] sm:$0xff]
    %v456 = vld [vmem:[%s7 + $0x140] sm:$0xff]
    %v457 = vld [vmem:[%s7 + $0x148] sm:$0xff]
    %v458 = vld [vmem:[%s7 + $0x150] sm:$0xff]
    %v459 = vld [vmem:[%s7 + $0x158] sm:$0xff]
    %v460 = vld [vmem:[%s7 + $0x160] sm:$0xff]
    %v461 = vld [vmem:[%s7 + $0x168] sm:$0xff]
    %v462 = vld [vmem:[%s7 + $0x170] sm:$0xff]
    %v463 = vld [vmem:[%s7 + $0x178] sm:$0xff]
    %v464 = vld [vmem:[%s9] sm:$0x77]
    %v465 = vld [vmem:[%s9 + $0x8] sm:$0x7]
    %v467 = vlaneseq
    %v468 = vshrl.u32 %v467, 7
    %v469 = vsub.s32 1, %v468
    %v470 = vrot.slane %v464, %v469
    %v471 = vlaneseq
    %v472 = vshrl.u32 %v471, 7
    %v473 = vsub.s32 5, %v472
    %v474 = vrot.slane %v464, %v473
    %v477 = vlaneseq
    %v478 = vshrl.u32 %v477, 7
    %v479 = vsub.s32 1, %v478
    %v480 = vrot.slane %v470, %v479
    %v481 = vlaneseq
    %v482 = vshrl.u32 %v481, 7
    %v483 = vsub.s32 1, %v482
    %v484 = vrot.slane %v474, %v483
    %v501 = vunpack.c.l.b16 %v400
    %v502 = vunpack.c.h.b16 %v400
    %v503 = vunpack.c.l.b16 %v401
    %v504 = vunpack.c.l.b16 %v402
    %v505 = vunpack.c.h.b16 %v402
    %v506 = vunpack.c.l.b16 %v403
    %v507 = vunpack.c.l.b16 %v404
    %v508 = vunpack.c.h.b16 %v404
    %v509 = vunpack.c.l.b16 %v405
    %v510 = vunpack.c.l.b16 %v406
    %v511 = vunpack.c.h.b16 %v406
    %v512 = vunpack.c.l.b16 %v407
    %v513 = vunpack.c.l.b16 %v408
    %v514 = vunpack.c.h.b16 %v408
    %v515 = vunpack.c.l.b16 %v409
    %v516 = vunpack.c.l.b16 %v410
    %v517 = vunpack.c.h.b16 %v410
    %v518 = vunpack.c.l.b16 %v411
    %v519 = vunpack.c.l.b16 %v412
    %v520 = vunpack.c.h.b16 %v412
    %v521 = vunpack.c.l.b16 %v413
    %v522 = vunpack.c.l.b16 %v414
    %v523 = vunpack.c.h.b16 %v414
    %v524 = vunpack.c.l.b16 %v415
    %v525 = vpack.c.b16 %v504, %v501
    %v526 = vpack.c.b16 %v505, %v502
    %v527 = vpack.c.b16 %v506, %v503
    %v528 = vpack.c.b16 %v510, %v507
    %v529 = vpack.c.b16 %v511, %v508
    %v530 = vpack.c.b16 %v512, %v509
    %v531 = vpack.c.b16 %v516, %v513
    %v532 = vpack.c.b16 %v517, %v514
    %v533 = vpack.c.b16 %v518, %v515
    %v534 = vpack.c.b16 %v522, %v519
    %v535 = vpack.c.b16 %v523, %v520
    %v536 = vpack.c.b16 %v524, %v521
    %v597 = vunpack.c.l.b16 %v416
    %v598 = vunpack.c.h.b16 %v416
    %v599 = vunpack.c.l.b16 %v417
    %v600 = vunpack.c.h.b16 %v417
    %v601 = vunpack.c.l.b16 %v418
    %v602 = vunpack.c.h.b16 %v418
    %v603 = vunpack.c.l.b16 %v419
    %v604 = vunpack.c.h.b16 %v419
    %v605 = vunpack.c.l.b16 %v420
    %v606 = vunpack.c.h.b16 %v420
    %v607 = vunpack.c.l.b16 %v421
    %v608 = vunpack.c.h.b16 %v421
    %v609 = vunpack.c.l.b16 %v422
    %v610 = vunpack.c.h.b16 %v422
    %v611 = vunpack.c.l.b16 %v423
    %v612 = vunpack.c.h.b16 %v423
    %v613 = vunpack.c.l.b16 %v424
    %v614 = vunpack.c.h.b16 %v424
    %v615 = vunpack.c.l.b16 %v425
    %v616 = vunpack.c.h.b16 %v425
    %v617 = vunpack.c.l.b16 %v426
    %v618 = vunpack.c.h.b16 %v426
    %v619 = vunpack.c.l.b16 %v427
    %v620 = vunpack.c.h.b16 %v427
    %v621 = vunpack.c.l.b16 %v428
    %v622 = vunpack.c.h.b16 %v428
    %v623 = vunpack.c.l.b16 %v429
    %v624 = vunpack.c.h.b16 %v429
    %v625 = vunpack.c.l.b16 %v430
    %v626 = vunpack.c.h.b16 %v430
    %v627 = vunpack.c.l.b16 %v431
    %v628 = vunpack.c.h.b16 %v431
    %v629 = vunpack.c.l.b16 %v432
    %v630 = vunpack.c.h.b16 %v432
    %v631 = vunpack.c.l.b16 %v433
    %v632 = vunpack.c.h.b16 %v433
    %v633 = vunpack.c.l.b16 %v434
    %v634 = vunpack.c.h.b16 %v434
    %v635 = vunpack.c.l.b16 %v435
    %v636 = vunpack.c.h.b16 %v435
    %v637 = vunpack.c.l.b16 %v436
    %v638 = vunpack.c.h.b16 %v436
    %v639 = vunpack.c.l.b16 %v437
    %v640 = vunpack.c.h.b16 %v437
    %v641 = vunpack.c.l.b16 %v438
    %v642 = vunpack.c.h.b16 %v438
    %v643 = vunpack.c.l.b16 %v439
    %v644 = vunpack.c.h.b16 %v439
    %v645 = vunpack.c.l.b16 %v440
    %v646 = vunpack.c.h.b16 %v440
    %v647 = vunpack.c.l.b16 %v441
    %v648 = vunpack.c.h.b16 %v441
    %v649 = vunpack.c.l.b16 %v442
    %v650 = vunpack.c.h.b16 %v442
    %v651 = vunpack.c.l.b16 %v443
    %v652 = vunpack.c.h.b16 %v443
    %v653 = vunpack.c.l.b16 %v444
    %v654 = vunpack.c.h.b16 %v444
    %v655 = vunpack.c.l.b16 %v445
    %v656 = vunpack.c.h.b16 %v445
    %v657 = vunpack.c.l.b16 %v446
    %v658 = vunpack.c.h.b16 %v446
    %v659 = vunpack.c.l.b16 %v447
    %v660 = vunpack.c.h.b16 %v447
    %v661 = vunpack.c.l.b16 %v448
    %v662 = vunpack.c.h.b16 %v448
    %v663 = vunpack.c.l.b16 %v449
    %v664 = vunpack.c.h.b16 %v449
    %v665 = vunpack.c.l.b16 %v450
    %v666 = vunpack.c.h.b16 %v450
    %v667 = vunpack.c.l.b16 %v451
    %v668 = vunpack.c.h.b16 %v451
    %v669 = vunpack.c.l.b16 %v452
    %v670 = vunpack.c.h.b16 %v452
    %v671 = vunpack.c.l.b16 %v453
    %v672 = vunpack.c.h.b16 %v453
    %v673 = vunpack.c.l.b16 %v454
    %v674 = vunpack.c.h.b16 %v454
    %v675 = vunpack.c.l.b16 %v455
    %v676 = vunpack.c.h.b16 %v455
    %v677 = vunpack.c.l.b16 %v456
    %v678 = vunpack.c.h.b16 %v456
    %v679 = vunpack.c.l.b16 %v457
    %v680 = vunpack.c.h.b16 %v457
    %v681 = vunpack.c.l.b16 %v458
    %v682 = vunpack.c.h.b16 %v458
    %v683 = vunpack.c.l.b16 %v459
    %v684 = vunpack.c.h.b16 %v459
    %v685 = vunpack.c.l.b16 %v460
    %v686 = vunpack.c.h.b16 %v460
    %v687 = vunpack.c.l.b16 %v461
    %v688 = vunpack.c.h.b16 %v461
    %v689 = vunpack.c.l.b16 %v462
    %v690 = vunpack.c.h.b16 %v462
    %v691 = vunpack.c.l.b16 %v463
    %v692 = vunpack.c.h.b16 %v463
    %v693 = vpack.c.b16 %v599, %v597
    %v694 = vpack.c.b16 %v600, %v598
    %v695 = vpack.c.b16 %v603, %v601
    %v696 = vpack.c.b16 %v604, %v602
    %v697 = vpack.c.b16 %v607, %v605
    %v698 = vpack.c.b16 %v608, %v606
    %v699 = vpack.c.b16 %v611, %v609
    %v700 = vpack.c.b16 %v612, %v610
    %v701 = vpack.c.b16 %v615, %v613
    %v702 = vpack.c.b16 %v616, %v614
    %v703 = vpack.c.b16 %v619, %v617
    %v704 = vpack.c.b16 %v620, %v618
    %v705 = vpack.c.b16 %v623, %v621
    %v706 = vpack.c.b16 %v624, %v622
    %v707 = vpack.c.b16 %v627, %v625
    %v708 = vpack.c.b16 %v628, %v626
    %v709 = vpack.c.b16 %v631, %v629
    %v710 = vpack.c.b16 %v632, %v630
    %v711 = vpack.c.b16 %v635, %v633
    %v712 = vpack.c.b16 %v636, %v634
    %v713 = vpack.c.b16 %v639, %v637
    %v714 = vpack.c.b16 %v640, %v638
    %v715 = vpack.c.b16 %v643, %v641
    %v716 = vpack.c.b16 %v644, %v642
    %v717 = vpack.c.b16 %v647, %v645
    %v718 = vpack.c.b16 %v648, %v646
    %v719 = vpack.c.b16 %v651, %v649
    %v720 = vpack.c.b16 %v652, %v650
    %v721 = vpack.c.b16 %v655, %v653
    %v722 = vpack.c.b16 %v656, %v654
    %v723 = vpack.c.b16 %v659, %v657
    %v724 = vpack.c.b16 %v660, %v658
    %v725 = vpack.c.b16 %v663, %v661
    %v726 = vpack.c.b16 %v664, %v662
    %v727 = vpack.c.b16 %v667, %v665
    %v728 = vpack.c.b16 %v668, %v666
    %v729 = vpack.c.b16 %v671, %v669
    %v730 = vpack.c.b16 %v672, %v670
    %v731 = vpack.c.b16 %v675, %v673
    %v732 = vpack.c.b16 %v676, %v674
    %v733 = vpack.c.b16 %v679, %v677
    %v734 = vpack.c.b16 %v680, %v678
    %v735 = vpack.c.b16 %v683, %v681
    %v736 = vpack.c.b16 %v684, %v682
    %v737 = vpack.c.b16 %v687, %v685
    %v738 = vpack.c.b16 %v688, %v686
    %v739 = vpack.c.b16 %v691, %v689
    %v740 = vpack.c.b16 %v692, %v690
    %789 = vmatprep.subr.bf16.mxu0 %v708
    %790 = vmatpush1.bf16.msra.mxu0 %v707
    %791 = vmatprep.subr.bf16.mxu0 %v706
    %792 = vmatpush1.bf16.msra.mxu0 %v705
    %793 = vmatprep.subr.bf16.mxu0 %v704
    %794 = vmatpush1.bf16.msra.mxu0 %v703
    %795 = vmatprep.subr.bf16.mxu0 %v702
    %796 = vmatpush1.bf16.msra.mxu0 %v701
    %797 = vmatprep.subr.bf16.mxu0 %v700
    %798 = vmatpush1.bf16.msra.mxu0 %v699
    %799 = vmatprep.subr.bf16.mxu0 %v698
    %800 = vmatpush1.bf16.msra.mxu0 %v697
    %801 = vmatprep.subr.bf16.mxu0 %v696
    %802 = vmatpush1.bf16.msra.mxu0 %v695
    %803 = vmatprep.subr.bf16.mxu0 %v694
    %804 = vmatpush1.bf16.msra.mxu0 %v693
    %805 = vmatprep.subr.bf16.mxu0 %v724
    %806 = vmatpush2.bf16.msra.mxu0 %v723
    %807 = vmatprep.subr.bf16.mxu0 %v722
    %808 = vmatpush2.bf16.msra.mxu0 %v721
    %809 = vmatprep.subr.bf16.mxu0 %v720
    %810 = vmatpush2.bf16.msra.mxu0 %v719
    %811 = vmatprep.subr.bf16.mxu0 %v718
    %812 = vmatpush2.bf16.msra.mxu0 %v717
    %813 = vmatprep.subr.bf16.mxu0 %v716
    %814 = vmatpush2.bf16.msra.mxu0 %v715
    %815 = vmatprep.subr.bf16.mxu0 %v714
    %816 = vmatpush2.bf16.msra.mxu0 %v713
    %817 = vmatprep.subr.bf16.mxu0 %v712
    %818 = vmatpush2.bf16.msra.mxu0 %v711
    %819 = vmatprep.subr.bf16.mxu0 %v710
    %820 = vmatpush2.bf16.msra.mxu0 %v709
    %821 = vmatprep.mubr.bf16.mxu0 %v526
    %822 = vmatmul.mubr.bf16.gmra.mxu0 %v525
    %v823 = vpop.f32.mrf.mxu0
    %v824 = vadd.f32 %v480, %v823
    %v825 = vpop.f32.mrf.mxu0
    %v826 = vadd.f32 %v484, %v825
    %v827 = vpop.f32.mrf.mxu0
    %v828 = vadd.f32 %v480, %v827
    %v829 = vpop.f32.mrf.mxu0
    %v830 = vadd.f32 %v484, %v829
    %831 = vmatprep.mubr.bf16.mxu0 %v529
    %832 = vmatmul.mubr.bf16.gmra.mxu0 %v528
    %v833 = vpop.f32.mrf.mxu0
    %v834 = vadd.f32 %v480, %v833
    %v835 = vpop.f32.mrf.mxu0
    %v836 = vadd.f32 %v484, %v835
    %v837 = vpop.f32.mrf.mxu0
    %v838 = vadd.f32 %v480, %v837
    %v839 = vpop.f32.mrf.mxu0
    %v840 = vadd.f32 %v484, %v839
    %841 = vmatprep.mubr.bf16.mxu0 %v532
    %842 = vmatmul.mubr.bf16.gmra.mxu0 %v531
    %v843 = vpop.f32.mrf.mxu0
    %v844 = vadd.f32 %v480, %v843
    %v845 = vpop.f32.mrf.mxu0
    %v846 = vadd.f32 %v484, %v845
    %v847 = vpop.f32.mrf.mxu0
    %v848 = vadd.f32 %v480, %v847
    %v849 = vpop.f32.mrf.mxu0
    %v850 = vadd.f32 %v484, %v849
    %851 = vmatprep.mubr.bf16.mxu0 %v535
    %852 = vmatmul.mubr.bf16.gmra.mxu0 %v534
    %v853 = vpop.f32.mrf.mxu0
    %v854 = vadd.f32 %v480, %v853
    %v855 = vpop.f32.mrf.mxu0
    %v856 = vadd.f32 %v484, %v855
    %v857 = vpop.f32.mrf.mxu0
    %v858 = vadd.f32 %v480, %v857
    %v859 = vpop.f32.mrf.mxu0
    %v860 = vadd.f32 %v484, %v859
    %861 = vdwg.mxu0
    %862 = vmatprep.subr.bf16.mxu0 %v740
    %863 = vmatpush1.bf16.msra.mxu0 %v739
    %864 = vmatprep.subr.bf16.mxu0 %v738
    %865 = vmatpush1.bf16.msra.mxu0 %v737
    %866 = vmatprep.subr.bf16.mxu0 %v736
    %867 = vmatpush1.bf16.msra.mxu0 %v735
    %868 = vmatprep.subr.bf16.mxu0 %v734
    %869 = vmatpush1.bf16.msra.mxu0 %v733
    %870 = vmatprep.subr.bf16.mxu0 %v732
    %871 = vmatpush1.bf16.msra.mxu0 %v731
    %872 = vmatprep.subr.bf16.mxu0 %v730
    %873 = vmatpush1.bf16.msra.mxu0 %v729
    %874 = vmatprep.subr.bf16.mxu0 %v728
    %875 = vmatpush1.bf16.msra.mxu0 %v727
    %876 = vmatprep.subr.bf16.mxu0 %v726
    %877 = vmatpush1.bf16.msra.mxu0 %v725
    %878 = vmatprep.subr.bf16.mxu0 0
    %879 = vmatpush2.bf16.msra.mxu0 0
    %880 = vmatprep.subr.bf16.mxu0 0
    %881 = vmatpush2.bf16.msra.mxu0 0
    %882 = vmatprep.subr.bf16.mxu0 0
    %883 = vmatpush2.bf16.msra.mxu0 0
    %884 = vmatprep.subr.bf16.mxu0 0
    %885 = vmatpush2.bf16.msra.mxu0 0
    %886 = vmatprep.subr.bf16.mxu0 0
    %887 = vmatpush2.bf16.msra.mxu0 0
    %888 = vmatprep.subr.bf16.mxu0 0
    %889 = vmatpush2.bf16.msra.mxu0 0
    %890 = vmatprep.subr.bf16.mxu0 0
    %891 = vmatpush2.bf16.msra.mxu0 0
    %892 = vmatprep.subr.bf16.mxu0 0
    %893 = vmatpush2.bf16.msra.mxu0 0
    %894 = vmatprep.mubr.bf16.mxu0 0
    %895 = vmatmul.mubr.bf16.gmra.mxu0 %v527
    %v896 = vpop.f32.mrf.mxu0
    %v897 = vadd.f32 %v824, %v896
    %v898 = vpop.f32.mrf.mxu0
    %v899 = vadd.f32 %v826, %v898
    %v900 = vpop.f32.mrf.mxu0
    %v901 = vadd.f32 %v828, %v900
    %v902 = vpop.f32.mrf.mxu0
    %v903 = vadd.f32 %v830, %v902
    %904 = vmatprep.mubr.bf16.mxu0 0
    %905 = vmatmul.mubr.bf16.gmra.mxu0 %v530
    %v906 = vpop.f32.mrf.mxu0
    %v907 = vadd.f32 %v834, %v906
    %v908 = vpop.f32.mrf.mxu0
    %v909 = vadd.f32 %v836, %v908
    %v910 = vpop.f32.mrf.mxu0
    %v911 = vadd.f32 %v838, %v910
    %v912 = vpop.f32.mrf.mxu0
    %v913 = vadd.f32 %v840, %v912
    %914 = vmatprep.mubr.bf16.mxu0 0
    %915 = vmatmul.mubr.bf16.gmra.mxu0 %v533
    %v916 = vpop.f32.mrf.mxu0
    %v917 = vadd.f32 %v844, %v916
    %v918 = vpop.f32.mrf.mxu0
    %v919 = vadd.f32 %v846, %v918
    %v920 = vpop.f32.mrf.mxu0
    %v921 = vadd.f32 %v848, %v920
    %v922 = vpop.f32.mrf.mxu0
    %v923 = vadd.f32 %v850, %v922
    %924 = vmatprep.mubr.bf16.mxu0 0
    %925 = vmatmul.mubr.bf16.gmra.mxu0 %v536
    %v926 = vpop.f32.mrf.mxu0
    %v927 = vadd.f32 %v854, %v926
    %v928 = vpop.f32.mrf.mxu0
    %v929 = vadd.f32 %v856, %v928
    %v930 = vpop.f32.mrf.mxu0
    %v931 = vadd.f32 %v858, %v930
    %v932 = vpop.f32.mrf.mxu0
    %v933 = vadd.f32 %v860, %v932
    %934 = vdwg.mxu0
    %v935 = vld [vmem:[%s5] sm:$0xff]
    %v936 = vld [vmem:[%s5 + $0x8] sm:$0xff]
    %v937 = vld [vmem:[%s5 + $0x10] sm:$0xff]
    %v938 = vld [vmem:[%s5 + $0x18] sm:$0xff]
    %v939 = vld [vmem:[%s5 + $0x20] sm:$0xff]
    %v940 = vld [vmem:[%s5 + $0x28] sm:$0xff]
    %v941 = vld [vmem:[%s5 + $0x30] sm:$0xff]
    %v942 = vld [vmem:[%s5 + $0x38] sm:$0xff]
    %v943 = vld [vmem:[%s5 + $0x40] sm:$0xff]
    %v944 = vld [vmem:[%s5 + $0x48] sm:$0xff]
    %v945 = vld [vmem:[%s5 + $0x50] sm:$0xff]
    %v946 = vld [vmem:[%s5 + $0x58] sm:$0xff]
    %v947 = vld [vmem:[%s5 + $0x60] sm:$0xff]
    %v948 = vld [vmem:[%s5 + $0x68] sm:$0xff]
    %v949 = vld [vmem:[%s5 + $0x70] sm:$0xff]
    %v950 = vld [vmem:[%s5 + $0x78] sm:$0xff]
    %v951 = vld [vmem:[%s5 + $0x80] sm:$0xff]
    %v952 = vld [vmem:[%s5 + $0x88] sm:$0xff]
    %v953 = vld [vmem:[%s5 + $0x90] sm:$0xff]
    %v954 = vld [vmem:[%s5 + $0x98] sm:$0xff]
    %v955 = vld [vmem:[%s5 + $0xa0] sm:$0xff]
    %v956 = vld [vmem:[%s5 + $0xa8] sm:$0xff]
    %v957 = vld [vmem:[%s5 + $0xb0] sm:$0xff]
    %v958 = vld [vmem:[%s5 + $0xb8] sm:$0xff]
    %v959 = vld [vmem:[%s5 + $0xc0] sm:$0xff]
    %v960 = vld [vmem:[%s5 + $0xc8] sm:$0xff]
    %v961 = vld [vmem:[%s5 + $0xd0] sm:$0xff]
    %v962 = vld [vmem:[%s5 + $0xd8] sm:$0xff]
    %v963 = vld [vmem:[%s5 + $0xe0] sm:$0xff]
    %v964 = vld [vmem:[%s5 + $0xe8] sm:$0xff]
    %v965 = vld [vmem:[%s5 + $0xf0] sm:$0xff]
    %v966 = vld [vmem:[%s5 + $0xf8] sm:$0xff]
    %v967 = vld [vmem:[%s5 + $0x100] sm:$0xff]
    %v968 = vld [vmem:[%s5 + $0x108] sm:$0xff]
    %v969 = vld [vmem:[%s5 + $0x110] sm:$0xff]
    %v970 = vld [vmem:[%s5 + $0x118] sm:$0xff]
    %v971 = vld [vmem:[%s5 + $0x120] sm:$0xff]
    %v972 = vld [vmem:[%s5 + $0x128] sm:$0xff]
    %v973 = vld [vmem:[%s5 + $0x130] sm:$0xff]
    %v974 = vld [vmem:[%s5 + $0x138] sm:$0xff]
    %v975 = vld [vmem:[%s5 + $0x140] sm:$0xff]
    %v976 = vld [vmem:[%s5 + $0x148] sm:$0xff]
    %v977 = vld [vmem:[%s5 + $0x150] sm:$0xff]
    %v978 = vld [vmem:[%s5 + $0x158] sm:$0xff]
    %v979 = vld [vmem:[%s5 + $0x160] sm:$0xff]
    %v980 = vld [vmem:[%s5 + $0x168] sm:$0xff]
    %v981 = vld [vmem:[%s5 + $0x170] sm:$0xff]
    %v982 = vld [vmem:[%s5 + $0x178] sm:$0xff]
    %v983 = vld [vmem:[%s8] sm:$0xff]
    %v984 = vld [vmem:[%s8 + $0x8] sm:$0xf]
    %v985 = vld [vmem:[%s8 + $0xc] sm:$0xff]
    %v986 = vld [vmem:[%s8 + $0x14] sm:$0xf]
    %v987 = vld [vmem:[%s8 + $0x18] sm:$0xff]
    %v988 = vld [vmem:[%s8 + $0x20] sm:$0xf]
    %v989 = vld [vmem:[%s8 + $0x24] sm:$0xff]
    %v990 = vld [vmem:[%s8 + $0x2c] sm:$0xf]
    %v991 = vld [vmem:[%s8 + $0x30] sm:$0xff]
    %v992 = vld [vmem:[%s8 + $0x38] sm:$0xf]
    %v993 = vld [vmem:[%s8 + $0x3c] sm:$0xff]
    %v994 = vld [vmem:[%s8 + $0x44] sm:$0xf]
    %v995 = vld [vmem:[%s8 + $0x48] sm:$0xff]
    %v996 = vld [vmem:[%s8 + $0x50] sm:$0xf]
    %v997 = vld [vmem:[%s8 + $0x54] sm:$0xff]
    %v998 = vld [vmem:[%s8 + $0x5c] sm:$0xf]
    %v999 = vld [vmem:[%s8 + $0x60] sm:$0xff]
    %v1000 = vld [vmem:[%s8 + $0x68] sm:$0xf]
    %v1001 = vld [vmem:[%s8 + $0x6c] sm:$0xff]
    %v1002 = vld [vmem:[%s8 + $0x74] sm:$0xf]
    %v1003 = vld [vmem:[%s8 + $0x78] sm:$0xff]
    %v1004 = vld [vmem:[%s8 + $0x80] sm:$0xf]
    %v1005 = vld [vmem:[%s8 + $0x84] sm:$0xff]
    %v1006 = vld [vmem:[%s8 + $0x8c] sm:$0xf]
    %v1007 = vld [vmem:[%s8 + $0x90] sm:$0xff]
    %v1008 = vld [vmem:[%s8 + $0x98] sm:$0xf]
    %v1009 = vld [vmem:[%s8 + $0x9c] sm:$0xff]
    %v1010 = vld [vmem:[%s8 + $0xa4] sm:$0xf]
    %v1011 = vld [vmem:[%s8 + $0xa8] sm:$0xff]
    %v1012 = vld [vmem:[%s8 + $0xb0] sm:$0xf]
    %v1013 = vld [vmem:[%s8 + $0xb4] sm:$0xff]
    %v1014 = vld [vmem:[%s8 + $0xbc] sm:$0xf]
    %v1015 = vld [vmem:[%s8 + $0xc0] sm:$0xff]
    %v1016 = vld [vmem:[%s8 + $0xc8] sm:$0xf]
    %v1017 = vld [vmem:[%s8 + $0xcc] sm:$0xff]
    %v1018 = vld [vmem:[%s8 + $0xd4] sm:$0xf]
    %v1019 = vld [vmem:[%s8 + $0xd8] sm:$0xff]
    %v1020 = vld [vmem:[%s8 + $0xe0] sm:$0xf]
    %v1021 = vld [vmem:[%s8 + $0xe4] sm:$0xff]
    %v1022 = vld [vmem:[%s8 + $0xec] sm:$0xf]
    %v1023 = vld [vmem:[%s8 + $0xf0] sm:$0xff]
    %v1024 = vld [vmem:[%s8 + $0xf8] sm:$0xf]
    %v1025 = vld [vmem:[%s8 + $0xfc] sm:$0xff]
    %v1026 = vld [vmem:[%s8 + $0x104] sm:$0xf]
    %v1027 = vld [vmem:[%s8 + $0x108] sm:$0xff]
    %v1028 = vld [vmem:[%s8 + $0x110] sm:$0xf]
    %v1029 = vld [vmem:[%s8 + $0x114] sm:$0xff]
    %v1030 = vld [vmem:[%s8 + $0x11c] sm:$0xf]
    %v1031 = vld [vmem:[%s8 + $0x120] sm:$0xff]
    %v1032 = vld [vmem:[%s8 + $0x128] sm:$0xf]
    %v1033 = vld [vmem:[%s8 + $0x12c] sm:$0xff]
    %v1034 = vld [vmem:[%s8 + $0x134] sm:$0xf]
    %v1035 = vld [vmem:[%s8 + $0x138] sm:$0xff]
    %v1036 = vld [vmem:[%s8 + $0x140] sm:$0xf]
    %v1037 = vld [vmem:[%s8 + $0x144] sm:$0xff]
    %v1038 = vld [vmem:[%s8 + $0x14c] sm:$0xf]
    %v1039 = vld [vmem:[%s8 + $0x150] sm:$0xff]
    %v1040 = vld [vmem:[%s8 + $0x158] sm:$0xf]
    %v1041 = vld [vmem:[%s8 + $0x15c] sm:$0xff]
    %v1042 = vld [vmem:[%s8 + $0x164] sm:$0xf]
    %v1043 = vld [vmem:[%s8 + $0x168] sm:$0xff]
    %v1044 = vld [vmem:[%s8 + $0x170] sm:$0xf]
    %v1045 = vld [vmem:[%s8 + $0x174] sm:$0xff]
    %v1046 = vld [vmem:[%s8 + $0x17c] sm:$0xf]
    %v1047 = vld [vmem:[%s0] sm:$0xff]
    %v1048 = vld [vmem:[%s0 + $0x8] sm:$0xff]
    %v1049 = vld [vmem:[%s0 + $0x10] sm:$0xff]
    %v1050 = vld [vmem:[%s0 + $0x18] sm:$0xff]
    %v1051 = vld [vmem:[%s0 + $0x20] sm:$0xff]
    %v1052 = vld [vmem:[%s0 + $0x28] sm:$0xff]
    %v1053 = vld [vmem:[%s0 + $0x30] sm:$0xff]
    %v1054 = vld [vmem:[%s0 + $0x38] sm:$0xff]
    %v1055 = vld [vmem:[%s0 + $0x40] sm:$0xff]
    %v1056 = vld [vmem:[%s0 + $0x48] sm:$0xff]
    %v1057 = vld [vmem:[%s0 + $0x50] sm:$0xff]
    %v1058 = vld [vmem:[%s0 + $0x58] sm:$0xff]
    %v1059 = vld [vmem:[%s0 + $0x60] sm:$0xff]
    %v1060 = vld [vmem:[%s0 + $0x68] sm:$0xff]
    %v1061 = vld [vmem:[%s0 + $0x70] sm:$0xff]
    %v1062 = vld [vmem:[%s0 + $0x78] sm:$0xff]
    %v1063 = vld [vmem:[%s0 + $0x80] sm:$0xff]
    %v1064 = vld [vmem:[%s0 + $0x88] sm:$0xff]
    %v1065 = vld [vmem:[%s0 + $0x90] sm:$0xff]
    %v1066 = vld [vmem:[%s0 + $0x98] sm:$0xff]
    %v1067 = vld [vmem:[%s0 + $0xa0] sm:$0xff]
    %v1068 = vld [vmem:[%s0 + $0xa8] sm:$0xff]
    %v1069 = vld [vmem:[%s0 + $0xb0] sm:$0xff]
    %v1070 = vld [vmem:[%s0 + $0xb8] sm:$0xff]
    %v1071 = vpack.c.bf16 %v1050, %v1047
    %v1072 = vpack.c.bf16 %v1051, %v1048
    %v1073 = vpack.c.bf16 %v1052, %v1049
    %v1074 = vpack.c.bf16 %v1056, %v1053
    %v1075 = vpack.c.bf16 %v1057, %v1054
    %v1076 = vpack.c.bf16 %v1058, %v1055
    %v1077 = vpack.c.bf16 %v1062, %v1059
    %v1078 = vpack.c.bf16 %v1063, %v1060
    %v1079 = vpack.c.bf16 %v1064, %v1061
    %v1080 = vpack.c.bf16 %v1068, %v1065
    %v1081 = vpack.c.bf16 %v1069, %v1066
    %v1082 = vpack.c.bf16 %v1070, %v1067
    %v1131 = vunpack.c.l.b16 %v935
    %v1132 = vunpack.c.h.b16 %v935
    %v1133 = vunpack.c.l.b16 %v936
    %v1134 = vunpack.c.h.b16 %v936
    %v1135 = vunpack.c.l.b16 %v937
    %v1136 = vunpack.c.h.b16 %v937
    %v1137 = vunpack.c.l.b16 %v938
    %v1138 = vunpack.c.h.b16 %v938
    %v1139 = vunpack.c.l.b16 %v939
    %v1140 = vunpack.c.h.b16 %v939
    %v1141 = vunpack.c.l.b16 %v940
    %v1142 = vunpack.c.h.b16 %v940
    %v1143 = vunpack.c.l.b16 %v941
    %v1144 = vunpack.c.h.b16 %v941
    %v1145 = vunpack.c.l.b16 %v942
    %v1146 = vunpack.c.h.b16 %v942
    %v1147 = vunpack.c.l.b16 %v943
    %v1148 = vunpack.c.h.b16 %v943
    %v1149 = vunpack.c.l.b16 %v944
    %v1150 = vunpack.c.h.b16 %v944
    %v1151 = vunpack.c.l.b16 %v945
    %v1152 = vunpack.c.h.b16 %v945
    %v1153 = vunpack.c.l.b16 %v946
    %v1154 = vunpack.c.h.b16 %v946
    %v1155 = vunpack.c.l.b16 %v947
    %v1156 = vunpack.c.h.b16 %v947
    %v1157 = vunpack.c.l.b16 %v948
    %v1158 = vunpack.c.h.b16 %v948
    %v1159 = vunpack.c.l.b16 %v949
    %v1160 = vunpack.c.h.b16 %v949
    %v1161 = vunpack.c.l.b16 %v950
    %v1162 = vunpack.c.h.b16 %v950
    %v1163 = vunpack.c.l.b16 %v951
    %v1164 = vunpack.c.h.b16 %v951
    %v1165 = vunpack.c.l.b16 %v952
    %v1166 = vunpack.c.h.b16 %v952
    %v1167 = vunpack.c.l.b16 %v953
    %v1168 = vunpack.c.h.b16 %v953
    %v1169 = vunpack.c.l.b16 %v954
    %v1170 = vunpack.c.h.b16 %v954
    %v1171 = vunpack.c.l.b16 %v955
    %v1172 = vunpack.c.h.b16 %v955
    %v1173 = vunpack.c.l.b16 %v956
    %v1174 = vunpack.c.h.b16 %v956
    %v1175 = vunpack.c.l.b16 %v957
    %v1176 = vunpack.c.h.b16 %v957
    %v1177 = vunpack.c.l.b16 %v958
    %v1178 = vunpack.c.h.b16 %v958
    %v1179 = vunpack.c.l.b16 %v959
    %v1180 = vunpack.c.h.b16 %v959
    %v1181 = vunpack.c.l.b16 %v960
    %v1182 = vunpack.c.h.b16 %v960
    %v1183 = vunpack.c.l.b16 %v961
    %v1184 = vunpack.c.h.b16 %v961
    %v1185 = vunpack.c.l.b16 %v962
    %v1186 = vunpack.c.h.b16 %v962
    %v1187 = vunpack.c.l.b16 %v963
    %v1188 = vunpack.c.h.b16 %v963
    %v1189 = vunpack.c.l.b16 %v964
    %v1190 = vunpack.c.h.b16 %v964
    %v1191 = vunpack.c.l.b16 %v965
    %v1192 = vunpack.c.h.b16 %v965
    %v1193 = vunpack.c.l.b16 %v966
    %v1194 = vunpack.c.h.b16 %v966
    %v1195 = vunpack.c.l.b16 %v967
    %v1196 = vunpack.c.h.b16 %v967
    %v1197 = vunpack.c.l.b16 %v968
    %v1198 = vunpack.c.h.b16 %v968
    %v1199 = vunpack.c.l.b16 %v969
    %v1200 = vunpack.c.h.b16 %v969
    %v1201 = vunpack.c.l.b16 %v970
    %v1202 = vunpack.c.h.b16 %v970
    %v1203 = vunpack.c.l.b16 %v971
    %v1204 = vunpack.c.h.b16 %v971
    %v1205 = vunpack.c.l.b16 %v972
    %v1206 = vunpack.c.h.b16 %v972
    %v1207 = vunpack.c.l.b16 %v973
    %v1208 = vunpack.c.h.b16 %v973
    %v1209 = vunpack.c.l.b16 %v974
    %v1210 = vunpack.c.h.b16 %v974
    %v1211 = vunpack.c.l.b16 %v975
    %v1212 = vunpack.c.h.b16 %v975
    %v1213 = vunpack.c.l.b16 %v976
    %v1214 = vunpack.c.h.b16 %v976
    %v1215 = vunpack.c.l.b16 %v977
    %v1216 = vunpack.c.h.b16 %v977
    %v1217 = vunpack.c.l.b16 %v978
    %v1218 = vunpack.c.h.b16 %v978
    %v1219 = vunpack.c.l.b16 %v979
    %v1220 = vunpack.c.h.b16 %v979
    %v1221 = vunpack.c.l.b16 %v980
    %v1222 = vunpack.c.h.b16 %v980
    %v1223 = vunpack.c.l.b16 %v981
    %v1224 = vunpack.c.h.b16 %v981
    %v1225 = vunpack.c.l.b16 %v982
    %v1226 = vunpack.c.h.b16 %v982
    %v1227 = vpack.c.b16 %v1133, %v1131
    %v1228 = vpack.c.b16 %v1134, %v1132
    %v1229 = vpack.c.b16 %v1137, %v1135
    %v1230 = vpack.c.b16 %v1138, %v1136
    %v1231 = vpack.c.b16 %v1141, %v1139
    %v1232 = vpack.c.b16 %v1142, %v1140
    %v1233 = vpack.c.b16 %v1145, %v1143
    %v1234 = vpack.c.b16 %v1146, %v1144
    %v1235 = vpack.c.b16 %v1149, %v1147
    %v1236 = vpack.c.b16 %v1150, %v1148
    %v1237 = vpack.c.b16 %v1153, %v1151
    %v1238 = vpack.c.b16 %v1154, %v1152
    %v1239 = vpack.c.b16 %v1157, %v1155
    %v1240 = vpack.c.b16 %v1158, %v1156
    %v1241 = vpack.c.b16 %v1161, %v1159
    %v1242 = vpack.c.b16 %v1162, %v1160
    %v1243 = vpack.c.b16 %v1165, %v1163
    %v1244 = vpack.c.b16 %v1166, %v1164
    %v1245 = vpack.c.b16 %v1169, %v1167
    %v1246 = vpack.c.b16 %v1170, %v1168
    %v1247 = vpack.c.b16 %v1173, %v1171
    %v1248 = vpack.c.b16 %v1174, %v1172
    %v1249 = vpack.c.b16 %v1177, %v1175
    %v1250 = vpack.c.b16 %v1178, %v1176
    %v1251 = vpack.c.b16 %v1181, %v1179
    %v1252 = vpack.c.b16 %v1182, %v1180
    %v1253 = vpack.c.b16 %v1185, %v1183
    %v1254 = vpack.c.b16 %v1186, %v1184
    %v1255 = vpack.c.b16 %v1189, %v1187
    %v1256 = vpack.c.b16 %v1190, %v1188
    %v1257 = vpack.c.b16 %v1193, %v1191
    %v1258 = vpack.c.b16 %v1194, %v1192
    %v1259 = vpack.c.b16 %v1197, %v1195
    %v1260 = vpack.c.b16 %v1198, %v1196
    %v1261 = vpack.c.b16 %v1201, %v1199
    %v1262 = vpack.c.b16 %v1202, %v1200
    %v1263 = vpack.c.b16 %v1205, %v1203
    %v1264 = vpack.c.b16 %v1206, %v1204
    %v1265 = vpack.c.b16 %v1209, %v1207
    %v1266 = vpack.c.b16 %v1210, %v1208
    %v1267 = vpack.c.b16 %v1213, %v1211
    %v1268 = vpack.c.b16 %v1214, %v1212
    %v1269 = vpack.c.b16 %v1217, %v1215
    %v1270 = vpack.c.b16 %v1218, %v1216
    %v1271 = vpack.c.b16 %v1221, %v1219
    %v1272 = vpack.c.b16 %v1222, %v1220
    %v1273 = vpack.c.b16 %v1225, %v1223
    %v1274 = vpack.c.b16 %v1226, %v1224
    %1323 = vmatprep.subr.bf16.mxu0 %v1242
    %1324 = vmatpush1.bf16.msra.mxu0 %v1241
    %1325 = vmatprep.subr.bf16.mxu0 %v1240
    %1326 = vmatpush1.bf16.msra.mxu0 %v1239
    %1327 = vmatprep.subr.bf16.mxu0 %v1238
    %1328 = vmatpush1.bf16.msra.mxu0 %v1237
    %1329 = vmatprep.subr.bf16.mxu0 %v1236
    %1330 = vmatpush1.bf16.msra.mxu0 %v1235
    %1331 = vmatprep.subr.bf16.mxu0 %v1234
    %1332 = vmatpush1.bf16.msra.mxu0 %v1233
    %1333 = vmatprep.subr.bf16.mxu0 %v1232
    %1334 = vmatpush1.bf16.msra.mxu0 %v1231
    %1335 = vmatprep.subr.bf16.mxu0 %v1230
    %1336 = vmatpush1.bf16.msra.mxu0 %v1229
    %1337 = vmatprep.subr.bf16.mxu0 %v1228
    %1338 = vmatpush1.bf16.msra.mxu0 %v1227
    %1339 = vmatprep.subr.bf16.mxu0 %v1258
    %1340 = vmatpush2.bf16.msra.mxu0 %v1257
    %1341 = vmatprep.subr.bf16.mxu0 %v1256
    %1342 = vmatpush2.bf16.msra.mxu0 %v1255
    %1343 = vmatprep.subr.bf16.mxu0 %v1254
    %1344 = vmatpush2.bf16.msra.mxu0 %v1253
    %1345 = vmatprep.subr.bf16.mxu0 %v1252
    %1346 = vmatpush2.bf16.msra.mxu0 %v1251
    %1347 = vmatprep.subr.bf16.mxu0 %v1250
    %1348 = vmatpush2.bf16.msra.mxu0 %v1249
    %1349 = vmatprep.subr.bf16.mxu0 %v1248
    %1350 = vmatpush2.bf16.msra.mxu0 %v1247
    %1351 = vmatprep.subr.bf16.mxu0 %v1246
    %1352 = vmatpush2.bf16.msra.mxu0 %v1245
    %1353 = vmatprep.subr.bf16.mxu0 %v1244
    %1354 = vmatpush2.bf16.msra.mxu0 %v1243
    %1355 = vmatprep.mubr.bf16.mxu0 %v1072
    %1356 = vmatmul.mubr.bf16.gmra.mxu0 %v1071
    %v1357 = vpop.f32.mrf.mxu0
    %v1358 = vadd.f32 %v897, %v1357
    %v1359 = vpop.f32.mrf.mxu0
    %v1360 = vadd.f32 %v899, %v1359
    %v1361 = vpop.f32.mrf.mxu0
    %v1362 = vadd.f32 %v901, %v1361
    %v1363 = vpop.f32.mrf.mxu0
    %v1364 = vadd.f32 %v903, %v1363
    %1365 = vmatprep.mubr.bf16.mxu0 %v1075
    %1366 = vmatmul.mubr.bf16.gmra.mxu0 %v1074
    %v1367 = vpop.f32.mrf.mxu0
    %v1368 = vadd.f32 %v907, %v1367
    %v1369 = vpop.f32.mrf.mxu0
    %v1370 = vadd.f32 %v909, %v1369
    %v1371 = vpop.f32.mrf.mxu0
    %v1372 = vadd.f32 %v911, %v1371
    %v1373 = vpop.f32.mrf.mxu0
    %v1374 = vadd.f32 %v913, %v1373
    %1375 = vmatprep.mubr.bf16.mxu0 %v1078
    %1376 = vmatmul.mubr.bf16.gmra.mxu0 %v1077
    %v1377 = vpop.f32.mrf.mxu0
    %v1378 = vadd.f32 %v917, %v1377
    %v1379 = vpop.f32.mrf.mxu0
    %v1380 = vadd.f32 %v919, %v1379
    %v1381 = vpop.f32.mrf.mxu0
    %v1382 = vadd.f32 %v921, %v1381
    %v1383 = vpop.f32.mrf.mxu0
    %v1384 = vadd.f32 %v923, %v1383
    %1385 = vmatprep.mubr.bf16.mxu0 %v1081
    %1386 = vmatmul.mubr.bf16.gmra.mxu0 %v1080
    %v1387 = vpop.f32.mrf.mxu0
    %v1388 = vadd.f32 %v927, %v1387
    %v1389 = vpop.f32.mrf.mxu0
    %v1390 = vadd.f32 %v929, %v1389
    %v1391 = vpop.f32.mrf.mxu0
    %v1392 = vadd.f32 %v931, %v1391
    %v1393 = vpop.f32.mrf.mxu0
    %v1394 = vadd.f32 %v933, %v1393
    %1395 = vdwg.mxu0
    %1396 = vmatprep.subr.bf16.mxu0 %v1274
    %1397 = vmatpush1.bf16.msra.mxu0 %v1273
    %1398 = vmatprep.subr.bf16.mxu0 %v1272
    %1399 = vmatpush1.bf16.msra.mxu0 %v1271
    %1400 = vmatprep.subr.bf16.mxu0 %v1270
    %1401 = vmatpush1.bf16.msra.mxu0 %v1269
    %1402 = vmatprep.subr.bf16.mxu0 %v1268
    %1403 = vmatpush1.bf16.msra.mxu0 %v1267
    %1404 = vmatprep.subr.bf16.mxu0 %v1266
    %1405 = vmatpush1.bf16.msra.mxu0 %v1265
    %1406 = vmatprep.subr.bf16.mxu0 %v1264
    %1407 = vmatpush1.bf16.msra.mxu0 %v1263
    %1408 = vmatprep.subr.bf16.mxu0 %v1262
    %1409 = vmatpush1.bf16.msra.mxu0 %v1261
    %1410 = vmatprep.subr.bf16.mxu0 %v1260
    %1411 = vmatpush1.bf16.msra.mxu0 %v1259
    %1412 = vmatprep.subr.bf16.mxu0 0
    %1413 = vmatpush2.bf16.msra.mxu0 0
    %1414 = vmatprep.subr.bf16.mxu0 0
    %1415 = vmatpush2.bf16.msra.mxu0 0
    %1416 = vmatprep.subr.bf16.mxu0 0
    %1417 = vmatpush2.bf16.msra.mxu0 0
    %1418 = vmatprep.subr.bf16.mxu0 0
    %1419 = vmatpush2.bf16.msra.mxu0 0
    %1420 = vmatprep.subr.bf16.mxu0 0
    %1421 = vmatpush2.bf16.msra.mxu0 0
    %1422 = vmatprep.subr.bf16.mxu0 0
    %1423 = vmatpush2.bf16.msra.mxu0 0
    %1424 = vmatprep.subr.bf16.mxu0 0
    %1425 = vmatpush2.bf16.msra.mxu0 0
    %1426 = vmatprep.subr.bf16.mxu0 0
    %1427 = vmatpush2.bf16.msra.mxu0 0
    %1428 = vmatprep.mubr.bf16.mxu0 0
    %1429 = vmatmul.mubr.bf16.gmra.mxu0 %v1073
    %v1430 = vpop.f32.mrf.mxu0
    %v1431 = vadd.f32 %v1358, %v1430
    %v1432 = vpop.f32.mrf.mxu0
    %v1433 = vadd.f32 %v1360, %v1432
    %v1434 = vpop.f32.mrf.mxu0
    %v1435 = vadd.f32 %v1362, %v1434
    %v1436 = vpop.f32.mrf.mxu0
    %v1437 = vadd.f32 %v1364, %v1436
    %1438 = vmatprep.mubr.bf16.mxu0 0
    %1439 = vmatmul.mubr.bf16.gmra.mxu0 %v1076
    %v1440 = vpop.f32.mrf.mxu0
    %v1441 = vadd.f32 %v1368, %v1440
    %v1442 = vpop.f32.mrf.mxu0
    %v1443 = vadd.f32 %v1370, %v1442
    %v1444 = vpop.f32.mrf.mxu0
    %v1445 = vadd.f32 %v1372, %v1444
    %v1446 = vpop.f32.mrf.mxu0
    %v1447 = vadd.f32 %v1374, %v1446
    %1448 = vmatprep.mubr.bf16.mxu0 0
    %1449 = vmatmul.mubr.bf16.gmra.mxu0 %v1079
    %v1450 = vpop.f32.mrf.mxu0
    %v1451 = vadd.f32 %v1378, %v1450
    %v1452 = vpop.f32.mrf.mxu0
    %v1453 = vadd.f32 %v1380, %v1452
    %v1454 = vpop.f32.mrf.mxu0
    %v1455 = vadd.f32 %v1382, %v1454
    %v1456 = vpop.f32.mrf.mxu0
    %v1457 = vadd.f32 %v1384, %v1456
    %1458 = vmatprep.mubr.bf16.mxu0 0
    %1459 = vmatmul.mubr.bf16.gmra.mxu0 %v1082
    %v1460 = vpop.f32.mrf.mxu0
    %v1461 = vadd.f32 %v1388, %v1460
    %v1462 = vpop.f32.mrf.mxu0
    %v1463 = vadd.f32 %v1390, %v1462
    %v1464 = vpop.f32.mrf.mxu0
    %v1465 = vadd.f32 %v1392, %v1464
    %v1466 = vpop.f32.mrf.mxu0
    %v1467 = vadd.f32 %v1394, %v1466
    %1468 = vdwg.mxu0
    %v1469 = vmul.f32 %v464, 1e-08
    %v1471 = vlaneseq
    %v1472 = vshrl.u32 %v1471, 7
    %v1473 = vsub.s32 0, %v1472
    %v1474 = vrot.slane %v1469, %v1473
    %v1475 = vlaneseq
    %v1476 = vshrl.u32 %v1475, 7
    %v1477 = vsub.s32 4, %v1476
    %v1478 = vrot.slane %v1469, %v1477
    %v1481 = vlaneseq
    %v1482 = vshrl.u32 %v1481, 7
    %v1483 = vsub.s32 0, %v1482
    %v1484 = vrot.slane %v1474, %v1483
    %v1485 = vlaneseq
    %v1486 = vshrl.u32 %v1485, 7
    %v1487 = vsub.s32 0, %v1486
    %v1488 = vrot.slane %v1478, %v1487
    %v1489 = vadd.f32 %v1431, %v1484
    %v1490 = vadd.f32 %v1433, %v1488
    %v1491 = vadd.f32 %v1435, %v1484
    %v1492 = vadd.f32 %v1437, %v1488
    %v1493 = vadd.f32 %v1441, %v1484
    %v1494 = vadd.f32 %v1443, %v1488
    %v1495 = vadd.f32 %v1445, %v1484
    %v1496 = vadd.f32 %v1447, %v1488
    %v1497 = vadd.f32 %v1451, %v1484
    %v1498 = vadd.f32 %v1453, %v1488
    %v1499 = vadd.f32 %v1455, %v1484
    %v1500 = vadd.f32 %v1457, %v1488
    %v1501 = vadd.f32 %v1461, %v1484
    %v1502 = vadd.f32 %v1463, %v1488
    %v1503 = vadd.f32 %v1465, %v1484
    %v1504 = vadd.f32 %v1467, %v1488
    %v1505 = vtanh.pop %v1489
    %v1506 = vtanh.pop %v1490
    %v1507 = vtanh.pop %v1491
    %v1508 = vtanh.pop %v1492
    %v1509 = vtanh.pop %v1493
    %v1510 = vtanh.pop %v1494
    %v1511 = vtanh.pop %v1495
    %v1512 = vtanh.pop %v1496
    %v1513 = vtanh.pop %v1497
    %v1514 = vtanh.pop %v1498
    %v1515 = vtanh.pop %v1499
    %v1516 = vtanh.pop %v1500
    %v1517 = vtanh.pop %v1501
    %v1518 = vtanh.pop %v1502
    %v1519 = vtanh.pop %v1503
    %v1520 = vtanh.pop %v1504
    %v1521 = vadd.f32 %v1489, %v362
    %v1522 = vadd.f32 %v1490, %v364
    %v1523 = vadd.f32 %v1491, %v366
    %v1524 = vadd.f32 %v1492, %v368
    %v1525 = vadd.f32 %v1493, %v372
    %v1526 = vadd.f32 %v1494, %v374
    %v1527 = vadd.f32 %v1495, %v376
    %v1528 = vadd.f32 %v1496, %v378
    %v1529 = vadd.f32 %v1497, %v382
    %v1530 = vadd.f32 %v1498, %v384
    %v1531 = vadd.f32 %v1499, %v386
    %v1532 = vadd.f32 %v1500, %v388
    %v1533 = vadd.f32 %v1501, %v392
    %v1534 = vadd.f32 %v1502, %v394
    %v1535 = vadd.f32 %v1503, %v396
    %v1536 = vadd.f32 %v1504, %v398
    %v1537 = vtanh.pop %v1521
    %v1538 = vtanh.pop %v1522
    %v1539 = vtanh.pop %v1523
    %v1540 = vtanh.pop %v1524
    %v1541 = vtanh.pop %v1525
    %v1542 = vtanh.pop %v1526
    %v1543 = vtanh.pop %v1527
    %v1544 = vtanh.pop %v1528
    %v1545 = vtanh.pop %v1529
    %v1546 = vtanh.pop %v1530
    %v1547 = vtanh.pop %v1531
    %v1548 = vtanh.pop %v1532
    %v1549 = vtanh.pop %v1533
    %v1550 = vtanh.pop %v1534
    %v1551 = vtanh.pop %v1535
    %v1552 = vtanh.pop %v1536
    %v1553 = vsub.f32 %v1537, %v1505
    %v1554 = vsub.f32 %v1538, %v1506
    %v1555 = vsub.f32 %v1539, %v1507
    %v1556 = vsub.f32 %v1540, %v1508
    %v1557 = vsub.f32 %v1541, %v1509
    %v1558 = vsub.f32 %v1542, %v1510
    %v1559 = vsub.f32 %v1543, %v1511
    %v1560 = vsub.f32 %v1544, %v1512
    %v1561 = vsub.f32 %v1545, %v1513
    %v1562 = vsub.f32 %v1546, %v1514
    %v1563 = vsub.f32 %v1547, %v1515
    %v1564 = vsub.f32 %v1548, %v1516
    %v1565 = vsub.f32 %v1549, %v1517
    %v1566 = vsub.f32 %v1550, %v1518
    %v1567 = vsub.f32 %v1551, %v1519
    %v1568 = vsub.f32 %v1552, %v1520
    %v1569 = vmul.f32 %v1553, 2.0
    %v1570 = vmul.f32 %v1554, 2.0
    %v1571 = vmul.f32 %v1555, 2.0
    %v1572 = vmul.f32 %v1556, 2.0
    %v1573 = vmul.f32 %v1557, 2.0
    %v1574 = vmul.f32 %v1558, 2.0
    %v1575 = vmul.f32 %v1559, 2.0
    %v1576 = vmul.f32 %v1560, 2.0
    %v1577 = vmul.f32 %v1561, 2.0
    %v1578 = vmul.f32 %v1562, 2.0
    %v1579 = vmul.f32 %v1563, 2.0
    %v1580 = vmul.f32 %v1564, 2.0
    %v1581 = vmul.f32 %v1565, 2.0
    %v1582 = vmul.f32 %v1566, 2.0
    %v1583 = vmul.f32 %v1567, 2.0
    %v1584 = vmul.f32 %v1568, 2.0
    %v1585 = vadd.f32 %v1505, %v1569
    %v1586 = vadd.f32 %v1506, %v1570
    %v1587 = vadd.f32 %v1507, %v1571
    %v1588 = vadd.f32 %v1508, %v1572
    %v1589 = vadd.f32 %v1509, %v1573
    %v1590 = vadd.f32 %v1510, %v1574
    %v1591 = vadd.f32 %v1511, %v1575
    %v1592 = vadd.f32 %v1512, %v1576
    %v1593 = vadd.f32 %v1513, %v1577
    %v1594 = vadd.f32 %v1514, %v1578
    %v1595 = vadd.f32 %v1515, %v1579
    %v1596 = vadd.f32 %v1516, %v1580
    %v1597 = vadd.f32 %v1517, %v1581
    %v1598 = vadd.f32 %v1518, %v1582
    %v1599 = vadd.f32 %v1519, %v1583
    %v1600 = vadd.f32 %v1520, %v1584
    %v1601 = vpack.c.bf16 %v1587, %v1585
    %v1602 = vpack.c.bf16 %v1588, %v1586
    %v1603 = vpack.c.bf16 %v1591, %v1589
    %v1604 = vpack.c.bf16 %v1592, %v1590
    %v1605 = vpack.c.bf16 %v1595, %v1593
    %v1606 = vpack.c.bf16 %v1596, %v1594
    %v1607 = vpack.c.bf16 %v1599, %v1597
    %v1608 = vpack.c.bf16 %v1600, %v1598
    %v1673 = vunpack.c.l.b16 %v983
    %v1674 = vunpack.c.h.b16 %v983
    %v1675 = vunpack.c.l.b16 %v984
    %v1676 = vunpack.c.l.b16 %v985
    %v1677 = vunpack.c.h.b16 %v985
    %v1678 = vunpack.c.l.b16 %v986
    %v1679 = vunpack.c.l.b16 %v987
    %v1680 = vunpack.c.h.b16 %v987
    %v1681 = vunpack.c.l.b16 %v988
    %v1682 = vunpack.c.l.b16 %v989
    %v1683 = vunpack.c.h.b16 %v989
    %v1684 = vunpack.c.l.b16 %v990
    %v1685 = vunpack.c.l.b16 %v991
    %v1686 = vunpack.c.h.b16 %v991
    %v1687 = vunpack.c.l.b16 %v992
    %v1688 = vunpack.c.l.b16 %v993
    %v1689 = vunpack.c.h.b16 %v993
    %v1690 = vunpack.c.l.b16 %v994
    %v1691 = vunpack.c.l.b16 %v995
    %v1692 = vunpack.c.h.b16 %v995
    %v1693 = vunpack.c.l.b16 %v996
    %v1694 = vunpack.c.l.b16 %v997
    %v1695 = vunpack.c.h.b16 %v997
    %v1696 = vunpack.c.l.b16 %v998
    %v1697 = vunpack.c.l.b16 %v999
    %v1698 = vunpack.c.h.b16 %v999
    %v1699 = vunpack.c.l.b16 %v1000
    %v1700 = vunpack.c.l.b16 %v1001
    %v1701 = vunpack.c.h.b16 %v1001
    %v1702 = vunpack.c.l.b16 %v1002
    %v1703 = vunpack.c.l.b16 %v1003
    %v1704 = vunpack.c.h.b16 %v1003
    %v1705 = vunpack.c.l.b16 %v1004
    %v1706 = vunpack.c.l.b16 %v1005
    %v1707 = vunpack.c.h.b16 %v1005
    %v1708 = vunpack.c.l.b16 %v1006
    %v1709 = vunpack.c.l.b16 %v1007
    %v1710 = vunpack.c.h.b16 %v1007
    %v1711 = vunpack.c.l.b16 %v1008
    %v1712 = vunpack.c.l.b16 %v1009
    %v1713 = vunpack.c.h.b16 %v1009
    %v1714 = vunpack.c.l.b16 %v1010
    %v1715 = vunpack.c.l.b16 %v1011
    %v1716 = vunpack.c.h.b16 %v1011
    %v1717 = vunpack.c.l.b16 %v1012
    %v1718 = vunpack.c.l.b16 %v1013
    %v1719 = vunpack.c.h.b16 %v1013
    %v1720 = vunpack.c.l.b16 %v1014
    %v1721 = vunpack.c.l.b16 %v1015
    %v1722 = vunpack.c.h.b16 %v1015
    %v1723 = vunpack.c.l.b16 %v1016
    %v1724 = vunpack.c.l.b16 %v1017
    %v1725 = vunpack.c.h.b16 %v1017
    %v1726 = vunpack.c.l.b16 %v1018
    %v1727 = vunpack.c.l.b16 %v1019
    %v1728 = vunpack.c.h.b16 %v1019
    %v1729 = vunpack.c.l.b16 %v1020
    %v1730 = vunpack.c.l.b16 %v1021
    %v1731 = vunpack.c.h.b16 %v1021
    %v1732 = vunpack.c.l.b16 %v1022
    %v1733 = vunpack.c.l.b16 %v1023
    %v1734 = vunpack.c.h.b16 %v1023
    %v1735 = vunpack.c.l.b16 %v1024
    %v1736 = vunpack.c.l.b16 %v1025
    %v1737 = vunpack.c.h.b16 %v1025
    %v1738 = vunpack.c.l.b16 %v1026
    %v1739 = vunpack.c.l.b16 %v1027
    %v1740 = vunpack.c.h.b16 %v1027
    %v1741 = vunpack.c.l.b16 %v1028
    %v1742 = vunpack.c.l.b16 %v1029
    %v1743 = vunpack.c.h.b16 %v1029
    %v1744 = vunpack.c.l.b16 %v1030
    %v1745 = vunpack.c.l.b16 %v1031
    %v1746 = vunpack.c.h.b16 %v1031
    %v1747 = vunpack.c.l.b16 %v1032
    %v1748 = vunpack.c.l.b16 %v1033
    %v1749 = vunpack.c.h.b16 %v1033
    %v1750 = vunpack.c.l.b16 %v1034
    %v1751 = vunpack.c.l.b16 %v1035
    %v1752 = vunpack.c.h.b16 %v1035
    %v1753 = vunpack.c.l.b16 %v1036
    %v1754 = vunpack.c.l.b16 %v1037
    %v1755 = vunpack.c.h.b16 %v1037
    %v1756 = vunpack.c.l.b16 %v1038
    %v1757 = vunpack.c.l.b16 %v1039
    %v1758 = vunpack.c.h.b16 %v1039
    %v1759 = vunpack.c.l.b16 %v1040
    %v1760 = vunpack.c.l.b16 %v1041
    %v1761 = vunpack.c.h.b16 %v1041
    %v1762 = vunpack.c.l.b16 %v1042
    %v1763 = vunpack.c.l.b16 %v1043
    %v1764 = vunpack.c.h.b16 %v1043
    %v1765 = vunpack.c.l.b16 %v1044
    %v1766 = vunpack.c.l.b16 %v1045
    %v1767 = vunpack.c.h.b16 %v1045
    %v1768 = vunpack.c.l.b16 %v1046
    %v1769 = vpack.c.b16 %v1676, %v1673
    %v1770 = vpack.c.b16 %v1677, %v1674
    %v1771 = vpack.c.b16 %v1678, %v1675
    %v1772 = vpack.c.b16 %v1682, %v1679
    %v1773 = vpack.c.b16 %v1683, %v1680
    %v1774 = vpack.c.b16 %v1684, %v1681
    %v1775 = vpack.c.b16 %v1688, %v1685
    %v1776 = vpack.c.b16 %v1689, %v1686
    %v1777 = vpack.c.b16 %v1690, %v1687
    %v1778 = vpack.c.b16 %v1694, %v1691
    %v1779 = vpack.c.b16 %v1695, %v1692
    %v1780 = vpack.c.b16 %v1696, %v1693
    %v1781 = vpack.c.b16 %v1700, %v1697
    %v1782 = vpack.c.b16 %v1701, %v1698
    %v1783 = vpack.c.b16 %v1702, %v1699
    %v1784 = vpack.c.b16 %v1706, %v1703
    %v1785 = vpack.c.b16 %v1707, %v1704
    %v1786 = vpack.c.b16 %v1708, %v1705
    %v1787 = vpack.c.b16 %v1712, %v1709
    %v1788 = vpack.c.b16 %v1713, %v1710
    %v1789 = vpack.c.b16 %v1714, %v1711
    %v1790 = vpack.c.b16 %v1718, %v1715
    %v1791 = vpack.c.b16 %v1719, %v1716
    %v1792 = vpack.c.b16 %v1720, %v1717
    %v1793 = vpack.c.b16 %v1724, %v1721
    %v1794 = vpack.c.b16 %v1725, %v1722
    %v1795 = vpack.c.b16 %v1726, %v1723
    %v1796 = vpack.c.b16 %v1730, %v1727
    %v1797 = vpack.c.b16 %v1731, %v1728
    %v1798 = vpack.c.b16 %v1732, %v1729
    %v1799 = vpack.c.b16 %v1736, %v1733
    %v1800 = vpack.c.b16 %v1737, %v1734
    %v1801 = vpack.c.b16 %v1738, %v1735
    %v1802 = vpack.c.b16 %v1742, %v1739
    %v1803 = vpack.c.b16 %v1743, %v1740
    %v1804 = vpack.c.b16 %v1744, %v1741
    %v1805 = vpack.c.b16 %v1748, %v1745
    %v1806 = vpack.c.b16 %v1749, %v1746
    %v1807 = vpack.c.b16 %v1750, %v1747
    %v1808 = vpack.c.b16 %v1754, %v1751
    %v1809 = vpack.c.b16 %v1755, %v1752
    %v1810 = vpack.c.b16 %v1756, %v1753
    %v1811 = vpack.c.b16 %v1760, %v1757
    %v1812 = vpack.c.b16 %v1761, %v1758
    %v1813 = vpack.c.b16 %v1762, %v1759
    %v1814 = vpack.c.b16 %v1766, %v1763
    %v1815 = vpack.c.b16 %v1767, %v1764
    %v1816 = vpack.c.b16 %v1768, %v1765
    %1865 = vmatprep.subr.bf16.mxu0 %v1791
    %1866 = vmatpush1.bf16.msra.mxu0 %v1790
    %1867 = vmatprep.subr.bf16.mxu0 %v1788
    %1868 = vmatpush1.bf16.msra.mxu0 %v1787
    %1869 = vmatprep.subr.bf16.mxu0 %v1785
    %1870 = vmatpush1.bf16.msra.mxu0 %v1784
    %1871 = vmatprep.subr.bf16.mxu0 %v1782
    %1872 = vmatpush1.bf16.msra.mxu0 %v1781
    %1873 = vmatprep.subr.bf16.mxu0 %v1779
    %1874 = vmatpush1.bf16.msra.mxu0 %v1778
    %1875 = vmatprep.subr.bf16.mxu0 %v1776
    %1876 = vmatpush1.bf16.msra.mxu0 %v1775
    %1877 = vmatprep.subr.bf16.mxu0 %v1773
    %1878 = vmatpush1.bf16.msra.mxu0 %v1772
    %1879 = vmatprep.subr.bf16.mxu0 %v1770
    %1880 = vmatpush1.bf16.msra.mxu0 %v1769
    %1881 = vmatprep.subr.bf16.mxu0 %v1815
    %1882 = vmatpush2.bf16.msra.mxu0 %v1814
    %1883 = vmatprep.subr.bf16.mxu0 %v1812
    %1884 = vmatpush2.bf16.msra.mxu0 %v1811
    %1885 = vmatprep.subr.bf16.mxu0 %v1809
    %1886 = vmatpush2.bf16.msra.mxu0 %v1808
    %1887 = vmatprep.subr.bf16.mxu0 %v1806
    %1888 = vmatpush2.bf16.msra.mxu0 %v1805
    %1889 = vmatprep.subr.bf16.mxu0 %v1803
    %1890 = vmatpush2.bf16.msra.mxu0 %v1802
    %1891 = vmatprep.subr.bf16.mxu0 %v1800
    %1892 = vmatpush2.bf16.msra.mxu0 %v1799
    %1893 = vmatprep.subr.bf16.mxu0 %v1797
    %1894 = vmatpush2.bf16.msra.mxu0 %v1796
    %1895 = vmatprep.subr.bf16.mxu0 %v1794
    %1896 = vmatpush2.bf16.msra.mxu0 %v1793
    %1897 = vmatprep.mubr.bf16.mxu0 %v1602
    %1898 = vmatmul.mubr.bf16.gmra.mxu0 %v1601
    %v1899 = vpop.f32.mrf.mxu0
    %v1900 = vadd.f32 0.0, %v1899
    %v1901 = vpop.f32.mrf.mxu0
    %v1902 = vadd.f32 0.0, %v1901
    %v1903 = vpop.f32.mrf.mxu0
    %v1904 = vadd.f32 0.0, %v1903
    %v1905 = vpop.f32.mrf.mxu0
    %v1906 = vadd.f32 0.0, %v1905
    %1907 = vmatprep.mubr.bf16.mxu0 %v1604
    %1908 = vmatmul.mubr.bf16.gmra.mxu0 %v1603
    %v1909 = vpop.f32.mrf.mxu0
    %v1910 = vadd.f32 0.0, %v1909
    %v1911 = vpop.f32.mrf.mxu0
    %v1912 = vadd.f32 0.0, %v1911
    %v1913 = vpop.f32.mrf.mxu0
    %v1914 = vadd.f32 0.0, %v1913
    %v1915 = vpop.f32.mrf.mxu0
    %v1916 = vadd.f32 0.0, %v1915
    %1917 = vmatprep.mubr.bf16.mxu0 %v1606
    %1918 = vmatmul.mubr.bf16.gmra.mxu0 %v1605
    %v1919 = vpop.f32.mrf.mxu0
    %v1920 = vadd.f32 0.0, %v1919
    %v1921 = vpop.f32.mrf.mxu0
    %v1922 = vadd.f32 0.0, %v1921
    %v1923 = vpop.f32.mrf.mxu0
    %v1924 = vadd.f32 0.0, %v1923
    %v1925 = vpop.f32.mrf.mxu0
    %v1926 = vadd.f32 0.0, %v1925
    %1927 = vmatprep.mubr.bf16.mxu0 %v1608
    %1928 = vmatmul.mubr.bf16.gmra.mxu0 %v1607
    %v1929 = vpop.f32.mrf.mxu0
    %v1930 = vadd.f32 0.0, %v1929
    %v1931 = vpop.f32.mrf.mxu0
    %v1932 = vadd.f32 0.0, %v1931
    %v1933 = vpop.f32.mrf.mxu0
    %v1934 = vadd.f32 0.0, %v1933
    %v1935 = vpop.f32.mrf.mxu0
    %v1936 = vadd.f32 0.0, %v1935
    %1937 = vdwg.mxu0
    %1938 = vmatprep.subr.bf16.mxu0 0
    %1939 = vmatpush1.bf16.msra.mxu0 %v1792
    %1940 = vmatprep.subr.bf16.mxu0 0
    %1941 = vmatpush1.bf16.msra.mxu0 %v1789
    %1942 = vmatprep.subr.bf16.mxu0 0
    %1943 = vmatpush1.bf16.msra.mxu0 %v1786
    %1944 = vmatprep.subr.bf16.mxu0 0
    %1945 = vmatpush1.bf16.msra.mxu0 %v1783
    %1946 = vmatprep.subr.bf16.mxu0 0
    %1947 = vmatpush1.bf16.msra.mxu0 %v1780
    %1948 = vmatprep.subr.bf16.mxu0 0
    %1949 = vmatpush1.bf16.msra.mxu0 %v1777
    %1950 = vmatprep.subr.bf16.mxu0 0
    %1951 = vmatpush1.bf16.msra.mxu0 %v1774
    %1952 = vmatprep.subr.bf16.mxu0 0
    %1953 = vmatpush1.bf16.msra.mxu0 %v1771
    %1954 = vmatprep.subr.bf16.mxu0 0
    %1955 = vmatpush2.bf16.msra.mxu0 %v1816
    %1956 = vmatprep.subr.bf16.mxu0 0
    %1957 = vmatpush2.bf16.msra.mxu0 %v1813
    %1958 = vmatprep.subr.bf16.mxu0 0
    %1959 = vmatpush2.bf16.msra.mxu0 %v1810
    %1960 = vmatprep.subr.bf16.mxu0 0
    %1961 = vmatpush2.bf16.msra.mxu0 %v1807
    %1962 = vmatprep.subr.bf16.mxu0 0
    %1963 = vmatpush2.bf16.msra.mxu0 %v1804
    %1964 = vmatprep.subr.bf16.mxu0 0
    %1965 = vmatpush2.bf16.msra.mxu0 %v1801
    %1966 = vmatprep.subr.bf16.mxu0 0
    %1967 = vmatpush2.bf16.msra.mxu0 %v1798
    %1968 = vmatprep.subr.bf16.mxu0 0
    %1969 = vmatpush2.bf16.msra.mxu0 %v1795
    %1970 = vmatprep.mubr.bf16.mxu0 %v1602
    %1971 = vmatmul.mubr.bf16.gmra.mxu0 %v1601
    %v1972 = vpop.f32.mrf.mxu0
    %v1973 = vadd.f32 0.0, %v1972
    %v1974 = vpop.f32.mrf.mxu0
    %v1975 = vpop.f32.mrf.mxu0
    %v1976 = vadd.f32 0.0, %v1975
    %v1977 = vpop.f32.mrf.mxu0
    %1978 = vmatprep.mubr.bf16.mxu0 %v1604
    %1979 = vmatmul.mubr.bf16.gmra.mxu0 %v1603
    %v1980 = vpop.f32.mrf.mxu0
    %v1981 = vadd.f32 0.0, %v1980
    %v1982 = vpop.f32.mrf.mxu0
    %v1983 = vpop.f32.mrf.mxu0
    %v1984 = vadd.f32 0.0, %v1983
    %v1985 = vpop.f32.mrf.mxu0
    %1986 = vmatprep.mubr.bf16.mxu0 %v1606
    %1987 = vmatmul.mubr.bf16.gmra.mxu0 %v1605
    %v1988 = vpop.f32.mrf.mxu0
    %v1989 = vadd.f32 0.0, %v1988
    %v1990 = vpop.f32.mrf.mxu0
    %v1991 = vpop.f32.mrf.mxu0
    %v1992 = vadd.f32 0.0, %v1991
    %v1993 = vpop.f32.mrf.mxu0
    %1994 = vmatprep.mubr.bf16.mxu0 %v1608
    %1995 = vmatmul.mubr.bf16.gmra.mxu0 %v1607
    %v1996 = vpop.f32.mrf.mxu0
    %v1997 = vadd.f32 0.0, %v1996
    %v1998 = vpop.f32.mrf.mxu0
    %v1999 = vpop.f32.mrf.mxu0
    %v2000 = vadd.f32 0.0, %v1999
    %v2001 = vpop.f32.mrf.mxu0
    %2002 = vdwg.mxu0
    %v2003 = vmul.f32 %v1900, 0.25
    %v2004 = vmul.f32 %v1902, 0.25
    %v2005 = vmul.f32 %v1973, 0.25
    %v2006 = vmul.f32 %v1904, 0.25
    %v2007 = vmul.f32 %v1906, 0.25
    %v2008 = vmul.f32 %v1976, 0.25
    %v2009 = vmul.f32 %v1910, 0.25
    %v2010 = vmul.f32 %v1912, 0.25
    %v2011 = vmul.f32 %v1981, 0.25
    %v2012 = vmul.f32 %v1914, 0.25
    %v2013 = vmul.f32 %v1916, 0.25
    %v2014 = vmul.f32 %v1984, 0.25
    %v2015 = vmul.f32 %v1920, 0.25
    %v2016 = vmul.f32 %v1922, 0.25
    %v2017 = vmul.f32 %v1989, 0.25
    %v2018 = vmul.f32 %v1924, 0.25
    %v2019 = vmul.f32 %v1926, 0.25
    %v2020 = vmul.f32 %v1992, 0.25
    %v2021 = vmul.f32 %v1930, 0.25
    %v2022 = vmul.f32 %v1932, 0.25
    %v2023 = vmul.f32 %v1997, 0.25
    %v2024 = vmul.f32 %v1934, 0.25
    %v2025 = vmul.f32 %v1936, 0.25
    %v2026 = vmul.f32 %v2000, 0.25
    %v2027 = vadd.f32 %v1047, %v2003
    %v2028 = vadd.f32 %v1048, %v2004
    %v2029 = vadd.f32 %v1049, %v2005
    %v2030 = vadd.f32 %v1050, %v2006
    %v2031 = vadd.f32 %v1051, %v2007
    %v2032 = vadd.f32 %v1052, %v2008
    %v2033 = vadd.f32 %v1053, %v2009
    %v2034 = vadd.f32 %v1054, %v2010
    %v2035 = vadd.f32 %v1055, %v2011
    %v2036 = vadd.f32 %v1056, %v2012
    %v2037 = vadd.f32 %v1057, %v2013
    %v2038 = vadd.f32 %v1058, %v2014
    %v2039 = vadd.f32 %v1059, %v2015
    %v2040 = vadd.f32 %v1060, %v2016
    %v2041 = vadd.f32 %v1061, %v2017
    %v2042 = vadd.f32 %v1062, %v2018
    %v2043 = vadd.f32 %v1063, %v2019
    %v2044 = vadd.f32 %v1064, %v2020
    %v2045 = vadd.f32 %v1065, %v2021
    %v2046 = vadd.f32 %v1066, %v2022
    %v2047 = vadd.f32 %v1067, %v2023
    %v2048 = vadd.f32 %v1068, %v2024
    %v2049 = vadd.f32 %v1069, %v2025
    %v2050 = vadd.f32 %v1070, %v2026
    %v2052 = vlaneseq
    %v2053 = vshrl.u32 %v2052, 7
    %v2054 = vsub.s32 2, %v2053
    %v2055 = vrot.slane %v464, %v2054
    %v2056 = vlaneseq
    %v2057 = vshrl.u32 %v2056, 7
    %v2058 = vsub.s32 6, %v2057
    %v2059 = vrot.slane %v464, %v2058
    %v2060 = vlaneseq
    %v2061 = vshrl.u32 %v2060, 7
    %v2062 = vsub.s32 2, %v2061
    %v2063 = vrot.slane %v465, %v2062
    %v2067 = vlaneseq
    %v2068 = vshrl.u32 %v2067, 7
    %v2069 = vsub.s32 2, %v2068
    %v2070 = vrot.slane %v2055, %v2069
    %v2071 = vlaneseq
    %v2072 = vshrl.u32 %v2071, 7
    %v2073 = vsub.s32 2, %v2072
    %v2074 = vrot.slane %v2059, %v2073
    %v2075 = vlaneseq
    %v2076 = vshrl.u32 %v2075, 7
    %v2077 = vsub.s32 2, %v2076
    %v2078 = vrot.slane %v2063, %v2077
    %v2079 = vadd.f32 %v2027, %v2070
    %v2080 = vadd.f32 %v2028, %v2074
    %v2081 = vadd.f32 %v2029, %v2078
    %v2082 = vadd.f32 %v2030, %v2070
    %v2083 = vadd.f32 %v2031, %v2074
    %v2084 = vadd.f32 %v2032, %v2078
    %v2085 = vadd.f32 %v2033, %v2070
    %v2086 = vadd.f32 %v2034, %v2074
    %v2087 = vadd.f32 %v2035, %v2078
    %v2088 = vadd.f32 %v2036, %v2070
    %v2089 = vadd.f32 %v2037, %v2074
    %v2090 = vadd.f32 %v2038, %v2078
    %v2091 = vadd.f32 %v2039, %v2070
    %v2092 = vadd.f32 %v2040, %v2074
    %v2093 = vadd.f32 %v2041, %v2078
    %v2094 = vadd.f32 %v2042, %v2070
    %v2095 = vadd.f32 %v2043, %v2074
    %v2096 = vadd.f32 %v2044, %v2078
    %v2097 = vadd.f32 %v2045, %v2070
    %v2098 = vadd.f32 %v2046, %v2074
    %v2099 = vadd.f32 %v2047, %v2078
    %v2100 = vadd.f32 %v2048, %v2070
    %v2101 = vadd.f32 %v2049, %v2074
    %v2102 = vadd.f32 %v2050, %v2078
    %v2103 = vpack.c.bf16 %v2082, %v2079
    %v2104 = vpack.c.bf16 %v2083, %v2080
    %v2105 = vpack.c.bf16 %v2084, %v2081
    %v2106 = vpack.c.bf16 %v2088, %v2085
    %v2107 = vpack.c.bf16 %v2089, %v2086
    %v2108 = vpack.c.bf16 %v2090, %v2087
    %v2109 = vpack.c.bf16 %v2094, %v2091
    %v2110 = vpack.c.bf16 %v2095, %v2092
    %v2111 = vpack.c.bf16 %v2096, %v2093
    %v2112 = vpack.c.bf16 %v2100, %v2097
    %v2113 = vpack.c.bf16 %v2101, %v2098
    %v2114 = vpack.c.bf16 %v2102, %v2099
    %2115 = vmatprep.subr.bf16.mxu0 %v1242
    %2116 = vmatpush1.bf16.msra.mxu0 %v1241
    %2117 = vmatprep.subr.bf16.mxu0 %v1240
    %2118 = vmatpush1.bf16.msra.mxu0 %v1239
    %2119 = vmatprep.subr.bf16.mxu0 %v1238
    %2120 = vmatpush1.bf16.msra.mxu0 %v1237
    %2121 = vmatprep.subr.bf16.mxu0 %v1236
    %2122 = vmatpush1.bf16.msra.mxu0 %v1235
    %2123 = vmatprep.subr.bf16.mxu0 %v1234
    %2124 = vmatpush1.bf16.msra.mxu0 %v1233
    %2125 = vmatprep.subr.bf16.mxu0 %v1232
    %2126 = vmatpush1.bf16.msra.mxu0 %v1231
    %2127 = vmatprep.subr.bf16.mxu0 %v1230
    %2128 = vmatpush1.bf16.msra.mxu0 %v1229
    %2129 = vmatprep.subr.bf16.mxu0 %v1228
    %2130 = vmatpush1.bf16.msra.mxu0 %v1227
    %2131 = vmatprep.subr.bf16.mxu0 %v1258
    %2132 = vmatpush2.bf16.msra.mxu0 %v1257
    %2133 = vmatprep.subr.bf16.mxu0 %v1256
    %2134 = vmatpush2.bf16.msra.mxu0 %v1255
    %2135 = vmatprep.subr.bf16.mxu0 %v1254
    %2136 = vmatpush2.bf16.msra.mxu0 %v1253
    %2137 = vmatprep.subr.bf16.mxu0 %v1252
    %2138 = vmatpush2.bf16.msra.mxu0 %v1251
    %2139 = vmatprep.subr.bf16.mxu0 %v1250
    %2140 = vmatpush2.bf16.msra.mxu0 %v1249
    %2141 = vmatprep.subr.bf16.mxu0 %v1248
    %2142 = vmatpush2.bf16.msra.mxu0 %v1247
    %2143 = vmatprep.subr.bf16.mxu0 %v1246
    %2144 = vmatpush2.bf16.msra.mxu0 %v1245
    %2145 = vmatprep.subr.bf16.mxu0 %v1244
    %2146 = vmatpush2.bf16.msra.mxu0 %v1243
    %2147 = vmatprep.mubr.bf16.mxu0 %v2104
    %2148 = vmatmul.mubr.bf16.gmra.mxu0 %v2103
    %v2149 = vpop.f32.mrf.mxu0
    %v2150 = vadd.f32 %v897, %v2149
    %v2151 = vpop.f32.mrf.mxu0
    %v2152 = vadd.f32 %v899, %v2151
    %v2153 = vpop.f32.mrf.mxu0
    %v2154 = vadd.f32 %v901, %v2153
    %v2155 = vpop.f32.mrf.mxu0
    %v2156 = vadd.f32 %v903, %v2155
    %2157 = vmatprep.mubr.bf16.mxu0 %v2107
    %2158 = vmatmul.mubr.bf16.gmra.mxu0 %v2106
    %v2159 = vpop.f32.mrf.mxu0
    %v2160 = vadd.f32 %v907, %v2159
    %v2161 = vpop.f32.mrf.mxu0
    %v2162 = vadd.f32 %v909, %v2161
    %v2163 = vpop.f32.mrf.mxu0
    %v2164 = vadd.f32 %v911, %v2163
    %v2165 = vpop.f32.mrf.mxu0
    %v2166 = vadd.f32 %v913, %v2165
    %2167 = vmatprep.mubr.bf16.mxu0 %v2110
    %2168 = vmatmul.mubr.bf16.gmra.mxu0 %v2109
    %v2169 = vpop.f32.mrf.mxu0
    %v2170 = vadd.f32 %v917, %v2169
    %v2171 = vpop.f32.mrf.mxu0
    %v2172 = vadd.f32 %v919, %v2171
    %v2173 = vpop.f32.mrf.mxu0
    %v2174 = vadd.f32 %v921, %v2173
    %v2175 = vpop.f32.mrf.mxu0
    %v2176 = vadd.f32 %v923, %v2175
    %2177 = vmatprep.mubr.bf16.mxu0 %v2113
    %2178 = vmatmul.mubr.bf16.gmra.mxu0 %v2112
    %v2179 = vpop.f32.mrf.mxu0
    %v2180 = vadd.f32 %v927, %v2179
    %v2181 = vpop.f32.mrf.mxu0
    %v2182 = vadd.f32 %v929, %v2181
    %v2183 = vpop.f32.mrf.mxu0
    %v2184 = vadd.f32 %v931, %v2183
    %v2185 = vpop.f32.mrf.mxu0
    %v2186 = vadd.f32 %v933, %v2185
    %2187 = vdwg.mxu0
    %2188 = vmatprep.subr.bf16.mxu0 %v1274
    %2189 = vmatpush1.bf16.msra.mxu0 %v1273
    %2190 = vmatprep.subr.bf16.mxu0 %v1272
    %2191 = vmatpush1.bf16.msra.mxu0 %v1271
    %2192 = vmatprep.subr.bf16.mxu0 %v1270
    %2193 = vmatpush1.bf16.msra.mxu0 %v1269
    %2194 = vmatprep.subr.bf16.mxu0 %v1268
    %2195 = vmatpush1.bf16.msra.mxu0 %v1267
    %2196 = vmatprep.subr.bf16.mxu0 %v1266
    %2197 = vmatpush1.bf16.msra.mxu0 %v1265
    %2198 = vmatprep.subr.bf16.mxu0 %v1264
    %2199 = vmatpush1.bf16.msra.mxu0 %v1263
    %2200 = vmatprep.subr.bf16.mxu0 %v1262
    %2201 = vmatpush1.bf16.msra.mxu0 %v1261
    %2202 = vmatprep.subr.bf16.mxu0 %v1260
    %2203 = vmatpush1.bf16.msra.mxu0 %v1259
    %2204 = vmatprep.subr.bf16.mxu0 0
    %2205 = vmatpush2.bf16.msra.mxu0 0
    %2206 = vmatprep.subr.bf16.mxu0 0
    %2207 = vmatpush2.bf16.msra.mxu0 0
    %2208 = vmatprep.subr.bf16.mxu0 0
    %2209 = vmatpush2.bf16.msra.mxu0 0
    %2210 = vmatprep.subr.bf16.mxu0 0
    %2211 = vmatpush2.bf16.msra.mxu0 0
    %2212 = vmatprep.subr.bf16.mxu0 0
    %2213 = vmatpush2.bf16.msra.mxu0 0
    %2214 = vmatprep.subr.bf16.mxu0 0
    %2215 = vmatpush2.bf16.msra.mxu0 0
    %2216 = vmatprep.subr.bf16.mxu0 0
    %2217 = vmatpush2.bf16.msra.mxu0 0
    %2218 = vmatprep.subr.bf16.mxu0 0
    %2219 = vmatpush2.bf16.msra.mxu0 0
    %2220 = vmatprep.mubr.bf16.mxu0 0
    %2221 = vmatmul.mubr.bf16.gmra.mxu0 %v2105
    %v2222 = vpop.f32.mrf.mxu0
    %v2223 = vadd.f32 %v2150, %v2222
    %v2224 = vpop.f32.mrf.mxu0
    %v2225 = vadd.f32 %v2152, %v2224
    %v2226 = vpop.f32.mrf.mxu0
    %v2227 = vadd.f32 %v2154, %v2226
    %v2228 = vpop.f32.mrf.mxu0
    %v2229 = vadd.f32 %v2156, %v2228
    %2230 = vmatprep.mubr.bf16.mxu0 0
    %2231 = vmatmul.mubr.bf16.gmra.mxu0 %v2108
    %v2232 = vpop.f32.mrf.mxu0
    %v2233 = vadd.f32 %v2160, %v2232
    %v2234 = vpop.f32.mrf.mxu0
    %v2235 = vadd.f32 %v2162, %v2234
    %v2236 = vpop.f32.mrf.mxu0
    %v2237 = vadd.f32 %v2164, %v2236
    %v2238 = vpop.f32.mrf.mxu0
    %v2239 = vadd.f32 %v2166, %v2238
    %2240 = vmatprep.mubr.bf16.mxu0 0
    %2241 = vmatmul.mubr.bf16.gmra.mxu0 %v2111
    %v2242 = vpop.f32.mrf.mxu0
    %v2243 = vadd.f32 %v2170, %v2242
    %v2244 = vpop.f32.mrf.mxu0
    %v2245 = vadd.f32 %v2172, %v2244
    %v2246 = vpop.f32.mrf.mxu0
    %v2247 = vadd.f32 %v2174, %v2246
    %v2248 = vpop.f32.mrf.mxu0
    %v2249 = vadd.f32 %v2176, %v2248
    %2250 = vmatprep.mubr.bf16.mxu0 0
    %2251 = vmatmul.mubr.bf16.gmra.mxu0 %v2114
    %v2252 = vpop.f32.mrf.mxu0
    %v2253 = vadd.f32 %v2180, %v2252
    %v2254 = vpop.f32.mrf.mxu0
    %v2255 = vadd.f32 %v2182, %v2254
    %v2256 = vpop.f32.mrf.mxu0
    %v2257 = vadd.f32 %v2184, %v2256
    %v2258 = vpop.f32.mrf.mxu0
    %v2259 = vadd.f32 %v2186, %v2258
    %2260 = vdwg.mxu0
    %v2261 = vmul.f32 %v464, 0.25
    %v2263 = vlaneseq
    %v2264 = vshrl.u32 %v2263, 7
    %v2265 = vsub.s32 0, %v2264
    %v2266 = vrot.slane %v2261, %v2265
    %v2267 = vlaneseq
    %v2268 = vshrl.u32 %v2267, 7
    %v2269 = vsub.s32 4, %v2268
    %v2270 = vrot.slane %v2261, %v2269
    %v2273 = vlaneseq
    %v2274 = vshrl.u32 %v2273, 7
    %v2275 = vsub.s32 0, %v2274
    %v2276 = vrot.slane %v2266, %v2275
    %v2277 = vlaneseq
    %v2278 = vshrl.u32 %v2277, 7
    %v2279 = vsub.s32 0, %v2278
    %v2280 = vrot.slane %v2270, %v2279
    %v2281 = vadd.f32 %v2223, %v2276
    %v2282 = vadd.f32 %v2225, %v2280
    %v2283 = vadd.f32 %v2227, %v2276
    %v2284 = vadd.f32 %v2229, %v2280
    %v2285 = vadd.f32 %v2233, %v2276
    %v2286 = vadd.f32 %v2235, %v2280
    %v2287 = vadd.f32 %v2237, %v2276
    %v2288 = vadd.f32 %v2239, %v2280
    %v2289 = vadd.f32 %v2243, %v2276
    %v2290 = vadd.f32 %v2245, %v2280
    %v2291 = vadd.f32 %v2247, %v2276
    %v2292 = vadd.f32 %v2249, %v2280
    %v2293 = vadd.f32 %v2253, %v2276
    %v2294 = vadd.f32 %v2255, %v2280
    %v2295 = vadd.f32 %v2257, %v2276
    %v2296 = vadd.f32 %v2259, %v2280
    %v2297 = vtanh.pop %v2281
    %v2298 = vtanh.pop %v2282
    %v2299 = vtanh.pop %v2283
    %v2300 = vtanh.pop %v2284
    %v2301 = vtanh.pop %v2285
    %v2302 = vtanh.pop %v2286
    %v2303 = vtanh.pop %v2287
    %v2304 = vtanh.pop %v2288
    %v2305 = vtanh.pop %v2289
    %v2306 = vtanh.pop %v2290
    %v2307 = vtanh.pop %v2291
    %v2308 = vtanh.pop %v2292
    %v2309 = vtanh.pop %v2293
    %v2310 = vtanh.pop %v2294
    %v2311 = vtanh.pop %v2295
    %v2312 = vtanh.pop %v2296
    %v2313 = vadd.f32 %v2281, %v362
    %v2314 = vadd.f32 %v2282, %v364
    %v2315 = vadd.f32 %v2283, %v366
    %v2316 = vadd.f32 %v2284, %v368
    %v2317 = vadd.f32 %v2285, %v372
    %v2318 = vadd.f32 %v2286, %v374
    %v2319 = vadd.f32 %v2287, %v376
    %v2320 = vadd.f32 %v2288, %v378
    %v2321 = vadd.f32 %v2289, %v382
    %v2322 = vadd.f32 %v2290, %v384
    %v2323 = vadd.f32 %v2291, %v386
    %v2324 = vadd.f32 %v2292, %v388
    %v2325 = vadd.f32 %v2293, %v392
    %v2326 = vadd.f32 %v2294, %v394
    %v2327 = vadd.f32 %v2295, %v396
    %v2328 = vadd.f32 %v2296, %v398
    %v2329 = vtanh.pop %v2313
    %v2330 = vtanh.pop %v2314
    %v2331 = vtanh.pop %v2315
    %v2332 = vtanh.pop %v2316
    %v2333 = vtanh.pop %v2317
    %v2334 = vtanh.pop %v2318
    %v2335 = vtanh.pop %v2319
    %v2336 = vtanh.pop %v2320
    %v2337 = vtanh.pop %v2321
    %v2338 = vtanh.pop %v2322
    %v2339 = vtanh.pop %v2323
    %v2340 = vtanh.pop %v2324
    %v2341 = vtanh.pop %v2325
    %v2342 = vtanh.pop %v2326
    %v2343 = vtanh.pop %v2327
    %v2344 = vtanh.pop %v2328
    %v2345 = vsub.f32 %v2329, %v2297
    %v2346 = vsub.f32 %v2330, %v2298
    %v2347 = vsub.f32 %v2331, %v2299
    %v2348 = vsub.f32 %v2332, %v2300
    %v2349 = vsub.f32 %v2333, %v2301
    %v2350 = vsub.f32 %v2334, %v2302
    %v2351 = vsub.f32 %v2335, %v2303
    %v2352 = vsub.f32 %v2336, %v2304
    %v2353 = vsub.f32 %v2337, %v2305
    %v2354 = vsub.f32 %v2338, %v2306
    %v2355 = vsub.f32 %v2339, %v2307
    %v2356 = vsub.f32 %v2340, %v2308
    %v2357 = vsub.f32 %v2341, %v2309
    %v2358 = vsub.f32 %v2342, %v2310
    %v2359 = vsub.f32 %v2343, %v2311
    %v2360 = vsub.f32 %v2344, %v2312
    %v2361 = vmul.f32 %v2345, 2.0
    %v2362 = vmul.f32 %v2346, 2.0
    %v2363 = vmul.f32 %v2347, 2.0
    %v2364 = vmul.f32 %v2348, 2.0
    %v2365 = vmul.f32 %v2349, 2.0
    %v2366 = vmul.f32 %v2350, 2.0
    %v2367 = vmul.f32 %v2351, 2.0
    %v2368 = vmul.f32 %v2352, 2.0
    %v2369 = vmul.f32 %v2353, 2.0
    %v2370 = vmul.f32 %v2354, 2.0
    %v2371 = vmul.f32 %v2355, 2.0
    %v2372 = vmul.f32 %v2356, 2.0
    %v2373 = vmul.f32 %v2357, 2.0
    %v2374 = vmul.f32 %v2358, 2.0
    %v2375 = vmul.f32 %v2359, 2.0
    %v2376 = vmul.f32 %v2360, 2.0
    %v2377 = vadd.f32 %v2297, %v2361
    %v2378 = vadd.f32 %v2298, %v2362
    %v2379 = vadd.f32 %v2299, %v2363
    %v2380 = vadd.f32 %v2300, %v2364
    %v2381 = vadd.f32 %v2301, %v2365
    %v2382 = vadd.f32 %v2302, %v2366
    %v2383 = vadd.f32 %v2303, %v2367
    %v2384 = vadd.f32 %v2304, %v2368
    %v2385 = vadd.f32 %v2305, %v2369
    %v2386 = vadd.f32 %v2306, %v2370
    %v2387 = vadd.f32 %v2307, %v2371
    %v2388 = vadd.f32 %v2308, %v2372
    %v2389 = vadd.f32 %v2309, %v2373
    %v2390 = vadd.f32 %v2310, %v2374
    %v2391 = vadd.f32 %v2311, %v2375
    %v2392 = vadd.f32 %v2312, %v2376
    %v2393 = vpack.c.bf16 %v2379, %v2377
    %v2394 = vpack.c.bf16 %v2380, %v2378
    %v2395 = vpack.c.bf16 %v2383, %v2381
    %v2396 = vpack.c.bf16 %v2384, %v2382
    %v2397 = vpack.c.bf16 %v2387, %v2385
    %v2398 = vpack.c.bf16 %v2388, %v2386
    %v2399 = vpack.c.bf16 %v2391, %v2389
    %v2400 = vpack.c.bf16 %v2392, %v2390
    %2401 = vmatprep.subr.bf16.mxu0 %v1791
    %2402 = vmatpush1.bf16.msra.mxu0 %v1790
    %2403 = vmatprep.subr.bf16.mxu0 %v1788
    %2404 = vmatpush1.bf16.msra.mxu0 %v1787
    %2405 = vmatprep.subr.bf16.mxu0 %v1785
    %2406 = vmatpush1.bf16.msra.mxu0 %v1784
    %2407 = vmatprep.subr.bf16.mxu0 %v1782
    %2408 = vmatpush1.bf16.msra.mxu0 %v1781
    %2409 = vmatprep.subr.bf16.mxu0 %v1779
    %2410 = vmatpush1.bf16.msra.mxu0 %v1778
    %2411 = vmatprep.subr.bf16.mxu0 %v1776
    %2412 = vmatpush1.bf16.msra.mxu0 %v1775
    %2413 = vmatprep.subr.bf16.mxu0 %v1773
    %2414 = vmatpush1.bf16.msra.mxu0 %v1772
    %2415 = vmatprep.subr.bf16.mxu0 %v1770
    %2416 = vmatpush1.bf16.msra.mxu0 %v1769
    %2417 = vmatprep.subr.bf16.mxu0 %v1815
    %2418 = vmatpush2.bf16.msra.mxu0 %v1814
    %2419 = vmatprep.subr.bf16.mxu0 %v1812
    %2420 = vmatpush2.bf16.msra.mxu0 %v1811
    %2421 = vmatprep.subr.bf16.mxu0 %v1809
    %2422 = vmatpush2.bf16.msra.mxu0 %v1808
    %2423 = vmatprep.subr.bf16.mxu0 %v1806
    %2424 = vmatpush2.bf16.msra.mxu0 %v1805
    %2425 = vmatprep.subr.bf16.mxu0 %v1803
    %2426 = vmatpush2.bf16.msra.mxu0 %v1802
    %2427 = vmatprep.subr.bf16.mxu0 %v1800
    %2428 = vmatpush2.bf16.msra.mxu0 %v1799
    %2429 = vmatprep.subr.bf16.mxu0 %v1797
    %2430 = vmatpush2.bf16.msra.mxu0 %v1796
    %2431 = vmatprep.subr.bf16.mxu0 %v1794
    %2432 = vmatpush2.bf16.msra.mxu0 %v1793
    %2433 = vmatprep.mubr.bf16.mxu0 %v2394
    %2434 = vmatmul.mubr.bf16.gmra.mxu0 %v2393
    %v2435 = vpop.f32.mrf.mxu0
    %v2436 = vadd.f32 0.0, %v2435
    %v2437 = vpop.f32.mrf.mxu0
    %v2438 = vadd.f32 0.0, %v2437
    %v2439 = vpop.f32.mrf.mxu0
    %v2440 = vadd.f32 0.0, %v2439
    %v2441 = vpop.f32.mrf.mxu0
    %v2442 = vadd.f32 0.0, %v2441
    %2443 = vmatprep.mubr.bf16.mxu0 %v2396
    %2444 = vmatmul.mubr.bf16.gmra.mxu0 %v2395
    %v2445 = vpop.f32.mrf.mxu0
    %v2446 = vadd.f32 0.0, %v2445
    %v2447 = vpop.f32.mrf.mxu0
    %v2448 = vadd.f32 0.0, %v2447
    %v2449 = vpop.f32.mrf.mxu0
    %v2450 = vadd.f32 0.0, %v2449
    %v2451 = vpop.f32.mrf.mxu0
    %v2452 = vadd.f32 0.0, %v2451
    %2453 = vmatprep.mubr.bf16.mxu0 %v2398
    %2454 = vmatmul.mubr.bf16.gmra.mxu0 %v2397
    %v2455 = vpop.f32.mrf.mxu0
    %v2456 = vadd.f32 0.0, %v2455
    %v2457 = vpop.f32.mrf.mxu0
    %v2458 = vadd.f32 0.0, %v2457
    %v2459 = vpop.f32.mrf.mxu0
    %v2460 = vadd.f32 0.0, %v2459
    %v2461 = vpop.f32.mrf.mxu0
    %v2462 = vadd.f32 0.0, %v2461
    %2463 = vmatprep.mubr.bf16.mxu0 %v2400
    %2464 = vmatmul.mubr.bf16.gmra.mxu0 %v2399
    %v2465 = vpop.f32.mrf.mxu0
    %v2466 = vadd.f32 0.0, %v2465
    %v2467 = vpop.f32.mrf.mxu0
    %v2468 = vadd.f32 0.0, %v2467
    %v2469 = vpop.f32.mrf.mxu0
    %v2470 = vadd.f32 0.0, %v2469
    %v2471 = vpop.f32.mrf.mxu0
    %v2472 = vadd.f32 0.0, %v2471
    %2473 = vdwg.mxu0
    %2474 = vmatprep.subr.bf16.mxu0 0
    %2475 = vmatpush1.bf16.msra.mxu0 %v1792
    %2476 = vmatprep.subr.bf16.mxu0 0
    %2477 = vmatpush1.bf16.msra.mxu0 %v1789
    %2478 = vmatprep.subr.bf16.mxu0 0
    %2479 = vmatpush1.bf16.msra.mxu0 %v1786
    %2480 = vmatprep.subr.bf16.mxu0 0
    %2481 = vmatpush1.bf16.msra.mxu0 %v1783
    %2482 = vmatprep.subr.bf16.mxu0 0
    %2483 = vmatpush1.bf16.msra.mxu0 %v1780
    %2484 = vmatprep.subr.bf16.mxu0 0
    %2485 = vmatpush1.bf16.msra.mxu0 %v1777
    %2486 = vmatprep.subr.bf16.mxu0 0
    %2487 = vmatpush1.bf16.msra.mxu0 %v1774
    %2488 = vmatprep.subr.bf16.mxu0 0
    %2489 = vmatpush1.bf16.msra.mxu0 %v1771
    %2490 = vmatprep.subr.bf16.mxu0 0
    %2491 = vmatpush2.bf16.msra.mxu0 %v1816
    %2492 = vmatprep.subr.bf16.mxu0 0
    %2493 = vmatpush2.bf16.msra.mxu0 %v1813
    %2494 = vmatprep.subr.bf16.mxu0 0
    %2495 = vmatpush2.bf16.msra.mxu0 %v1810
    %2496 = vmatprep.subr.bf16.mxu0 0
    %2497 = vmatpush2.bf16.msra.mxu0 %v1807
    %2498 = vmatprep.subr.bf16.mxu0 0
    %2499 = vmatpush2.bf16.msra.mxu0 %v1804
    %2500 = vmatprep.subr.bf16.mxu0 0
    %2501 = vmatpush2.bf16.msra.mxu0 %v1801
    %2502 = vmatprep.subr.bf16.mxu0 0
    %2503 = vmatpush2.bf16.msra.mxu0 %v1798
    %2504 = vmatprep.subr.bf16.mxu0 0
    %2505 = vmatpush2.bf16.msra.mxu0 %v1795
    %2506 = vmatprep.mubr.bf16.mxu0 %v2394
    %2507 = vmatmul.mubr.bf16.gmra.mxu0 %v2393
    %v2508 = vpop.f32.mrf.mxu0
    %v2509 = vadd.f32 0.0, %v2508
    %v2510 = vpop.f32.mrf.mxu0
    %v2511 = vpop.f32.mrf.mxu0
    %v2512 = vadd.f32 0.0, %v2511
    %v2513 = vpop.f32.mrf.mxu0
    %2514 = vmatprep.mubr.bf16.mxu0 %v2396
    %2515 = vmatmul.mubr.bf16.gmra.mxu0 %v2395
    %v2516 = vpop.f32.mrf.mxu0
    %v2517 = vadd.f32 0.0, %v2516
    %v2518 = vpop.f32.mrf.mxu0
    %v2519 = vpop.f32.mrf.mxu0
    %v2520 = vadd.f32 0.0, %v2519
    %v2521 = vpop.f32.mrf.mxu0
    %2522 = vmatprep.mubr.bf16.mxu0 %v2398
    %2523 = vmatmul.mubr.bf16.gmra.mxu0 %v2397
    %v2524 = vpop.f32.mrf.mxu0
    %v2525 = vadd.f32 0.0, %v2524
    %v2526 = vpop.f32.mrf.mxu0
    %v2527 = vpop.f32.mrf.mxu0
    %v2528 = vadd.f32 0.0, %v2527
    %v2529 = vpop.f32.mrf.mxu0
    %2530 = vmatprep.mubr.bf16.mxu0 %v2400
    %2531 = vmatmul.mubr.bf16.gmra.mxu0 %v2399
    %v2532 = vpop.f32.mrf.mxu0
    %v2533 = vadd.f32 0.0, %v2532
    %v2534 = vpop.f32.mrf.mxu0
    %v2535 = vpop.f32.mrf.mxu0
    %v2536 = vadd.f32 0.0, %v2535
    %v2537 = vpop.f32.mrf.mxu0
    %2538 = vdwg.mxu0
    %v2539 = vmul.f32 %v2436, 0.25
    %v2540 = vmul.f32 %v2438, 0.25
    %v2541 = vmul.f32 %v2509, 0.25
    %v2542 = vmul.f32 %v2440, 0.25
    %v2543 = vmul.f32 %v2442, 0.25
    %v2544 = vmul.f32 %v2512, 0.25
    %v2545 = vmul.f32 %v2446, 0.25
    %v2546 = vmul.f32 %v2448, 0.25
    %v2547 = vmul.f32 %v2517, 0.25
    %v2548 = vmul.f32 %v2450, 0.25
    %v2549 = vmul.f32 %v2452, 0.25
    %v2550 = vmul.f32 %v2520, 0.25
    %v2551 = vmul.f32 %v2456, 0.25
    %v2552 = vmul.f32 %v2458, 0.25
    %v2553 = vmul.f32 %v2525, 0.25
    %v2554 = vmul.f32 %v2460, 0.25
    %v2555 = vmul.f32 %v2462, 0.25
    %v2556 = vmul.f32 %v2528, 0.25
    %v2557 = vmul.f32 %v2466, 0.25
    %v2558 = vmul.f32 %v2468, 0.25
    %v2559 = vmul.f32 %v2533, 0.25
    %v2560 = vmul.f32 %v2470, 0.25
    %v2561 = vmul.f32 %v2472, 0.25
    %v2562 = vmul.f32 %v2536, 0.25
    %v2563 = vadd.f32 %v2079, %v2539
    %v2564 = vadd.f32 %v2080, %v2540
    %v2565 = vadd.f32 %v2081, %v2541
    %v2566 = vadd.f32 %v2082, %v2542
    %v2567 = vadd.f32 %v2083, %v2543
    %v2568 = vadd.f32 %v2084, %v2544
    %v2569 = vadd.f32 %v2085, %v2545
    %v2570 = vadd.f32 %v2086, %v2546
    %v2571 = vadd.f32 %v2087, %v2547
    %v2572 = vadd.f32 %v2088, %v2548
    %v2573 = vadd.f32 %v2089, %v2549
    %v2574 = vadd.f32 %v2090, %v2550
    %v2575 = vadd.f32 %v2091, %v2551
    %v2576 = vadd.f32 %v2092, %v2552
    %v2577 = vadd.f32 %v2093, %v2553
    %v2578 = vadd.f32 %v2094, %v2554
    %v2579 = vadd.f32 %v2095, %v2555
    %v2580 = vadd.f32 %v2096, %v2556
    %v2581 = vadd.f32 %v2097, %v2557
    %v2582 = vadd.f32 %v2098, %v2558
    %v2583 = vadd.f32 %v2099, %v2559
    %v2584 = vadd.f32 %v2100, %v2560
    %v2585 = vadd.f32 %v2101, %v2561
    %v2586 = vadd.f32 %v2102, %v2562
    %v2587 = vadd.f32 %v2563, %v2070
    %v2588 = vadd.f32 %v2564, %v2074
    %v2589 = vadd.f32 %v2565, %v2078
    %v2590 = vadd.f32 %v2566, %v2070
    %v2591 = vadd.f32 %v2567, %v2074
    %v2592 = vadd.f32 %v2568, %v2078
    %v2593 = vadd.f32 %v2569, %v2070
    %v2594 = vadd.f32 %v2570, %v2074
    %v2595 = vadd.f32 %v2571, %v2078
    %v2596 = vadd.f32 %v2572, %v2070
    %v2597 = vadd.f32 %v2573, %v2074
    %v2598 = vadd.f32 %v2574, %v2078
    %v2599 = vadd.f32 %v2575, %v2070
    %v2600 = vadd.f32 %v2576, %v2074
    %v2601 = vadd.f32 %v2577, %v2078
    %v2602 = vadd.f32 %v2578, %v2070
    %v2603 = vadd.f32 %v2579, %v2074
    %v2604 = vadd.f32 %v2580, %v2078
    %v2605 = vadd.f32 %v2581, %v2070
    %v2606 = vadd.f32 %v2582, %v2074
    %v2607 = vadd.f32 %v2583, %v2078
    %v2608 = vadd.f32 %v2584, %v2070
    %v2609 = vadd.f32 %v2585, %v2074
    %v2610 = vadd.f32 %v2586, %v2078
    %v2611 = vpack.c.bf16 %v2590, %v2587
    %v2612 = vpack.c.bf16 %v2591, %v2588
    %v2613 = vpack.c.bf16 %v2592, %v2589
    %v2614 = vpack.c.bf16 %v2596, %v2593
    %v2615 = vpack.c.bf16 %v2597, %v2594
    %v2616 = vpack.c.bf16 %v2598, %v2595
    %v2617 = vpack.c.bf16 %v2602, %v2599
    %v2618 = vpack.c.bf16 %v2603, %v2600
    %v2619 = vpack.c.bf16 %v2604, %v2601
    %v2620 = vpack.c.bf16 %v2608, %v2605
    %v2621 = vpack.c.bf16 %v2609, %v2606
    %v2622 = vpack.c.bf16 %v2610, %v2607
    %2623 = vmatprep.subr.bf16.mxu0 %v1242
    %2624 = vmatpush1.bf16.msra.mxu0 %v1241
    %2625 = vmatprep.subr.bf16.mxu0 %v1240
    %2626 = vmatpush1.bf16.msra.mxu0 %v1239
    %2627 = vmatprep.subr.bf16.mxu0 %v1238
    %2628 = vmatpush1.bf16.msra.mxu0 %v1237
    %2629 = vmatprep.subr.bf16.mxu0 %v1236
    %2630 = vmatpush1.bf16.msra.mxu0 %v1235
    %2631 = vmatprep.subr.bf16.mxu0 %v1234
    %2632 = vmatpush1.bf16.msra.mxu0 %v1233
    %2633 = vmatprep.subr.bf16.mxu0 %v1232
    %2634 = vmatpush1.bf16.msra.mxu0 %v1231
    %2635 = vmatprep.subr.bf16.mxu0 %v1230
    %2636 = vmatpush1.bf16.msra.mxu0 %v1229
    %2637 = vmatprep.subr.bf16.mxu0 %v1228
    %2638 = vmatpush1.bf16.msra.mxu0 %v1227
    %2639 = vmatprep.subr.bf16.mxu0 %v1258
    %2640 = vmatpush2.bf16.msra.mxu0 %v1257
    %2641 = vmatprep.subr.bf16.mxu0 %v1256
    %2642 = vmatpush2.bf16.msra.mxu0 %v1255
    %2643 = vmatprep.subr.bf16.mxu0 %v1254
    %2644 = vmatpush2.bf16.msra.mxu0 %v1253
    %2645 = vmatprep.subr.bf16.mxu0 %v1252
    %2646 = vmatpush2.bf16.msra.mxu0 %v1251
    %2647 = vmatprep.subr.bf16.mxu0 %v1250
    %2648 = vmatpush2.bf16.msra.mxu0 %v1249
    %2649 = vmatprep.subr.bf16.mxu0 %v1248
    %2650 = vmatpush2.bf16.msra.mxu0 %v1247
    %2651 = vmatprep.subr.bf16.mxu0 %v1246
    %2652 = vmatpush2.bf16.msra.mxu0 %v1245
    %2653 = vmatprep.subr.bf16.mxu0 %v1244
    %2654 = vmatpush2.bf16.msra.mxu0 %v1243
    %2655 = vmatprep.mubr.bf16.mxu0 %v2612
    %2656 = vmatmul.mubr.bf16.gmra.mxu0 %v2611
    %v2657 = vpop.f32.mrf.mxu0
    %v2658 = vadd.f32 %v897, %v2657
    %v2659 = vpop.f32.mrf.mxu0
    %v2660 = vadd.f32 %v899, %v2659
    %v2661 = vpop.f32.mrf.mxu0
    %v2662 = vadd.f32 %v901, %v2661
    %v2663 = vpop.f32.mrf.mxu0
    %v2664 = vadd.f32 %v903, %v2663
    %2665 = vmatprep.mubr.bf16.mxu0 %v2615
    %2666 = vmatmul.mubr.bf16.gmra.mxu0 %v2614
    %v2667 = vpop.f32.mrf.mxu0
    %v2668 = vadd.f32 %v907, %v2667
    %v2669 = vpop.f32.mrf.mxu0
    %v2670 = vadd.f32 %v909, %v2669
    %v2671 = vpop.f32.mrf.mxu0
    %v2672 = vadd.f32 %v911, %v2671
    %v2673 = vpop.f32.mrf.mxu0
    %v2674 = vadd.f32 %v913, %v2673
    %2675 = vmatprep.mubr.bf16.mxu0 %v2618
    %2676 = vmatmul.mubr.bf16.gmra.mxu0 %v2617
    %v2677 = vpop.f32.mrf.mxu0
    %v2678 = vadd.f32 %v917, %v2677
    %v2679 = vpop.f32.mrf.mxu0
    %v2680 = vadd.f32 %v919, %v2679
    %v2681 = vpop.f32.mrf.mxu0
    %v2682 = vadd.f32 %v921, %v2681
    %v2683 = vpop.f32.mrf.mxu0
    %v2684 = vadd.f32 %v923, %v2683
    %2685 = vmatprep.mubr.bf16.mxu0 %v2621
    %2686 = vmatmul.mubr.bf16.gmra.mxu0 %v2620
    %v2687 = vpop.f32.mrf.mxu0
    %v2688 = vadd.f32 %v927, %v2687
    %v2689 = vpop.f32.mrf.mxu0
    %v2690 = vadd.f32 %v929, %v2689
    %v2691 = vpop.f32.mrf.mxu0
    %v2692 = vadd.f32 %v931, %v2691
    %v2693 = vpop.f32.mrf.mxu0
    %v2694 = vadd.f32 %v933, %v2693
    %2695 = vdwg.mxu0
    %2696 = vmatprep.subr.bf16.mxu0 %v1274
    %2697 = vmatpush1.bf16.msra.mxu0 %v1273
    %2698 = vmatprep.subr.bf16.mxu0 %v1272
    %2699 = vmatpush1.bf16.msra.mxu0 %v1271
    %2700 = vmatprep.subr.bf16.mxu0 %v1270
    %2701 = vmatpush1.bf16.msra.mxu0 %v1269
    %2702 = vmatprep.subr.bf16.mxu0 %v1268
    %2703 = vmatpush1.bf16.msra.mxu0 %v1267
    %2704 = vmatprep.subr.bf16.mxu0 %v1266
    %2705 = vmatpush1.bf16.msra.mxu0 %v1265
    %2706 = vmatprep.subr.bf16.mxu0 %v1264
    %2707 = vmatpush1.bf16.msra.mxu0 %v1263
    %2708 = vmatprep.subr.bf16.mxu0 %v1262
    %2709 = vmatpush1.bf16.msra.mxu0 %v1261
    %2710 = vmatprep.subr.bf16.mxu0 %v1260
    %2711 = vmatpush1.bf16.msra.mxu0 %v1259
    %2712 = vmatprep.subr.bf16.mxu0 0
    %2713 = vmatpush2.bf16.msra.mxu0 0
    %2714 = vmatprep.subr.bf16.mxu0 0
    %2715 = vmatpush2.bf16.msra.mxu0 0
    %2716 = vmatprep.subr.bf16.mxu0 0
    %2717 = vmatpush2.bf16.msra.mxu0 0
    %2718 = vmatprep.subr.bf16.mxu0 0
    %2719 = vmatpush2.bf16.msra.mxu0 0
    %2720 = vmatprep.subr.bf16.mxu0 0
    %2721 = vmatpush2.bf16.msra.mxu0 0
    %2722 = vmatprep.subr.bf16.mxu0 0
    %2723 = vmatpush2.bf16.msra.mxu0 0
    %2724 = vmatprep.subr.bf16.mxu0 0
    %2725 = vmatpush2.bf16.msra.mxu0 0
    %2726 = vmatprep.subr.bf16.mxu0 0
    %2727 = vmatpush2.bf16.msra.mxu0 0
    %2728 = vmatprep.mubr.bf16.mxu0 0
    %2729 = vmatmul.mubr.bf16.gmra.mxu0 %v2613
    %v2730 = vpop.f32.mrf.mxu0
    %v2731 = vadd.f32 %v2658, %v2730
    %v2732 = vpop.f32.mrf.mxu0
    %v2733 = vadd.f32 %v2660, %v2732
    %v2734 = vpop.f32.mrf.mxu0
    %v2735 = vadd.f32 %v2662, %v2734
    %v2736 = vpop.f32.mrf.mxu0
    %v2737 = vadd.f32 %v2664, %v2736
    %2738 = vmatprep.mubr.bf16.mxu0 0
    %2739 = vmatmul.mubr.bf16.gmra.mxu0 %v2616
    %v2740 = vpop.f32.mrf.mxu0
    %v2741 = vadd.f32 %v2668, %v2740
    %v2742 = vpop.f32.mrf.mxu0
    %v2743 = vadd.f32 %v2670, %v2742
    %v2744 = vpop.f32.mrf.mxu0
    %v2745 = vadd.f32 %v2672, %v2744
    %v2746 = vpop.f32.mrf.mxu0
    %v2747 = vadd.f32 %v2674, %v2746
    %2748 = vmatprep.mubr.bf16.mxu0 0
    %2749 = vmatmul.mubr.bf16.gmra.mxu0 %v2619
    %v2750 = vpop.f32.mrf.mxu0
    %v2751 = vadd.f32 %v2678, %v2750
    %v2752 = vpop.f32.mrf.mxu0
    %v2753 = vadd.f32 %v2680, %v2752
    %v2754 = vpop.f32.mrf.mxu0
    %v2755 = vadd.f32 %v2682, %v2754
    %v2756 = vpop.f32.mrf.mxu0
    %v2757 = vadd.f32 %v2684, %v2756
    %2758 = vmatprep.mubr.bf16.mxu0 0
    %2759 = vmatmul.mubr.bf16.gmra.mxu0 %v2622
    %v2760 = vpop.f32.mrf.mxu0
    %v2761 = vadd.f32 %v2688, %v2760
    %v2762 = vpop.f32.mrf.mxu0
    %v2763 = vadd.f32 %v2690, %v2762
    %v2764 = vpop.f32.mrf.mxu0
    %v2765 = vadd.f32 %v2692, %v2764
    %v2766 = vpop.f32.mrf.mxu0
    %v2767 = vadd.f32 %v2694, %v2766
    %2768 = vdwg.mxu0
    %v2769 = vmul.f32 %v464, 0.5
    %v2771 = vlaneseq
    %v2772 = vshrl.u32 %v2771, 7
    %v2773 = vsub.s32 0, %v2772
    %v2774 = vrot.slane %v2769, %v2773
    %v2775 = vlaneseq
    %v2776 = vshrl.u32 %v2775, 7
    %v2777 = vsub.s32 4, %v2776
    %v2778 = vrot.slane %v2769, %v2777
    %v2781 = vlaneseq
    %v2782 = vshrl.u32 %v2781, 7
    %v2783 = vsub.s32 0, %v2782
    %v2784 = vrot.slane %v2774, %v2783
    %v2785 = vlaneseq
    %v2786 = vshrl.u32 %v2785, 7
    %v2787 = vsub.s32 0, %v2786
    %v2788 = vrot.slane %v2778, %v2787
    %v2789 = vadd.f32 %v2731, %v2784
    %v2790 = vadd.f32 %v2733, %v2788
    %v2791 = vadd.f32 %v2735, %v2784
    %v2792 = vadd.f32 %v2737, %v2788
    %v2793 = vadd.f32 %v2741, %v2784
    %v2794 = vadd.f32 %v2743, %v2788
    %v2795 = vadd.f32 %v2745, %v2784
    %v2796 = vadd.f32 %v2747, %v2788
    %v2797 = vadd.f32 %v2751, %v2784
    %v2798 = vadd.f32 %v2753, %v2788
    %v2799 = vadd.f32 %v2755, %v2784
    %v2800 = vadd.f32 %v2757, %v2788
    %v2801 = vadd.f32 %v2761, %v2784
    %v2802 = vadd.f32 %v2763, %v2788
    %v2803 = vadd.f32 %v2765, %v2784
    %v2804 = vadd.f32 %v2767, %v2788
    %v2805 = vtanh.pop %v2789
    %v2806 = vtanh.pop %v2790
    %v2807 = vtanh.pop %v2791
    %v2808 = vtanh.pop %v2792
    %v2809 = vtanh.pop %v2793
    %v2810 = vtanh.pop %v2794
    %v2811 = vtanh.pop %v2795
    %v2812 = vtanh.pop %v2796
    %v2813 = vtanh.pop %v2797
    %v2814 = vtanh.pop %v2798
    %v2815 = vtanh.pop %v2799
    %v2816 = vtanh.pop %v2800
    %v2817 = vtanh.pop %v2801
    %v2818 = vtanh.pop %v2802
    %v2819 = vtanh.pop %v2803
    %v2820 = vtanh.pop %v2804
    %v2821 = vadd.f32 %v2789, %v362
    %v2822 = vadd.f32 %v2790, %v364
    %v2823 = vadd.f32 %v2791, %v366
    %v2824 = vadd.f32 %v2792, %v368
    %v2825 = vadd.f32 %v2793, %v372
    %v2826 = vadd.f32 %v2794, %v374
    %v2827 = vadd.f32 %v2795, %v376
    %v2828 = vadd.f32 %v2796, %v378
    %v2829 = vadd.f32 %v2797, %v382
    %v2830 = vadd.f32 %v2798, %v384
    %v2831 = vadd.f32 %v2799, %v386
    %v2832 = vadd.f32 %v2800, %v388
    %v2833 = vadd.f32 %v2801, %v392
    %v2834 = vadd.f32 %v2802, %v394
    %v2835 = vadd.f32 %v2803, %v396
    %v2836 = vadd.f32 %v2804, %v398
    %v2837 = vtanh.pop %v2821
    %v2838 = vtanh.pop %v2822
    %v2839 = vtanh.pop %v2823
    %v2840 = vtanh.pop %v2824
    %v2841 = vtanh.pop %v2825
    %v2842 = vtanh.pop %v2826
    %v2843 = vtanh.pop %v2827
    %v2844 = vtanh.pop %v2828
    %v2845 = vtanh.pop %v2829
    %v2846 = vtanh.pop %v2830
    %v2847 = vtanh.pop %v2831
    %v2848 = vtanh.pop %v2832
    %v2849 = vtanh.pop %v2833
    %v2850 = vtanh.pop %v2834
    %v2851 = vtanh.pop %v2835
    %v2852 = vtanh.pop %v2836
    %v2853 = vsub.f32 %v2837, %v2805
    %v2854 = vsub.f32 %v2838, %v2806
    %v2855 = vsub.f32 %v2839, %v2807
    %v2856 = vsub.f32 %v2840, %v2808
    %v2857 = vsub.f32 %v2841, %v2809
    %v2858 = vsub.f32 %v2842, %v2810
    %v2859 = vsub.f32 %v2843, %v2811
    %v2860 = vsub.f32 %v2844, %v2812
    %v2861 = vsub.f32 %v2845, %v2813
    %v2862 = vsub.f32 %v2846, %v2814
    %v2863 = vsub.f32 %v2847, %v2815
    %v2864 = vsub.f32 %v2848, %v2816
    %v2865 = vsub.f32 %v2849, %v2817
    %v2866 = vsub.f32 %v2850, %v2818
    %v2867 = vsub.f32 %v2851, %v2819
    %v2868 = vsub.f32 %v2852, %v2820
    %v2869 = vmul.f32 %v2853, 2.0
    %v2870 = vmul.f32 %v2854, 2.0
    %v2871 = vmul.f32 %v2855, 2.0
    %v2872 = vmul.f32 %v2856, 2.0
    %v2873 = vmul.f32 %v2857, 2.0
    %v2874 = vmul.f32 %v2858, 2.0
    %v2875 = vmul.f32 %v2859, 2.0
    %v2876 = vmul.f32 %v2860, 2.0
    %v2877 = vmul.f32 %v2861, 2.0
    %v2878 = vmul.f32 %v2862, 2.0
    %v2879 = vmul.f32 %v2863, 2.0
    %v2880 = vmul.f32 %v2864, 2.0
    %v2881 = vmul.f32 %v2865, 2.0
    %v2882 = vmul.f32 %v2866, 2.0
    %v2883 = vmul.f32 %v2867, 2.0
    %v2884 = vmul.f32 %v2868, 2.0
    %v2885 = vadd.f32 %v2805, %v2869
    %v2886 = vadd.f32 %v2806, %v2870
    %v2887 = vadd.f32 %v2807, %v2871
    %v2888 = vadd.f32 %v2808, %v2872
    %v2889 = vadd.f32 %v2809, %v2873
    %v2890 = vadd.f32 %v2810, %v2874
    %v2891 = vadd.f32 %v2811, %v2875
    %v2892 = vadd.f32 %v2812, %v2876
    %v2893 = vadd.f32 %v2813, %v2877
    %v2894 = vadd.f32 %v2814, %v2878
    %v2895 = vadd.f32 %v2815, %v2879
    %v2896 = vadd.f32 %v2816, %v2880
    %v2897 = vadd.f32 %v2817, %v2881
    %v2898 = vadd.f32 %v2818, %v2882
    %v2899 = vadd.f32 %v2819, %v2883
    %v2900 = vadd.f32 %v2820, %v2884
    %v2901 = vpack.c.bf16 %v2887, %v2885
    %v2902 = vpack.c.bf16 %v2888, %v2886
    %v2903 = vpack.c.bf16 %v2891, %v2889
    %v2904 = vpack.c.bf16 %v2892, %v2890
    %v2905 = vpack.c.bf16 %v2895, %v2893
    %v2906 = vpack.c.bf16 %v2896, %v2894
    %v2907 = vpack.c.bf16 %v2899, %v2897
    %v2908 = vpack.c.bf16 %v2900, %v2898
    %2909 = vmatprep.subr.bf16.mxu0 %v1791
    %2910 = vmatpush1.bf16.msra.mxu0 %v1790
    %2911 = vmatprep.subr.bf16.mxu0 %v1788
    %2912 = vmatpush1.bf16.msra.mxu0 %v1787
    %2913 = vmatprep.subr.bf16.mxu0 %v1785
    %2914 = vmatpush1.bf16.msra.mxu0 %v1784
    %2915 = vmatprep.subr.bf16.mxu0 %v1782
    %2916 = vmatpush1.bf16.msra.mxu0 %v1781
    %2917 = vmatprep.subr.bf16.mxu0 %v1779
    %2918 = vmatpush1.bf16.msra.mxu0 %v1778
    %2919 = vmatprep.subr.bf16.mxu0 %v1776
    %2920 = vmatpush1.bf16.msra.mxu0 %v1775
    %2921 = vmatprep.subr.bf16.mxu0 %v1773
    %2922 = vmatpush1.bf16.msra.mxu0 %v1772
    %2923 = vmatprep.subr.bf16.mxu0 %v1770
    %2924 = vmatpush1.bf16.msra.mxu0 %v1769
    %2925 = vmatprep.subr.bf16.mxu0 %v1815
    %2926 = vmatpush2.bf16.msra.mxu0 %v1814
    %2927 = vmatprep.subr.bf16.mxu0 %v1812
    %2928 = vmatpush2.bf16.msra.mxu0 %v1811
    %2929 = vmatprep.subr.bf16.mxu0 %v1809
    %2930 = vmatpush2.bf16.msra.mxu0 %v1808
    %2931 = vmatprep.subr.bf16.mxu0 %v1806
    %2932 = vmatpush2.bf16.msra.mxu0 %v1805
    %2933 = vmatprep.subr.bf16.mxu0 %v1803
    %2934 = vmatpush2.bf16.msra.mxu0 %v1802
    %2935 = vmatprep.subr.bf16.mxu0 %v1800
    %2936 = vmatpush2.bf16.msra.mxu0 %v1799
    %2937 = vmatprep.subr.bf16.mxu0 %v1797
    %2938 = vmatpush2.bf16.msra.mxu0 %v1796
    %2939 = vmatprep.subr.bf16.mxu0 %v1794
    %2940 = vmatpush2.bf16.msra.mxu0 %v1793
    %2941 = vmatprep.mubr.bf16.mxu0 %v2902
    %2942 = vmatmul.mubr.bf16.gmra.mxu0 %v2901
    %v2943 = vpop.f32.mrf.mxu0
    %v2944 = vadd.f32 0.0, %v2943
    %v2945 = vpop.f32.mrf.mxu0
    %v2946 = vadd.f32 0.0, %v2945
    %v2947 = vpop.f32.mrf.mxu0
    %v2948 = vadd.f32 0.0, %v2947
    %v2949 = vpop.f32.mrf.mxu0
    %v2950 = vadd.f32 0.0, %v2949
    %2951 = vmatprep.mubr.bf16.mxu0 %v2904
    %2952 = vmatmul.mubr.bf16.gmra.mxu0 %v2903
    %v2953 = vpop.f32.mrf.mxu0
    %v2954 = vadd.f32 0.0, %v2953
    %v2955 = vpop.f32.mrf.mxu0
    %v2956 = vadd.f32 0.0, %v2955
    %v2957 = vpop.f32.mrf.mxu0
    %v2958 = vadd.f32 0.0, %v2957
    %v2959 = vpop.f32.mrf.mxu0
    %v2960 = vadd.f32 0.0, %v2959
    %2961 = vmatprep.mubr.bf16.mxu0 %v2906
    %2962 = vmatmul.mubr.bf16.gmra.mxu0 %v2905
    %v2963 = vpop.f32.mrf.mxu0
    %v2964 = vadd.f32 0.0, %v2963
    %v2965 = vpop.f32.mrf.mxu0
    %v2966 = vadd.f32 0.0, %v2965
    %v2967 = vpop.f32.mrf.mxu0
    %v2968 = vadd.f32 0.0, %v2967
    %v2969 = vpop.f32.mrf.mxu0
    %v2970 = vadd.f32 0.0, %v2969
    %2971 = vmatprep.mubr.bf16.mxu0 %v2908
    %2972 = vmatmul.mubr.bf16.gmra.mxu0 %v2907
    %v2973 = vpop.f32.mrf.mxu0
    %v2974 = vadd.f32 0.0, %v2973
    %v2975 = vpop.f32.mrf.mxu0
    %v2976 = vadd.f32 0.0, %v2975
    %v2977 = vpop.f32.mrf.mxu0
    %v2978 = vadd.f32 0.0, %v2977
    %v2979 = vpop.f32.mrf.mxu0
    %v2980 = vadd.f32 0.0, %v2979
    %2981 = vdwg.mxu0
    %2982 = vmatprep.subr.bf16.mxu0 0
    %2983 = vmatpush1.bf16.msra.mxu0 %v1792
    %2984 = vmatprep.subr.bf16.mxu0 0
    %2985 = vmatpush1.bf16.msra.mxu0 %v1789
    %2986 = vmatprep.subr.bf16.mxu0 0
    %2987 = vmatpush1.bf16.msra.mxu0 %v1786
    %2988 = vmatprep.subr.bf16.mxu0 0
    %2989 = vmatpush1.bf16.msra.mxu0 %v1783
    %2990 = vmatprep.subr.bf16.mxu0 0
    %2991 = vmatpush1.bf16.msra.mxu0 %v1780
    %2992 = vmatprep.subr.bf16.mxu0 0
    %2993 = vmatpush1.bf16.msra.mxu0 %v1777
    %2994 = vmatprep.subr.bf16.mxu0 0
    %2995 = vmatpush1.bf16.msra.mxu0 %v1774
    %2996 = vmatprep.subr.bf16.mxu0 0
    %2997 = vmatpush1.bf16.msra.mxu0 %v1771
    %2998 = vmatprep.subr.bf16.mxu0 0
    %2999 = vmatpush2.bf16.msra.mxu0 %v1816
    %3000 = vmatprep.subr.bf16.mxu0 0
    %3001 = vmatpush2.bf16.msra.mxu0 %v1813
    %3002 = vmatprep.subr.bf16.mxu0 0
    %3003 = vmatpush2.bf16.msra.mxu0 %v1810
    %3004 = vmatprep.subr.bf16.mxu0 0
    %3005 = vmatpush2.bf16.msra.mxu0 %v1807
    %3006 = vmatprep.subr.bf16.mxu0 0
    %3007 = vmatpush2.bf16.msra.mxu0 %v1804
    %3008 = vmatprep.subr.bf16.mxu0 0
    %3009 = vmatpush2.bf16.msra.mxu0 %v1801
    %3010 = vmatprep.subr.bf16.mxu0 0
    %3011 = vmatpush2.bf16.msra.mxu0 %v1798
    %3012 = vmatprep.subr.bf16.mxu0 0
    %3013 = vmatpush2.bf16.msra.mxu0 %v1795
    %3014 = vmatprep.mubr.bf16.mxu0 %v2902
    %3015 = vmatmul.mubr.bf16.gmra.mxu0 %v2901
    %v3016 = vpop.f32.mrf.mxu0
    %v3017 = vadd.f32 0.0, %v3016
    %v3018 = vpop.f32.mrf.mxu0
    %v3019 = vpop.f32.mrf.mxu0
    %v3020 = vadd.f32 0.0, %v3019
    %v3021 = vpop.f32.mrf.mxu0
    %3022 = vmatprep.mubr.bf16.mxu0 %v2904
    %3023 = vmatmul.mubr.bf16.gmra.mxu0 %v2903
    %v3024 = vpop.f32.mrf.mxu0
    %v3025 = vadd.f32 0.0, %v3024
    %v3026 = vpop.f32.mrf.mxu0
    %v3027 = vpop.f32.mrf.mxu0
    %v3028 = vadd.f32 0.0, %v3027
    %v3029 = vpop.f32.mrf.mxu0
    %3030 = vmatprep.mubr.bf16.mxu0 %v2906
    %3031 = vmatmul.mubr.bf16.gmra.mxu0 %v2905
    %v3032 = vpop.f32.mrf.mxu0
    %v3033 = vadd.f32 0.0, %v3032
    %v3034 = vpop.f32.mrf.mxu0
    %v3035 = vpop.f32.mrf.mxu0
    %v3036 = vadd.f32 0.0, %v3035
    %v3037 = vpop.f32.mrf.mxu0
    %3038 = vmatprep.mubr.bf16.mxu0 %v2908
    %3039 = vmatmul.mubr.bf16.gmra.mxu0 %v2907
    %v3040 = vpop.f32.mrf.mxu0
    %v3041 = vadd.f32 0.0, %v3040
    %v3042 = vpop.f32.mrf.mxu0
    %v3043 = vpop.f32.mrf.mxu0
    %v3044 = vadd.f32 0.0, %v3043
    %v3045 = vpop.f32.mrf.mxu0
    %3046 = vdwg.mxu0
    %v3047 = vmul.f32 %v2944, 0.25
    %v3048 = vmul.f32 %v2946, 0.25
    %v3049 = vmul.f32 %v3017, 0.25
    %v3050 = vmul.f32 %v2948, 0.25
    %v3051 = vmul.f32 %v2950, 0.25
    %v3052 = vmul.f32 %v3020, 0.25
    %v3053 = vmul.f32 %v2954, 0.25
    %v3054 = vmul.f32 %v2956, 0.25
    %v3055 = vmul.f32 %v3025, 0.25
    %v3056 = vmul.f32 %v2958, 0.25
    %v3057 = vmul.f32 %v2960, 0.25
    %v3058 = vmul.f32 %v3028, 0.25
    %v3059 = vmul.f32 %v2964, 0.25
    %v3060 = vmul.f32 %v2966, 0.25
    %v3061 = vmul.f32 %v3033, 0.25
    %v3062 = vmul.f32 %v2968, 0.25
    %v3063 = vmul.f32 %v2970, 0.25
    %v3064 = vmul.f32 %v3036, 0.25
    %v3065 = vmul.f32 %v2974, 0.25
    %v3066 = vmul.f32 %v2976, 0.25
    %v3067 = vmul.f32 %v3041, 0.25
    %v3068 = vmul.f32 %v2978, 0.25
    %v3069 = vmul.f32 %v2980, 0.25
    %v3070 = vmul.f32 %v3044, 0.25
    %v3071 = vadd.f32 %v2587, %v3047
    %v3072 = vadd.f32 %v2588, %v3048
    %v3073 = vadd.f32 %v2589, %v3049
    %v3074 = vadd.f32 %v2590, %v3050
    %v3075 = vadd.f32 %v2591, %v3051
    %v3076 = vadd.f32 %v2592, %v3052
    %v3077 = vadd.f32 %v2593, %v3053
    %v3078 = vadd.f32 %v2594, %v3054
    %v3079 = vadd.f32 %v2595, %v3055
    %v3080 = vadd.f32 %v2596, %v3056
    %v3081 = vadd.f32 %v2597, %v3057
    %v3082 = vadd.f32 %v2598, %v3058
    %v3083 = vadd.f32 %v2599, %v3059
    %v3084 = vadd.f32 %v2600, %v3060
    %v3085 = vadd.f32 %v2601, %v3061
    %v3086 = vadd.f32 %v2602, %v3062
    %v3087 = vadd.f32 %v2603, %v3063
    %v3088 = vadd.f32 %v2604, %v3064
    %v3089 = vadd.f32 %v2605, %v3065
    %v3090 = vadd.f32 %v2606, %v3066
    %v3091 = vadd.f32 %v2607, %v3067
    %v3092 = vadd.f32 %v2608, %v3068
    %v3093 = vadd.f32 %v2609, %v3069
    %v3094 = vadd.f32 %v2610, %v3070
    %v3095 = vadd.f32 %v3071, %v2070
    %v3096 = vadd.f32 %v3072, %v2074
    %v3097 = vadd.f32 %v3073, %v2078
    %v3098 = vadd.f32 %v3074, %v2070
    %v3099 = vadd.f32 %v3075, %v2074
    %v3100 = vadd.f32 %v3076, %v2078
    %v3101 = vadd.f32 %v3077, %v2070
    %v3102 = vadd.f32 %v3078, %v2074
    %v3103 = vadd.f32 %v3079, %v2078
    %v3104 = vadd.f32 %v3080, %v2070
    %v3105 = vadd.f32 %v3081, %v2074
    %v3106 = vadd.f32 %v3082, %v2078
    %v3107 = vadd.f32 %v3083, %v2070
    %v3108 = vadd.f32 %v3084, %v2074
    %v3109 = vadd.f32 %v3085, %v2078
    %v3110 = vadd.f32 %v3086, %v2070
    %v3111 = vadd.f32 %v3087, %v2074
    %v3112 = vadd.f32 %v3088, %v2078
    %v3113 = vadd.f32 %v3089, %v2070
    %v3114 = vadd.f32 %v3090, %v2074
    %v3115 = vadd.f32 %v3091, %v2078
    %v3116 = vadd.f32 %v3092, %v2070
    %v3117 = vadd.f32 %v3093, %v2074
    %v3118 = vadd.f32 %v3094, %v2078
    %v3119 = vpack.c.bf16 %v3098, %v3095
    %v3120 = vpack.c.bf16 %v3099, %v3096
    %v3121 = vpack.c.bf16 %v3100, %v3097
    %v3122 = vpack.c.bf16 %v3104, %v3101
    %v3123 = vpack.c.bf16 %v3105, %v3102
    %v3124 = vpack.c.bf16 %v3106, %v3103
    %v3125 = vpack.c.bf16 %v3110, %v3107
    %v3126 = vpack.c.bf16 %v3111, %v3108
    %v3127 = vpack.c.bf16 %v3112, %v3109
    %v3128 = vpack.c.bf16 %v3116, %v3113
    %v3129 = vpack.c.bf16 %v3117, %v3114
    %v3130 = vpack.c.bf16 %v3118, %v3115
    %3131 = vmatprep.subr.bf16.mxu0 %v1242
    %3132 = vmatpush1.bf16.msra.mxu0 %v1241
    %3133 = vmatprep.subr.bf16.mxu0 %v1240
    %3134 = vmatpush1.bf16.msra.mxu0 %v1239
    %3135 = vmatprep.subr.bf16.mxu0 %v1238
    %3136 = vmatpush1.bf16.msra.mxu0 %v1237
    %3137 = vmatprep.subr.bf16.mxu0 %v1236
    %3138 = vmatpush1.bf16.msra.mxu0 %v1235
    %3139 = vmatprep.subr.bf16.mxu0 %v1234
    %3140 = vmatpush1.bf16.msra.mxu0 %v1233
    %3141 = vmatprep.subr.bf16.mxu0 %v1232
    %3142 = vmatpush1.bf16.msra.mxu0 %v1231
    %3143 = vmatprep.subr.bf16.mxu0 %v1230
    %3144 = vmatpush1.bf16.msra.mxu0 %v1229
    %3145 = vmatprep.subr.bf16.mxu0 %v1228
    %3146 = vmatpush1.bf16.msra.mxu0 %v1227
    %3147 = vmatprep.subr.bf16.mxu0 %v1258
    %3148 = vmatpush2.bf16.msra.mxu0 %v1257
    %3149 = vmatprep.subr.bf16.mxu0 %v1256
    %3150 = vmatpush2.bf16.msra.mxu0 %v1255
    %3151 = vmatprep.subr.bf16.mxu0 %v1254
    %3152 = vmatpush2.bf16.msra.mxu0 %v1253
    %3153 = vmatprep.subr.bf16.mxu0 %v1252
    %3154 = vmatpush2.bf16.msra.mxu0 %v1251
    %3155 = vmatprep.subr.bf16.mxu0 %v1250
    %3156 = vmatpush2.bf16.msra.mxu0 %v1249
    %3157 = vmatprep.subr.bf16.mxu0 %v1248
    %3158 = vmatpush2.bf16.msra.mxu0 %v1247
    %3159 = vmatprep.subr.bf16.mxu0 %v1246
    %3160 = vmatpush2.bf16.msra.mxu0 %v1245
    %3161 = vmatprep.subr.bf16.mxu0 %v1244
    %3162 = vmatpush2.bf16.msra.mxu0 %v1243
    %3163 = vmatprep.mubr.bf16.mxu0 %v3120
    %3164 = vmatmul.mubr.bf16.gmra.mxu0 %v3119
    %v3165 = vpop.f32.mrf.mxu0
    %v3166 = vadd.f32 %v897, %v3165
    %v3167 = vpop.f32.mrf.mxu0
    %v3168 = vadd.f32 %v899, %v3167
    %v3169 = vpop.f32.mrf.mxu0
    %v3170 = vadd.f32 %v901, %v3169
    %v3171 = vpop.f32.mrf.mxu0
    %v3172 = vadd.f32 %v903, %v3171
    %3173 = vmatprep.mubr.bf16.mxu0 %v3123
    %3174 = vmatmul.mubr.bf16.gmra.mxu0 %v3122
    %v3175 = vpop.f32.mrf.mxu0
    %v3176 = vadd.f32 %v907, %v3175
    %v3177 = vpop.f32.mrf.mxu0
    %v3178 = vadd.f32 %v909, %v3177
    %v3179 = vpop.f32.mrf.mxu0
    %v3180 = vadd.f32 %v911, %v3179
    %v3181 = vpop.f32.mrf.mxu0
    %v3182 = vadd.f32 %v913, %v3181
    %3183 = vmatprep.mubr.bf16.mxu0 %v3126
    %3184 = vmatmul.mubr.bf16.gmra.mxu0 %v3125
    %v3185 = vpop.f32.mrf.mxu0
    %v3186 = vadd.f32 %v917, %v3185
    %v3187 = vpop.f32.mrf.mxu0
    %v3188 = vadd.f32 %v919, %v3187
    %v3189 = vpop.f32.mrf.mxu0
    %v3190 = vadd.f32 %v921, %v3189
    %v3191 = vpop.f32.mrf.mxu0
    %v3192 = vadd.f32 %v923, %v3191
    %3193 = vmatprep.mubr.bf16.mxu0 %v3129
    %3194 = vmatmul.mubr.bf16.gmra.mxu0 %v3128
    %v3195 = vpop.f32.mrf.mxu0
    %v3196 = vadd.f32 %v927, %v3195
    %v3197 = vpop.f32.mrf.mxu0
    %v3198 = vadd.f32 %v929, %v3197
    %v3199 = vpop.f32.mrf.mxu0
    %v3200 = vadd.f32 %v931, %v3199
    %v3201 = vpop.f32.mrf.mxu0
    %v3202 = vadd.f32 %v933, %v3201
    %3203 = vdwg.mxu0
    %3204 = vmatprep.subr.bf16.mxu0 %v1274
    %3205 = vmatpush1.bf16.msra.mxu0 %v1273
    %3206 = vmatprep.subr.bf16.mxu0 %v1272
    %3207 = vmatpush1.bf16.msra.mxu0 %v1271
    %3208 = vmatprep.subr.bf16.mxu0 %v1270
    %3209 = vmatpush1.bf16.msra.mxu0 %v1269
    %3210 = vmatprep.subr.bf16.mxu0 %v1268
    %3211 = vmatpush1.bf16.msra.mxu0 %v1267
    %3212 = vmatprep.subr.bf16.mxu0 %v1266
    %3213 = vmatpush1.bf16.msra.mxu0 %v1265
    %3214 = vmatprep.subr.bf16.mxu0 %v1264
    %3215 = vmatpush1.bf16.msra.mxu0 %v1263
    %3216 = vmatprep.subr.bf16.mxu0 %v1262
    %3217 = vmatpush1.bf16.msra.mxu0 %v1261
    %3218 = vmatprep.subr.bf16.mxu0 %v1260
    %3219 = vmatpush1.bf16.msra.mxu0 %v1259
    %3220 = vmatprep.subr.bf16.mxu0 0
    %3221 = vmatpush2.bf16.msra.mxu0 0
    %3222 = vmatprep.subr.bf16.mxu0 0
    %3223 = vmatpush2.bf16.msra.mxu0 0
    %3224 = vmatprep.subr.bf16.mxu0 0
    %3225 = vmatpush2.bf16.msra.mxu0 0
    %3226 = vmatprep.subr.bf16.mxu0 0
    %3227 = vmatpush2.bf16.msra.mxu0 0
    %3228 = vmatprep.subr.bf16.mxu0 0
    %3229 = vmatpush2.bf16.msra.mxu0 0
    %3230 = vmatprep.subr.bf16.mxu0 0
    %3231 = vmatpush2.bf16.msra.mxu0 0
    %3232 = vmatprep.subr.bf16.mxu0 0
    %3233 = vmatpush2.bf16.msra.mxu0 0
    %3234 = vmatprep.subr.bf16.mxu0 0
    %3235 = vmatpush2.bf16.msra.mxu0 0
    %3236 = vmatprep.mubr.bf16.mxu0 0
    %3237 = vmatmul.mubr.bf16.gmra.mxu0 %v3121
    %v3238 = vpop.f32.mrf.mxu0
    %v3239 = vadd.f32 %v3166, %v3238
    %v3240 = vpop.f32.mrf.mxu0
    %v3241 = vadd.f32 %v3168, %v3240
    %v3242 = vpop.f32.mrf.mxu0
    %v3243 = vadd.f32 %v3170, %v3242
    %v3244 = vpop.f32.mrf.mxu0
    %v3245 = vadd.f32 %v3172, %v3244
    %3246 = vmatprep.mubr.bf16.mxu0 0
    %3247 = vmatmul.mubr.bf16.gmra.mxu0 %v3124
    %v3248 = vpop.f32.mrf.mxu0
    %v3249 = vadd.f32 %v3176, %v3248
    %v3250 = vpop.f32.mrf.mxu0
    %v3251 = vadd.f32 %v3178, %v3250
    %v3252 = vpop.f32.mrf.mxu0
    %v3253 = vadd.f32 %v3180, %v3252
    %v3254 = vpop.f32.mrf.mxu0
    %v3255 = vadd.f32 %v3182, %v3254
    %3256 = vmatprep.mubr.bf16.mxu0 0
    %3257 = vmatmul.mubr.bf16.gmra.mxu0 %v3127
    %v3258 = vpop.f32.mrf.mxu0
    %v3259 = vadd.f32 %v3186, %v3258
    %v3260 = vpop.f32.mrf.mxu0
    %v3261 = vadd.f32 %v3188, %v3260
    %v3262 = vpop.f32.mrf.mxu0
    %v3263 = vadd.f32 %v3190, %v3262
    %v3264 = vpop.f32.mrf.mxu0
    %v3265 = vadd.f32 %v3192, %v3264
    %3266 = vmatprep.mubr.bf16.mxu0 0
    %3267 = vmatmul.mubr.bf16.gmra.mxu0 %v3130
    %v3268 = vpop.f32.mrf.mxu0
    %v3269 = vadd.f32 %v3196, %v3268
    %v3270 = vpop.f32.mrf.mxu0
    %v3271 = vadd.f32 %v3198, %v3270
    %v3272 = vpop.f32.mrf.mxu0
    %v3273 = vadd.f32 %v3200, %v3272
    %v3274 = vpop.f32.mrf.mxu0
    %v3275 = vadd.f32 %v3202, %v3274
    %3276 = vdwg.mxu0
    %v3277 = vmul.f32 %v464, 0.75
    %v3279 = vlaneseq
    %v3280 = vshrl.u32 %v3279, 7
    %v3281 = vsub.s32 0, %v3280
    %v3282 = vrot.slane %v3277, %v3281
    %v3283 = vlaneseq
    %v3284 = vshrl.u32 %v3283, 7
    %v3285 = vsub.s32 4, %v3284
    %v3286 = vrot.slane %v3277, %v3285
    %v3289 = vlaneseq
    %v3290 = vshrl.u32 %v3289, 7
    %v3291 = vsub.s32 0, %v3290
    %v3292 = vrot.slane %v3282, %v3291
    %v3293 = vlaneseq
    %v3294 = vshrl.u32 %v3293, 7
    %v3295 = vsub.s32 0, %v3294
    %v3296 = vrot.slane %v3286, %v3295
    %v3297 = vadd.f32 %v3239, %v3292
    %v3298 = vadd.f32 %v3241, %v3296
    %v3299 = vadd.f32 %v3243, %v3292
    %v3300 = vadd.f32 %v3245, %v3296
    %v3301 = vadd.f32 %v3249, %v3292
    %v3302 = vadd.f32 %v3251, %v3296
    %v3303 = vadd.f32 %v3253, %v3292
    %v3304 = vadd.f32 %v3255, %v3296
    %v3305 = vadd.f32 %v3259, %v3292
    %v3306 = vadd.f32 %v3261, %v3296
    %v3307 = vadd.f32 %v3263, %v3292
    %v3308 = vadd.f32 %v3265, %v3296
    %v3309 = vadd.f32 %v3269, %v3292
    %v3310 = vadd.f32 %v3271, %v3296
    %v3311 = vadd.f32 %v3273, %v3292
    %v3312 = vadd.f32 %v3275, %v3296
    %v3313 = vtanh.pop %v3297
    %v3314 = vtanh.pop %v3298
    %v3315 = vtanh.pop %v3299
    %v3316 = vtanh.pop %v3300
    %v3317 = vtanh.pop %v3301
    %v3318 = vtanh.pop %v3302
    %v3319 = vtanh.pop %v3303
    %v3320 = vtanh.pop %v3304
    %v3321 = vtanh.pop %v3305
    %v3322 = vtanh.pop %v3306
    %v3323 = vtanh.pop %v3307
    %v3324 = vtanh.pop %v3308
    %v3325 = vtanh.pop %v3309
    %v3326 = vtanh.pop %v3310
    %v3327 = vtanh.pop %v3311
    %v3328 = vtanh.pop %v3312
    %v3329 = vadd.f32 %v3297, %v362
    %v3330 = vadd.f32 %v3298, %v364
    %v3331 = vadd.f32 %v3299, %v366
    %v3332 = vadd.f32 %v3300, %v368
    %v3333 = vadd.f32 %v3301, %v372
    %v3334 = vadd.f32 %v3302, %v374
    %v3335 = vadd.f32 %v3303, %v376
    %v3336 = vadd.f32 %v3304, %v378
    %v3337 = vadd.f32 %v3305, %v382
    %v3338 = vadd.f32 %v3306, %v384
    %v3339 = vadd.f32 %v3307, %v386
    %v3340 = vadd.f32 %v3308, %v388
    %v3341 = vadd.f32 %v3309, %v392
    %v3342 = vadd.f32 %v3310, %v394
    %v3343 = vadd.f32 %v3311, %v396
    %v3344 = vadd.f32 %v3312, %v398
    %v3345 = vtanh.pop %v3329
    %v3346 = vtanh.pop %v3330
    %v3347 = vtanh.pop %v3331
    %v3348 = vtanh.pop %v3332
    %v3349 = vtanh.pop %v3333
    %v3350 = vtanh.pop %v3334
    %v3351 = vtanh.pop %v3335
    %v3352 = vtanh.pop %v3336
    %v3353 = vtanh.pop %v3337
    %v3354 = vtanh.pop %v3338
    %v3355 = vtanh.pop %v3339
    %v3356 = vtanh.pop %v3340
    %v3357 = vtanh.pop %v3341
    %v3358 = vtanh.pop %v3342
    %v3359 = vtanh.pop %v3343
    %v3360 = vtanh.pop %v3344
    %v3361 = vsub.f32 %v3345, %v3313
    %v3362 = vsub.f32 %v3346, %v3314
    %v3363 = vsub.f32 %v3347, %v3315
    %v3364 = vsub.f32 %v3348, %v3316
    %v3365 = vsub.f32 %v3349, %v3317
    %v3366 = vsub.f32 %v3350, %v3318
    %v3367 = vsub.f32 %v3351, %v3319
    %v3368 = vsub.f32 %v3352, %v3320
    %v3369 = vsub.f32 %v3353, %v3321
    %v3370 = vsub.f32 %v3354, %v3322
    %v3371 = vsub.f32 %v3355, %v3323
    %v3372 = vsub.f32 %v3356, %v3324
    %v3373 = vsub.f32 %v3357, %v3325
    %v3374 = vsub.f32 %v3358, %v3326
    %v3375 = vsub.f32 %v3359, %v3327
    %v3376 = vsub.f32 %v3360, %v3328
    %v3377 = vmul.f32 %v3361, 2.0
    %v3378 = vmul.f32 %v3362, 2.0
    %v3379 = vmul.f32 %v3363, 2.0
    %v3380 = vmul.f32 %v3364, 2.0
    %v3381 = vmul.f32 %v3365, 2.0
    %v3382 = vmul.f32 %v3366, 2.0
    %v3383 = vmul.f32 %v3367, 2.0
    %v3384 = vmul.f32 %v3368, 2.0
    %v3385 = vmul.f32 %v3369, 2.0
    %v3386 = vmul.f32 %v3370, 2.0
    %v3387 = vmul.f32 %v3371, 2.0
    %v3388 = vmul.f32 %v3372, 2.0
    %v3389 = vmul.f32 %v3373, 2.0
    %v3390 = vmul.f32 %v3374, 2.0
    %v3391 = vmul.f32 %v3375, 2.0
    %v3392 = vmul.f32 %v3376, 2.0
    %v3393 = vadd.f32 %v3313, %v3377
    %v3394 = vadd.f32 %v3314, %v3378
    %v3395 = vadd.f32 %v3315, %v3379
    %v3396 = vadd.f32 %v3316, %v3380
    %v3397 = vadd.f32 %v3317, %v3381
    %v3398 = vadd.f32 %v3318, %v3382
    %v3399 = vadd.f32 %v3319, %v3383
    %v3400 = vadd.f32 %v3320, %v3384
    %v3401 = vadd.f32 %v3321, %v3385
    %v3402 = vadd.f32 %v3322, %v3386
    %v3403 = vadd.f32 %v3323, %v3387
    %v3404 = vadd.f32 %v3324, %v3388
    %v3405 = vadd.f32 %v3325, %v3389
    %v3406 = vadd.f32 %v3326, %v3390
    %v3407 = vadd.f32 %v3327, %v3391
    %v3408 = vadd.f32 %v3328, %v3392
    %v3409 = vpack.c.bf16 %v3395, %v3393
    %v3410 = vpack.c.bf16 %v3396, %v3394
    %v3411 = vpack.c.bf16 %v3399, %v3397
    %v3412 = vpack.c.bf16 %v3400, %v3398
    %v3413 = vpack.c.bf16 %v3403, %v3401
    %v3414 = vpack.c.bf16 %v3404, %v3402
    %v3415 = vpack.c.bf16 %v3407, %v3405
    %v3416 = vpack.c.bf16 %v3408, %v3406
    %3417 = vmatprep.subr.bf16.mxu0 %v1791
    %3418 = vmatpush1.bf16.msra.mxu0 %v1790
    %3419 = vmatprep.subr.bf16.mxu0 %v1788
    %3420 = vmatpush1.bf16.msra.mxu0 %v1787
    %3421 = vmatprep.subr.bf16.mxu0 %v1785
    %3422 = vmatpush1.bf16.msra.mxu0 %v1784
    %3423 = vmatprep.subr.bf16.mxu0 %v1782
    %3424 = vmatpush1.bf16.msra.mxu0 %v1781
    %3425 = vmatprep.subr.bf16.mxu0 %v1779
    %3426 = vmatpush1.bf16.msra.mxu0 %v1778
    %3427 = vmatprep.subr.bf16.mxu0 %v1776
    %3428 = vmatpush1.bf16.msra.mxu0 %v1775
    %3429 = vmatprep.subr.bf16.mxu0 %v1773
    %3430 = vmatpush1.bf16.msra.mxu0 %v1772
    %3431 = vmatprep.subr.bf16.mxu0 %v1770
    %3432 = vmatpush1.bf16.msra.mxu0 %v1769
    %3433 = vmatprep.subr.bf16.mxu0 %v1815
    %3434 = vmatpush2.bf16.msra.mxu0 %v1814
    %3435 = vmatprep.subr.bf16.mxu0 %v1812
    %3436 = vmatpush2.bf16.msra.mxu0 %v1811
    %3437 = vmatprep.subr.bf16.mxu0 %v1809
    %3438 = vmatpush2.bf16.msra.mxu0 %v1808
    %3439 = vmatprep.subr.bf16.mxu0 %v1806
    %3440 = vmatpush2.bf16.msra.mxu0 %v1805
    %3441 = vmatprep.subr.bf16.mxu0 %v1803
    %3442 = vmatpush2.bf16.msra.mxu0 %v1802
    %3443 = vmatprep.subr.bf16.mxu0 %v1800
    %3444 = vmatpush2.bf16.msra.mxu0 %v1799
    %3445 = vmatprep.subr.bf16.mxu0 %v1797
    %3446 = vmatpush2.bf16.msra.mxu0 %v1796
    %3447 = vmatprep.subr.bf16.mxu0 %v1794
    %3448 = vmatpush2.bf16.msra.mxu0 %v1793
    %3449 = vmatprep.mubr.bf16.mxu0 %v3410
    %3450 = vmatmul.mubr.bf16.gmra.mxu0 %v3409
    %v3451 = vpop.f32.mrf.mxu0
    %v3452 = vadd.f32 0.0, %v3451
    %v3453 = vpop.f32.mrf.mxu0
    %v3454 = vadd.f32 0.0, %v3453
    %v3455 = vpop.f32.mrf.mxu0
    %v3456 = vadd.f32 0.0, %v3455
    %v3457 = vpop.f32.mrf.mxu0
    %v3458 = vadd.f32 0.0, %v3457
    %3459 = vmatprep.mubr.bf16.mxu0 %v3412
    %3460 = vmatmul.mubr.bf16.gmra.mxu0 %v3411
    %v3461 = vpop.f32.mrf.mxu0
    %v3462 = vadd.f32 0.0, %v3461
    %v3463 = vpop.f32.mrf.mxu0
    %v3464 = vadd.f32 0.0, %v3463
    %v3465 = vpop.f32.mrf.mxu0
    %v3466 = vadd.f32 0.0, %v3465
    %v3467 = vpop.f32.mrf.mxu0
    %v3468 = vadd.f32 0.0, %v3467
    %3469 = vmatprep.mubr.bf16.mxu0 %v3414
    %3470 = vmatmul.mubr.bf16.gmra.mxu0 %v3413
    %v3471 = vpop.f32.mrf.mxu0
    %v3472 = vadd.f32 0.0, %v3471
    %v3473 = vpop.f32.mrf.mxu0
    %v3474 = vadd.f32 0.0, %v3473
    %v3475 = vpop.f32.mrf.mxu0
    %v3476 = vadd.f32 0.0, %v3475
    %v3477 = vpop.f32.mrf.mxu0
    %v3478 = vadd.f32 0.0, %v3477
    %3479 = vmatprep.mubr.bf16.mxu0 %v3416
    %3480 = vmatmul.mubr.bf16.gmra.mxu0 %v3415
    %v3481 = vpop.f32.mrf.mxu0
    %v3482 = vadd.f32 0.0, %v3481
    %v3483 = vpop.f32.mrf.mxu0
    %v3484 = vadd.f32 0.0, %v3483
    %v3485 = vpop.f32.mrf.mxu0
    %v3486 = vadd.f32 0.0, %v3485
    %v3487 = vpop.f32.mrf.mxu0
    %v3488 = vadd.f32 0.0, %v3487
    %3489 = vdwg.mxu0
    %3490 = vmatprep.subr.bf16.mxu0 0
    %3491 = vmatpush1.bf16.msra.mxu0 %v1792
    %3492 = vmatprep.subr.bf16.mxu0 0
    %3493 = vmatpush1.bf16.msra.mxu0 %v1789
    %3494 = vmatprep.subr.bf16.mxu0 0
    %3495 = vmatpush1.bf16.msra.mxu0 %v1786
    %3496 = vmatprep.subr.bf16.mxu0 0
    %3497 = vmatpush1.bf16.msra.mxu0 %v1783
    %3498 = vmatprep.subr.bf16.mxu0 0
    %3499 = vmatpush1.bf16.msra.mxu0 %v1780
    %3500 = vmatprep.subr.bf16.mxu0 0
    %3501 = vmatpush1.bf16.msra.mxu0 %v1777
    %3502 = vmatprep.subr.bf16.mxu0 0
    %3503 = vmatpush1.bf16.msra.mxu0 %v1774
    %3504 = vmatprep.subr.bf16.mxu0 0
    %3505 = vmatpush1.bf16.msra.mxu0 %v1771
    %3506 = vmatprep.subr.bf16.mxu0 0
    %3507 = vmatpush2.bf16.msra.mxu0 %v1816
    %3508 = vmatprep.subr.bf16.mxu0 0
    %3509 = vmatpush2.bf16.msra.mxu0 %v1813
    %3510 = vmatprep.subr.bf16.mxu0 0
    %3511 = vmatpush2.bf16.msra.mxu0 %v1810
    %3512 = vmatprep.subr.bf16.mxu0 0
    %3513 = vmatpush2.bf16.msra.mxu0 %v1807
    %3514 = vmatprep.subr.bf16.mxu0 0
    %3515 = vmatpush2.bf16.msra.mxu0 %v1804
    %3516 = vmatprep.subr.bf16.mxu0 0
    %3517 = vmatpush2.bf16.msra.mxu0 %v1801
    %3518 = vmatprep.subr.bf16.mxu0 0
    %3519 = vmatpush2.bf16.msra.mxu0 %v1798
    %3520 = vmatprep.subr.bf16.mxu0 0
    %3521 = vmatpush2.bf16.msra.mxu0 %v1795
    %3522 = vmatprep.mubr.bf16.mxu0 %v3410
    %3523 = vmatmul.mubr.bf16.gmra.mxu0 %v3409
    %v3524 = vpop.f32.mrf.mxu0
    %v3525 = vadd.f32 0.0, %v3524
    %v3526 = vpop.f32.mrf.mxu0
    %v3527 = vpop.f32.mrf.mxu0
    %v3528 = vadd.f32 0.0, %v3527
    %v3529 = vpop.f32.mrf.mxu0
    %3530 = vmatprep.mubr.bf16.mxu0 %v3412
    %3531 = vmatmul.mubr.bf16.gmra.mxu0 %v3411
    %v3532 = vpop.f32.mrf.mxu0
    %v3533 = vadd.f32 0.0, %v3532
    %v3534 = vpop.f32.mrf.mxu0
    %v3535 = vpop.f32.mrf.mxu0
    %v3536 = vadd.f32 0.0, %v3535
    %v3537 = vpop.f32.mrf.mxu0
    %3538 = vmatprep.mubr.bf16.mxu0 %v3414
    %3539 = vmatmul.mubr.bf16.gmra.mxu0 %v3413
    %v3540 = vpop.f32.mrf.mxu0
    %v3541 = vadd.f32 0.0, %v3540
    %v3542 = vpop.f32.mrf.mxu0
    %v3543 = vpop.f32.mrf.mxu0
    %v3544 = vadd.f32 0.0, %v3543
    %v3545 = vpop.f32.mrf.mxu0
    %3546 = vmatprep.mubr.bf16.mxu0 %v3416
    %3547 = vmatmul.mubr.bf16.gmra.mxu0 %v3415
    %v3548 = vpop.f32.mrf.mxu0
    %v3549 = vadd.f32 0.0, %v3548
    %v3550 = vpop.f32.mrf.mxu0
    %v3551 = vpop.f32.mrf.mxu0
    %v3552 = vadd.f32 0.0, %v3551
    %v3553 = vpop.f32.mrf.mxu0
    %3554 = vdwg.mxu0
    %v3555 = vmul.f32 %v3452, 0.25
    %v3556 = vmul.f32 %v3454, 0.25
    %v3557 = vmul.f32 %v3525, 0.25
    %v3558 = vmul.f32 %v3456, 0.25
    %v3559 = vmul.f32 %v3458, 0.25
    %v3560 = vmul.f32 %v3528, 0.25
    %v3561 = vmul.f32 %v3462, 0.25
    %v3562 = vmul.f32 %v3464, 0.25
    %v3563 = vmul.f32 %v3533, 0.25
    %v3564 = vmul.f32 %v3466, 0.25
    %v3565 = vmul.f32 %v3468, 0.25
    %v3566 = vmul.f32 %v3536, 0.25
    %v3567 = vmul.f32 %v3472, 0.25
    %v3568 = vmul.f32 %v3474, 0.25
    %v3569 = vmul.f32 %v3541, 0.25
    %v3570 = vmul.f32 %v3476, 0.25
    %v3571 = vmul.f32 %v3478, 0.25
    %v3572 = vmul.f32 %v3544, 0.25
    %v3573 = vmul.f32 %v3482, 0.25
    %v3574 = vmul.f32 %v3484, 0.25
    %v3575 = vmul.f32 %v3549, 0.25
    %v3576 = vmul.f32 %v3486, 0.25
    %v3577 = vmul.f32 %v3488, 0.25
    %v3578 = vmul.f32 %v3552, 0.25
    %v3579 = vadd.f32 %v3095, %v3555
    %v3580 = vadd.f32 %v3096, %v3556
    %v3581 = vadd.f32 %v3097, %v3557
    %v3582 = vadd.f32 %v3098, %v3558
    %v3583 = vadd.f32 %v3099, %v3559
    %v3584 = vadd.f32 %v3100, %v3560
    %v3585 = vadd.f32 %v3101, %v3561
    %v3586 = vadd.f32 %v3102, %v3562
    %v3587 = vadd.f32 %v3103, %v3563
    %v3588 = vadd.f32 %v3104, %v3564
    %v3589 = vadd.f32 %v3105, %v3565
    %v3590 = vadd.f32 %v3106, %v3566
    %v3591 = vadd.f32 %v3107, %v3567
    %v3592 = vadd.f32 %v3108, %v3568
    %v3593 = vadd.f32 %v3109, %v3569
    %v3594 = vadd.f32 %v3110, %v3570
    %v3595 = vadd.f32 %v3111, %v3571
    %v3596 = vadd.f32 %v3112, %v3572
    %v3597 = vadd.f32 %v3113, %v3573
    %v3598 = vadd.f32 %v3114, %v3574
    %v3599 = vadd.f32 %v3115, %v3575
    %v3600 = vadd.f32 %v3116, %v3576
    %v3601 = vadd.f32 %v3117, %v3577
    %v3602 = vadd.f32 %v3118, %v3578
    %v3603 = vadd.f32 %v3579, %v2070
    %v3604 = vadd.f32 %v3580, %v2074
    %v3605 = vadd.f32 %v3581, %v2078
    %v3606 = vadd.f32 %v3582, %v2070
    %v3607 = vadd.f32 %v3583, %v2074
    %v3608 = vadd.f32 %v3584, %v2078
    %v3609 = vadd.f32 %v3585, %v2070
    %v3610 = vadd.f32 %v3586, %v2074
    %v3611 = vadd.f32 %v3587, %v2078
    %v3612 = vadd.f32 %v3588, %v2070
    %v3613 = vadd.f32 %v3589, %v2074
    %v3614 = vadd.f32 %v3590, %v2078
    %v3615 = vadd.f32 %v3591, %v2070
    %v3616 = vadd.f32 %v3592, %v2074
    %v3617 = vadd.f32 %v3593, %v2078
    %v3618 = vadd.f32 %v3594, %v2070
    %v3619 = vadd.f32 %v3595, %v2074
    %v3620 = vadd.f32 %v3596, %v2078
    %v3621 = vadd.f32 %v3597, %v2070
    %v3622 = vadd.f32 %v3598, %v2074
    %v3623 = vadd.f32 %v3599, %v2078
    %v3624 = vadd.f32 %v3600, %v2070
    %v3625 = vadd.f32 %v3601, %v2074
    %v3626 = vadd.f32 %v3602, %v2078
    %3627 = vst [vmem:[%s10] sm:$0xff] %v3603
    %3628 = vst [vmem:[%s10 + $0x8] sm:$0xff] %v3604
    %3629 = vst [vmem:[%s10 + $0x10] sm:$0xff] %v3605
    %3630 = vst [vmem:[%s10 + $0x18] sm:$0xff] %v3606
    %3631 = vst [vmem:[%s10 + $0x20] sm:$0xff] %v3607
    %3632 = vst [vmem:[%s10 + $0x28] sm:$0xff] %v3608
    %3633 = vst [vmem:[%s10 + $0x30] sm:$0xff] %v3609
    %3634 = vst [vmem:[%s10 + $0x38] sm:$0xff] %v3610
    %3635 = vst [vmem:[%s10 + $0x40] sm:$0xff] %v3611
    %3636 = vst [vmem:[%s10 + $0x48] sm:$0xff] %v3612
    %3637 = vst [vmem:[%s10 + $0x50] sm:$0xff] %v3613
    %3638 = vst [vmem:[%s10 + $0x58] sm:$0xff] %v3614
    %3639 = vst [vmem:[%s10 + $0x60] sm:$0xff] %v3615
    %3640 = vst [vmem:[%s10 + $0x68] sm:$0xff] %v3616
    %3641 = vst [vmem:[%s10 + $0x70] sm:$0xff] %v3617
    %3642 = vst [vmem:[%s10 + $0x78] sm:$0xff] %v3618
    %3643 = vst [vmem:[%s10 + $0x80] sm:$0xff] %v3619
    %3644 = vst [vmem:[%s10 + $0x88] sm:$0xff] %v3620
    %3645 = vst [vmem:[%s10 + $0x90] sm:$0xff] %v3621
    %3646 = vst [vmem:[%s10 + $0x98] sm:$0xff] %v3622
    %3647 = vst [vmem:[%s10 + $0xa0] sm:$0xff] %v3623
    %3648 = vst [vmem:[%s10 + $0xa8] sm:$0xff] %v3624
    %3649 = vst [vmem:[%s10 + $0xb0] sm:$0xff] %v3625
    %3650 = vst [vmem:[%s10 + $0xb8] sm:$0xff] %v3626
    // Predicated region
    $region46: #{gesture_lsm_forward.1} parent=1 // pred_check
      _
    $region47: #{gesture_lsm_forward.1} parent=1 // pred_check_branch
      %3652 = sbr.rel (0) target = $region49
    $region48: #{gesture_lsm_forward.1} parent=1 // pred_region
      _
    $region49: #{gesture_lsm_forward.1} parent=1 // pred_fallthru
      _
    // Predicated region
    $region50: #{gesture_lsm_forward.1} parent=1 // pred_check
      _
    $region51: #{gesture_lsm_forward.1} parent=1 // pred_check_branch
      %3654 = sbr.rel (0) target = $region53
    $region52: #{gesture_lsm_forward.1} parent=1 // pred_region
      _
    $region53: #{gesture_lsm_forward.1} parent=1 // pred_fallthru
      _
    %3655 = vsyncpa [#allocation3], 1

</llo_original>
